<compile_context>
chip_gen: v7x
topology: tpu7x:2x2x1
jax: 0.10.0
libtpu: 0.0.40
codegen_flags: <defaults>
</compile_context>

<pallas_src>
import functools

import jax
import jax.numpy as jnp
from jax.experimental import pallas as pl
from jax.experimental.pallas import tpu as pltpu

# ---- model config (small, synthetic) ----
AE_CH = 32            # autoencoder_channels (N)
AE_K = 16             # autoencoder_kernel_size (L)
AE_STRIDE = AE_K // 2
BN_CH = 16            # bottleneck_channels (B)
CONV_CH = 32          # convolution_channels (H)
CONV_K = 3            # convolution_kernel_size (P)
NUM_BLOCKS = 2
NUM_REPEAT = 2
NUM_SPK = 2
EPS = 1e-8

BATCH = 2
T_IN = 64                                    # input waveform length
K_FRAMES = (T_IN - AE_K) // AE_STRIDE + 1    # encoder frames


# ----------------------------- fused Pallas kernel (one sample per grid step) ------------------

def _tasnet_fused_kernel(scal_ref,                       # SMEM: [a1_i, a2_i]*nblk + [bdec]
                         segs_ref,                       # [1, S, stride] non-overlapping segments
                         wenc_ref, benc_ref,             # [L, N], [1, N]   (encoder, pre-transposed)
                         cln_g_ref, cln_b_ref,           # [1, N]
                         w1_ref, b1_ref,                 # [N, Bc], [1, Bc]
                         bw1_ref, bb1_ref,               # [nblk, Bc, H], [nblk, 1, H]
                         bg1_ref, bbe1_ref,              # [nblk, 1, H]
                         bwd_ref, bbd_ref,               # [nblk, P, H], [nblk, 1, H]
                         bg2_ref, bbe2_ref,              # [nblk, 1, H]
                         bw3_ref, bb3_ref,               # [nblk, H, Bc], [nblk, 1, Bc]
                         w2_ref, b2_ref,                 # [Bc, N*spk], [1, N*spk]
                         wdec_ref,                       # [N, L]   (original decode weight)
                         o_ref,                          # [1, 1, spk*(K+1)*stride] lane-dense
                         dw_ref,                         # VMEM scratch [K + 2*maxpad, H]
                         *, dilations, maxpad):
    f32 = jnp.float32
    segs = segs_ref[0]                                   # [S, stride] for this sample
    kf = segs.shape[0] - 1                               # frames (static python int)

    # ---- encoder conv as two half-width matmuls (no frame duplication) + ReLU ----
    wenc_t = wenc_ref[...]                               # [L, N]
    enc = (jnp.dot(segs[:-1, :], wenc_t[:AE_STRIDE, :], preferred_element_type=f32)
           + jnp.dot(segs[1:, :], wenc_t[AE_STRIDE:, :], preferred_element_type=f32)
           + benc_ref[...])
    enc = jnp.maximum(enc, 0.0)                          # [K, N]

    # ---- cLN (per-frame channel norm), single-pass stats ----
    inv_c = 1.0 / AE_CH
    m = jnp.sum(enc, axis=-1, keepdims=True) * inv_c
    v = jnp.maximum(jnp.sum(enc * enc, axis=-1, keepdims=True) * inv_c - m * m, 0.0)
    normed = cln_g_ref[...] * (enc - m) * jax.lax.rsqrt(v + EPS) + cln_b_ref[...]
    cur = jnp.dot(normed, w1_ref[...], preferred_element_type=f32) + b1_ref[...]   # [K, Bc]

    inv_kh = 1.0 / (kf * CONV_CH)

    def gln(y, g, b):
        s1 = jnp.sum(jnp.sum(y, axis=-1, keepdims=True), axis=0, keepdims=True) * inv_kh
        s2 = jnp.sum(jnp.sum(y * y, axis=-1, keepdims=True), axis=0, keepdims=True) * inv_kh
        var = jnp.maximum(s2 - s1 * s1, 0.0)
        return g * (y - s1) * jax.lax.rsqrt(var + EPS) + b

    # Depthwise-conv halo scratch: rows [maxpad, maxpad+K) hold the current activation, edge rows
    # stay zero for the whole step (they implement the 'same' zero padding for every dilation).
    dw_ref[...] = jnp.zeros_like(dw_ref)

    # ---- TCN blocks, statically unrolled (weights stay resident in VMEM) ----
    for i, dil in enumerate(dilations):
        a1 = scal_ref[2 * i]                             # PReLU alphas from SMEM
        a2 = scal_ref[2 * i + 1]
        # 1x1 conv Bc -> H, PReLU, gLN
        y = jnp.dot(cur, bw1_ref[i], preferred_element_type=f32) + bb1_ref[i]       # [K, H]
        y = jnp.where(y >= 0.0, y, a1 * y)
        y = gln(y, bg1_ref[i], bbe1_ref[i])

        # dilated depthwise conv: one scratch write + CONV_K static halo slices (no concat copies)
        dw_ref[maxpad:maxpad + kf, :] = y
        pad = (CONV_K - 1) * dil // 2
        wdw = bwd_ref[i]                                 # [P, H]
        y = bbd_ref[i]                                   # start from the bias [1, H]
        for q in range(CONV_K):                          # static taps
            start = maxpad + q * dil - pad               # static row offset into the halo scratch
            y = y + dw_ref[start:start + kf, :] * wdw[q:q + 1, :]

        # PReLU, gLN, 1x1 conv H -> Bc, residual
        y = jnp.where(y >= 0.0, y, a2 * y)
        y = gln(y, bg2_ref[i], bbe2_ref[i])
        cur = cur + jnp.dot(y, bw3_ref[i], preferred_element_type=f32) + bb3_ref[i]

    # ---- mask (1x1 conv + ReLU), mask * encode, overlap-add decode ----
    msk = jnp.maximum(jnp.dot(cur, w2_ref[...], preferred_element_type=f32) + b2_ref[...], 0.0)
    bdec = scal_ref[2 * len(dilations)]

    # One decode matmul over (speaker, frame) rows against the original [N, L] weight.
    masked = jnp.concatenate(
        [enc * msk[:, s * AE_CH:(s + 1) * AE_CH] for s in range(NUM_SPK)], axis=0)   # [spk*K, N]
    fr = jnp.dot(masked, wdec_ref[...], preferred_element_type=f32)                  # [spk*K, L]

    # Overlap-add with stride = L/2: segment m = head[m] + tail[m-1]; stack speakers on sublanes.
    zrow = jnp.zeros((1, AE_STRIDE), f32)
    segs_out = []
    for s in range(NUM_SPK):                             # static speakers
        fs = fr[s * kf:(s + 1) * kf, :]                  # [K, L]
        segs_out.append(jnp.concatenate([fs[:, :AE_STRIDE], zrow], axis=0)
                        + jnp.concatenate([zrow, fs[:, AE_STRIDE:]], axis=0))        # [K+1, stride]
    out2 = jnp.concatenate(segs_out, axis=0)             # [spk*(K+1), stride]

    # Lane-dense flatten: scatter row r's 'stride' values into lanes [r*stride, (r+1)*stride) and
    # reduce over sublanes -> a single [1, spk*(K+1)*stride] row, stored with one dense store.
    nrows = NUM_SPK * (kf + 1)
    out_w = nrows * AE_STRIDE
    rows_i = jax.lax.broadcasted_iota(jnp.int32, (nrows, out_w), 0)
    cols_i = jax.lax.broadcasted_iota(jnp.int32, (nrows, out_w), 1)
    off_i = cols_i - rows_i * AE_STRIDE                  # lane offset within each row's slot
    scat = jnp.zeros((nrows, out_w), f32)
    for j in range(AE_STRIDE):                           # static, stride = 8 iterations
        scat = scat + jnp.where(off_i == j, out2[:, j:j + 1], 0.0)
    flat = jnp.sum(scat, axis=0, keepdims=True) + bdec   # [1, spk*(K+1)*stride]
    o_ref[0] = flat


# ----------------------------- pallas_call wrapper -----------------------------

def tasnet_forward(sample, length, params):
    """sample: [batch, 1, T] (PyTorch NCL layout).  Returns [batch, num_speakers, length]."""
    bsz, ch, t = sample.shape
    assert ch == 1 and t % AE_STRIDE == 0
    # non-overlapping segments only; the kernel rebuilds the stride-L/2 overlap via two matmuls
    segs = sample.reshape(bsz, t // AE_STRIDE, AE_STRIDE)        # [B, S, stride]
    n_seg = segs.shape[1]
    kf = n_seg - 1                                               # encoder frames
    dilations = tuple(params['dilations'])
    maxpad = max((CONV_K - 1) * d // 2 for d in dilations)

    # true scalars go through SMEM: [a1_0, a2_0, a1_1, a2_1, ..., bdec]
    scal = jnp.concatenate(
        [jnp.stack([params['blk_a1'], params['blk_a2']], axis=1).reshape(-1),
         params['bdec'].reshape(1)]).astype(jnp.float32)

    # pre-transpose weights once so every in-kernel matmul is a plain 2-D x @ W (layout plumbing)
    wenc_t = params['wenc'].T                                    # [L, N]
    w1_t = params['w1'].T                                        # [N, Bc]
    blk_w1_t = jnp.transpose(params['blk_w1'], (0, 2, 1))        # [nblk, Bc, H]
    blk_w3_t = jnp.transpose(params['blk_w3'], (0, 2, 1))        # [nblk, H, Bc]
    w2_t = params['w2'].T                                        # [Bc, N*spk]

    ins = [scal, segs,
           wenc_t, params['benc'], params['cln_g'], params['cln_b'],
           w1_t, params['b1'],
           blk_w1_t, params['blk_b1'], params['blk_g1'], params['blk_be1'],
           params['blk_wd'], params['blk_bd'], params['blk_g2'], params['blk_be2'],
           blk_w3_t, params['blk_b3'],
           w2_t, params['b2'], params['wdec']]

    def resident(a):
        nd = a.ndim
        return pl.BlockSpec(tuple(a.shape), lambda b, _nd=nd: (0,) * _nd)

    in_specs = ([pl.BlockSpec(memory_space=pltpu.MemorySpace.SMEM),
                 pl.BlockSpec((1, n_seg, AE_STRIDE), lambda b: (b, 0, 0))]
                + [resident(a) for a in ins[2:]])

    out_w = NUM_SPK * (kf + 1) * AE_STRIDE                       # lane-dense row (128 here)
    out_shape = jax.ShapeDtypeStruct((bsz, 1, out_w), jnp.float32)
    out_specs = pl.BlockSpec((1, 1, out_w), lambda b: (b, 0, 0))

    out = pl.pallas_call(
        functools.partial(_tasnet_fused_kernel, dilations=dilations, maxpad=maxpad),
        out_shape=out_shape,
        grid=(bsz,),                                             # per-sample; parallel across TCs on v7x
        in_specs=in_specs,
        out_specs=out_specs,
        scratch_shapes=[pltpu.VMEM((kf + 2 * maxpad, CONV_CH), jnp.float32)],
        compiler_params=pltpu.CompilerParams(dimension_semantics=("parallel",)),
    )(*ins)

    # [B, 1, spk*(K+1)*stride] -> [B, spk, (K+1)*stride] -> trim (free layout plumbing)
    out = out.reshape(bsz, NUM_SPK, (kf + 1) * AE_STRIDE)
    return out[:, :, :length]


# ----------------------------- params -----------------------------

def init_params(key):
    keys = iter(jax.random.split(key, 64))

    def nrm(shape, scale=0.1):
        return scale * jax.random.normal(next(keys), shape, jnp.float32)

    nblk = NUM_REPEAT * NUM_BLOCKS
    params = {
        'wenc': nrm((AE_CH, AE_K)),            # Conv1d(1, N, L) weight, squeezed
        'benc': nrm((1, AE_CH)),
        'cln_g': jnp.ones((1, AE_CH), jnp.float32),
        'cln_b': jnp.zeros((1, AE_CH), jnp.float32),
        'w1': nrm((BN_CH, AE_CH)),             # 1x1 conv N -> B
        'b1': nrm((1, BN_CH)),
        # per-block params stacked along a leading axis (block loop is unrolled in-kernel)
        'blk_w1': nrm((nblk, CONV_CH, BN_CH)),
        'blk_b1': nrm((nblk, 1, CONV_CH)),
        'blk_a1': jnp.full((nblk,), 0.25, jnp.float32),   # PReLU alpha
        'blk_g1': jnp.ones((nblk, 1, CONV_CH), jnp.float32),
        'blk_be1': jnp.zeros((nblk, 1, CONV_CH), jnp.float32),
        'blk_wd': nrm((nblk, CONV_K, CONV_CH)),           # depthwise taps [P, H]
        'blk_bd': nrm((nblk, 1, CONV_CH)),
        'blk_a2': jnp.full((nblk,), 0.25, jnp.float32),
        'blk_g2': jnp.ones((nblk, 1, CONV_CH), jnp.float32),
        'blk_be2': jnp.zeros((nblk, 1, CONV_CH), jnp.float32),
        'blk_w3': nrm((nblk, BN_CH, CONV_CH)),
        'blk_b3': nrm((nblk, 1, BN_CH)),
        'w2': nrm((AE_CH * NUM_SPK, BN_CH)),   # 1x1 conv B -> N*spk
        'b2': nrm((1, AE_CH * NUM_SPK)),
        'wdec': nrm((AE_CH, AE_K)),            # ConvTranspose1d(N, 1, L) weight, squeezed
        'bdec': nrm((1,)),
        'dilations': tuple(int(2 ** j) for _ in range(NUM_REPEAT) for j in range(NUM_BLOCKS)),
    }
    return params


# ----------------------------- pure-JAX reference -----------------------------

def tasnet_reference(sample, length, p):
    bsz, _, t = sample.shape
    segs = sample.reshape(bsz, t // AE_STRIDE, AE_STRIDE)
    frames = jnp.concatenate([segs[:, :-1, :], segs[:, 1:, :]], axis=-1)
    enc = jnp.maximum(jnp.einsum('bkl,nl->bkn', frames, p['wenc']) + p['benc'][0], 0.0)
    mean = enc.mean(-1, keepdims=True)
    var = ((enc - mean) ** 2).mean(-1, keepdims=True)
    normed = p['cln_g'][0] * (enc - mean) / jnp.sqrt(var + EPS) + p['cln_b'][0]
    cur = jnp.einsum('bkn,cn->bkc', normed, p['w1']) + p['b1'][0]
    for i, d in enumerate(p['dilations']):
        pad = (CONV_K - 1) * d // 2
        y = jnp.einsum('bkc,hc->bkh', cur, p['blk_w1'][i]) + p['blk_b1'][i, 0]
        y = jnp.where(y >= 0, y, p['blk_a1'][i] * y)
        m = y.mean((1, 2), keepdims=True)
        v = ((y - m) ** 2).mean((1, 2), keepdims=True)
        y = p['blk_g1'][i, 0] * (y - m) / jnp.sqrt(v + EPS) + p['blk_be1'][i, 0]
        ypad = jnp.pad(y, ((0, 0), (pad, pad), (0, 0)))
        acc = sum(ypad[:, q * d:q * d + y.shape[1], :] * p['blk_wd'][i, q]
                  for q in range(CONV_K))
        y = acc + p['blk_bd'][i, 0]
        y = jnp.where(y >= 0, y, p['blk_a2'][i] * y)
        m = y.mean((1, 2), keepdims=True)
        v = ((y - m) ** 2).mean((1, 2), keepdims=True)
        y = p['blk_g2'][i, 0] * (y - m) / jnp.sqrt(v + EPS) + p['blk_be2'][i, 0]
        cur = cur + jnp.einsum('bkh,ch->bkc', y, p['blk_w3'][i]) + p['blk_b3'][i, 0]
    msk = jnp.maximum(jnp.einsum('bkc,nc->bkn', cur, p['w2']) + p['b2'][0], 0.0)
    outs = []
    for s in range(NUM_SPK):
        masked = enc * msk[:, :, s * AE_CH:(s + 1) * AE_CH]
        fr = jnp.einsum('bkn,nl->bkl', masked, p['wdec'])
        zrow = jnp.zeros((bsz, 1, AE_STRIDE), jnp.float32)
        seg = (jnp.concatenate([fr[:, :, :AE_STRIDE], zrow], axis=1)
               + jnp.concatenate([zrow, fr[:, :, AE_STRIDE:]], axis=1))
        outs.append(seg.reshape(bsz, -1) + p['bdec'][0])
    return jnp.stack(outs, axis=1)[:, :, :length]


# ----------------------------- main -----------------------------

if __name__ == "__main__":
    key = jax.random.PRNGKey(0)
    pkey, xkey = jax.random.split(key)
    params = init_params(pkey)
    sample = jax.random.normal(xkey, (BATCH, 1, T_IN), jnp.float32)
    length = T_IN

    out = tasnet_forward(sample, length, params)
    out = jax.block_until_ready(out)

    ref = tasnet_reference(sample, length, params)
    assert out.shape == (BATCH, NUM_SPK, T_IN), out.shape
    assert bool(jnp.all(jnp.isfinite(out)))
    assert bool(jnp.allclose(out, ref, rtol=1e-3, atol=1e-3))
    print("KERNEL_OK")
</pallas_src>

<mosaic_0001>
module attributes {stable_mosaic.version = 11 : i64} {
  func.func @_tasnet_fused_kernel(%arg0: i32, %arg1: memref<9xf32, #tpu.memory_space<smem>>, %arg2: memref<1x8x8xf32, #tpu.memory_space<vmem>>, %arg3: memref<16x32xf32, #tpu.memory_space<vmem>>, %arg4: memref<1x32xf32, #tpu.memory_space<vmem>>, %arg5: memref<1x32xf32, #tpu.memory_space<vmem>>, %arg6: memref<1x32xf32, #tpu.memory_space<vmem>>, %arg7: memref<32x16xf32, #tpu.memory_space<vmem>>, %arg8: memref<1x16xf32, #tpu.memory_space<vmem>>, %arg9: memref<4x16x32xf32, #tpu.memory_space<vmem>>, %arg10: memref<4x1x32xf32, #tpu.memory_space<vmem>>, %arg11: memref<4x1x32xf32, #tpu.memory_space<vmem>>, %arg12: memref<4x1x32xf32, #tpu.memory_space<vmem>>, %arg13: memref<4x3x32xf32, #tpu.memory_space<vmem>>, %arg14: memref<4x1x32xf32, #tpu.memory_space<vmem>>, %arg15: memref<4x1x32xf32, #tpu.memory_space<vmem>>, %arg16: memref<4x1x32xf32, #tpu.memory_space<vmem>>, %arg17: memref<4x32x16xf32, #tpu.memory_space<vmem>>, %arg18: memref<4x1x16xf32, #tpu.memory_space<vmem>>, %arg19: memref<16x64xf32, #tpu.memory_space<vmem>>, %arg20: memref<1x64xf32, #tpu.memory_space<vmem>>, %arg21: memref<32x16xf32, #tpu.memory_space<vmem>>, %arg22: memref<1x1x128xf32, #tpu.memory_space<vmem>>, %arg23: memref<11x32xf32, #tpu.memory_space<vmem>>) attributes {dimension_semantics = [#tpu.dimension_semantics<parallel>], iteration_bounds = array<i64: 2>, scalar_prefetch = 0 : i64, scratch_operands = 1 : i64, tpu.core_type = #tpu.core_type<tc>, window_params = [{transform_indices = @transform_0, window_bounds = array<i64: 9>}, {transform_indices = @transform_1, window_bounds = array<i64: 1, 8, 8>}, {pipeline_mode = #tpu.pipeline_mode<synchronous>, transform_indices = @transform_2, window_bounds = array<i64: 16, 32>}, {pipeline_mode = #tpu.pipeline_mode<synchronous>, transform_indices = @transform_3, window_bounds = array<i64: 1, 32>}, {pipeline_mode = #tpu.pipeline_mode<synchronous>, transform_indices = @transform_4, window_bounds = array<i64: 1, 32>}, {pipeline_mode = #tpu.pipeline_mode<synchronous>, transform_indices = @transform_5, window_bounds = array<i64: 1, 32>}, {pipeline_mode = #tpu.pipeline_mode<synchronous>, transform_indices = @transform_6, window_bounds = array<i64: 32, 16>}, {pipeline_mode = #tpu.pipeline_mode<synchronous>, transform_indices = @transform_7, window_bounds = array<i64: 1, 16>}, {pipeline_mode = #tpu.pipeline_mode<synchronous>, transform_indices = @transform_8, window_bounds = array<i64: 4, 16, 32>}, {pipeline_mode = #tpu.pipeline_mode<synchronous>, transform_indices = @transform_9, window_bounds = array<i64: 4, 1, 32>}, {pipeline_mode = #tpu.pipeline_mode<synchronous>, transform_indices = @transform_10, window_bounds = array<i64: 4, 1, 32>}, {pipeline_mode = #tpu.pipeline_mode<synchronous>, transform_indices = @transform_11, window_bounds = array<i64: 4, 1, 32>}, {pipeline_mode = #tpu.pipeline_mode<synchronous>, transform_indices = @transform_12, window_bounds = array<i64: 4, 3, 32>}, {pipeline_mode = #tpu.pipeline_mode<synchronous>, transform_indices = @transform_13, window_bounds = array<i64: 4, 1, 32>}, {pipeline_mode = #tpu.pipeline_mode<synchronous>, transform_indices = @transform_14, window_bounds = array<i64: 4, 1, 32>}, {pipeline_mode = #tpu.pipeline_mode<synchronous>, transform_indices = @transform_15, window_bounds = array<i64: 4, 1, 32>}, {pipeline_mode = #tpu.pipeline_mode<synchronous>, transform_indices = @transform_16, window_bounds = array<i64: 4, 32, 16>}, {pipeline_mode = #tpu.pipeline_mode<synchronous>, transform_indices = @transform_17, window_bounds = array<i64: 4, 1, 16>}, {pipeline_mode = #tpu.pipeline_mode<synchronous>, transform_indices = @transform_18, window_bounds = array<i64: 16, 64>}, {pipeline_mode = #tpu.pipeline_mode<synchronous>, transform_indices = @transform_19, window_bounds = array<i64: 1, 64>}, {pipeline_mode = #tpu.pipeline_mode<synchronous>, transform_indices = @transform_20, window_bounds = array<i64: 32, 16>}, {transform_indices = @transform_21, window_bounds = array<i64: 1, 1, 128>}]} {
    %c0 = arith.constant 0 : index
    %c0_0 = arith.constant 0 : index
    %c0_1 = arith.constant 0 : index
    %0 = vector.load %arg2[%c0, %c0_0, %c0_1] : memref<1x8x8xf32, #tpu.memory_space<vmem>>, vector<1x8x8xf32>
    %1 = vector.shape_cast %0 : vector<1x8x8xf32> to vector<8x8xf32>
    %c0_2 = arith.constant 0 : index
    %c0_3 = arith.constant 0 : index
    %2 = vector.load %arg3[%c0_2, %c0_3] : memref<16x32xf32, #tpu.memory_space<vmem>>, vector<16x32xf32>
    %3 = vector.extract_strided_slice %1 {offsets = [0, 0], sizes = [7, 8], strides = [1, 1]} : vector<8x8xf32> to vector<7x8xf32>
    %4 = vector.extract_strided_slice %2 {offsets = [0, 0], sizes = [8, 32], strides = [1, 1]} : vector<16x32xf32> to vector<8x32xf32>
    %cst = arith.constant dense<0.000000e+00> : vector<7x32xf32>
    %5 = tpu.matmul %3, %4, %cst {dimension_numbers = #tpu.dot_dimension_numbers<[1], [0], [0], [1], [0, 0, 1, 1], [], []>} : vector<7x8xf32>, vector<8x32xf32>, vector<7x32xf32> -> vector<7x32xf32>
    %6 = vector.extract_strided_slice %1 {offsets = [1, 0], sizes = [7, 8], strides = [1, 1]} : vector<8x8xf32> to vector<7x8xf32>
    %7 = vector.extract_strided_slice %2 {offsets = [8, 0], sizes = [8, 32], strides = [1, 1]} : vector<16x32xf32> to vector<8x32xf32>
    %cst_4 = arith.constant dense<0.000000e+00> : vector<7x32xf32>
    %8 = tpu.matmul %6, %7, %cst_4 {dimension_numbers = #tpu.dot_dimension_numbers<[1], [0], [0], [1], [0, 0, 1, 1], [], []>} : vector<7x8xf32>, vector<8x32xf32>, vector<7x32xf32> -> vector<7x32xf32>
    %9 = arith.addf %5, %8 : vector<7x32xf32>
    %c0_5 = arith.constant 0 : index
    %c0_6 = arith.constant 0 : index
    %10 = vector.load %arg4[%c0_5, %c0_6] : memref<1x32xf32, #tpu.memory_space<vmem>>, vector<1x32xf32>
    %11 = vector.broadcast %10 : vector<1x32xf32> to vector<7x32xf32>
    %12 = arith.addf %9, %11 : vector<7x32xf32>
    %cst_7 = arith.constant 0.000000e+00 : f32
    %13 = vector.broadcast %cst_7 : f32 to vector<7x32xf32>
    %14 = arith.maximumf %12, %13 : vector<7x32xf32>
    %cst_8 = arith.constant dense<0.000000e+00> : vector<7xf32>
    %15 = vector.multi_reduction <add>, %14, %cst_8 [1] : vector<7x32xf32> to vector<7xf32>
    %16 = vector.shape_cast %15 : vector<7xf32> to vector<7x1xf32>
    %cst_9 = arith.constant 3.125000e-02 : f32
    %17 = vector.broadcast %cst_9 : f32 to vector<7x1xf32>
    %18 = arith.mulf %16, %17 : vector<7x1xf32>
    %19 = arith.mulf %14, %14 : vector<7x32xf32>
    %cst_10 = arith.constant dense<0.000000e+00> : vector<7xf32>
    %20 = vector.multi_reduction <add>, %19, %cst_10 [1] : vector<7x32xf32> to vector<7xf32>
    %21 = vector.shape_cast %20 : vector<7xf32> to vector<7x1xf32>
    %cst_11 = arith.constant 3.125000e-02 : f32
    %22 = vector.broadcast %cst_11 : f32 to vector<7x1xf32>
    %23 = arith.mulf %21, %22 : vector<7x1xf32>
    %24 = arith.mulf %18, %18 : vector<7x1xf32>
    %25 = arith.subf %23, %24 : vector<7x1xf32>
    %cst_12 = arith.constant 0.000000e+00 : f32
    %26 = vector.broadcast %cst_12 : f32 to vector<7x1xf32>
    %27 = arith.maximumf %25, %26 : vector<7x1xf32>
    %c0_13 = arith.constant 0 : index
    %c0_14 = arith.constant 0 : index
    %28 = vector.load %arg5[%c0_13, %c0_14] : memref<1x32xf32, #tpu.memory_space<vmem>>, vector<1x32xf32>
    %29 = vector.broadcast %18 : vector<7x1xf32> to vector<7x32xf32>
    %30 = arith.subf %14, %29 : vector<7x32xf32>
    %31 = vector.broadcast %28 : vector<1x32xf32> to vector<7x32xf32>
    %32 = arith.mulf %31, %30 : vector<7x32xf32>
    %cst_15 = arith.constant 9.99999993E-9 : f32
    %33 = vector.broadcast %cst_15 : f32 to vector<7x1xf32>
    %34 = arith.addf %27, %33 : vector<7x1xf32>
    %35 = math.rsqrt %34 : vector<7x1xf32>
    %36 = vector.broadcast %35 : vector<7x1xf32> to vector<7x32xf32>
    %37 = arith.mulf %32, %36 : vector<7x32xf32>
    %c0_16 = arith.constant 0 : index
    %c0_17 = arith.constant 0 : index
    %38 = vector.load %arg6[%c0_16, %c0_17] : memref<1x32xf32, #tpu.memory_space<vmem>>, vector<1x32xf32>
    %39 = vector.broadcast %38 : vector<1x32xf32> to vector<7x32xf32>
    %40 = arith.addf %37, %39 : vector<7x32xf32>
    %c0_18 = arith.constant 0 : index
    %c0_19 = arith.constant 0 : index
    %41 = vector.load %arg7[%c0_18, %c0_19] : memref<32x16xf32, #tpu.memory_space<vmem>>, vector<32x16xf32>
    %cst_20 = arith.constant dense<0.000000e+00> : vector<7x16xf32>
    %42 = tpu.matmul %40, %41, %cst_20 {dimension_numbers = #tpu.dot_dimension_numbers<[1], [0], [0], [1], [0, 0, 1, 1], [], []>} : vector<7x32xf32>, vector<32x16xf32>, vector<7x16xf32> -> vector<7x16xf32>
    %c0_21 = arith.constant 0 : index
    %c0_22 = arith.constant 0 : index
    %43 = vector.load %arg8[%c0_21, %c0_22] : memref<1x16xf32, #tpu.memory_space<vmem>>, vector<1x16xf32>
    %44 = vector.broadcast %43 : vector<1x16xf32> to vector<7x16xf32>
    %45 = arith.addf %42, %44 : vector<7x16xf32>
    %cst_23 = arith.constant 0.000000e+00 : f32
    %46 = vector.broadcast %cst_23 : f32 to vector<11x32xf32>
    %c0_24 = arith.constant 0 : index
    %c0_25 = arith.constant 0 : index
    %47 = vector.load %arg23[%c0_24, %c0_25] : memref<11x32xf32, #tpu.memory_space<vmem>>, vector<11x32xf32>
    tpu.vector_store %arg23[%c0_24, %c0_25], %46 {strides = array<i32>} : memref<11x32xf32, #tpu.memory_space<vmem>>, vector<11x32xf32>,
    %c0_26 = arith.constant 0 : index
    %48 = memref.load %arg1[%c0_26] : memref<9xf32, #tpu.memory_space<smem>>
    %c1 = arith.constant 1 : index
    %49 = memref.load %arg1[%c1] : memref<9xf32, #tpu.memory_space<smem>>
    %c0_27 = arith.constant 0 : index
    %c0_28 = arith.constant 0 : index
    %c0_29 = arith.constant 0 : index
    %50 = vector.load %arg9[%c0_27, %c0_28, %c0_29] : memref<4x16x32xf32, #tpu.memory_space<vmem>>, vector<1x16x32xf32>
    %51 = vector.shape_cast %50 : vector<1x16x32xf32> to vector<16x32xf32>
    %cst_30 = arith.constant dense<0.000000e+00> : vector<7x32xf32>
    %52 = tpu.matmul %45, %51, %cst_30 {dimension_numbers = #tpu.dot_dimension_numbers<[1], [0], [0], [1], [0, 0, 1, 1], [], []>} : vector<7x16xf32>, vector<16x32xf32>, vector<7x32xf32> -> vector<7x32xf32>
    %c0_31 = arith.constant 0 : index
    %c0_32 = arith.constant 0 : index
    %c0_33 = arith.constant 0 : index
    %53 = vector.load %arg10[%c0_31, %c0_32, %c0_33] : memref<4x1x32xf32, #tpu.memory_space<vmem>>, vector<1x1x32xf32>
    %54 = vector.shape_cast %53 : vector<1x1x32xf32> to vector<1x32xf32>
    %55 = vector.broadcast %54 : vector<1x32xf32> to vector<7x32xf32>
    %56 = arith.addf %52, %55 : vector<7x32xf32>
    %cst_34 = arith.constant 0.000000e+00 : f32
    %57 = vector.broadcast %cst_34 : f32 to vector<7x32xf32>
    %58 = arith.cmpf oge, %56, %57 : vector<7x32xf32>
    %59 = vector.broadcast %48 : f32 to vector<7x32xf32>
    %60 = arith.mulf %59, %56 : vector<7x32xf32>
    %61 = arith.select %58, %56, %60 : vector<7x32xi1>, vector<7x32xf32>
    %c0_35 = arith.constant 0 : index
    %c0_36 = arith.constant 0 : index
    %c0_37 = arith.constant 0 : index
    %62 = vector.load %arg11[%c0_35, %c0_36, %c0_37] : memref<4x1x32xf32, #tpu.memory_space<vmem>>, vector<1x1x32xf32>
    %63 = vector.shape_cast %62 : vector<1x1x32xf32> to vector<1x32xf32>
    %c0_38 = arith.constant 0 : index
    %c0_39 = arith.constant 0 : index
    %c0_40 = arith.constant 0 : index
    %64 = vector.load %arg12[%c0_38, %c0_39, %c0_40] : memref<4x1x32xf32, #tpu.memory_space<vmem>>, vector<1x1x32xf32>
    %65 = vector.shape_cast %64 : vector<1x1x32xf32> to vector<1x32xf32>
    %cst_41 = arith.constant dense<0.000000e+00> : vector<7xf32>
    %66 = vector.multi_reduction <add>, %61, %cst_41 [1] : vector<7x32xf32> to vector<7xf32>
    %67 = vector.shape_cast %66 : vector<7xf32> to vector<7x1xf32>
    %cst_42 = arith.constant dense<0.000000e+00> : vector<1xf32>
    %68 = vector.multi_reduction <add>, %67, %cst_42 [0] : vector<7x1xf32> to vector<1xf32>
    %69 = vector.shape_cast %68 : vector<1xf32> to vector<1x1xf32>
    %cst_43 = arith.constant 0.00446428591 : f32
    %70 = vector.broadcast %cst_43 : f32 to vector<1x1xf32>
    %71 = arith.mulf %69, %70 : vector<1x1xf32>
    %72 = arith.mulf %61, %61 : vector<7x32xf32>
    %cst_44 = arith.constant dense<0.000000e+00> : vector<7xf32>
    %73 = vector.multi_reduction <add>, %72, %cst_44 [1] : vector<7x32xf32> to vector<7xf32>
    %74 = vector.shape_cast %73 : vector<7xf32> to vector<7x1xf32>
    %cst_45 = arith.constant dense<0.000000e+00> : vector<1xf32>
    %75 = vector.multi_reduction <add>, %74, %cst_45 [0] : vector<7x1xf32> to vector<1xf32>
    %76 = vector.shape_cast %75 : vector<1xf32> to vector<1x1xf32>
    %cst_46 = arith.constant 0.00446428591 : f32
    %77 = vector.broadcast %cst_46 : f32 to vector<1x1xf32>
    %78 = arith.mulf %76, %77 : vector<1x1xf32>
    %79 = arith.mulf %71, %71 : vector<1x1xf32>
    %80 = arith.subf %78, %79 : vector<1x1xf32>
    %cst_47 = arith.constant 0.000000e+00 : f32
    %81 = vector.broadcast %cst_47 : f32 to vector<1x1xf32>
    %82 = arith.maximumf %80, %81 : vector<1x1xf32>
    %83 = vector.broadcast %71 : vector<1x1xf32> to vector<7x32xf32>
    %84 = arith.subf %61, %83 : vector<7x32xf32>
    %85 = vector.broadcast %63 : vector<1x32xf32> to vector<7x32xf32>
    %86 = arith.mulf %85, %84 : vector<7x32xf32>
    %cst_48 = arith.constant 9.99999993E-9 : f32
    %87 = vector.broadcast %cst_48 : f32 to vector<1x1xf32>
    %88 = arith.addf %82, %87 : vector<1x1xf32>
    %89 = math.rsqrt %88 : vector<1x1xf32>
    %90 = vector.broadcast %89 : vector<1x1xf32> to vector<7x32xf32>
    %91 = arith.mulf %86, %90 : vector<7x32xf32>
    %92 = vector.broadcast %65 : vector<1x32xf32> to vector<7x32xf32>
    %93 = arith.addf %91, %92 : vector<7x32xf32>
    %c2 = arith.constant 2 : index
    %c0_49 = arith.constant 0 : index
    %94 = vector.load %arg23[%c2, %c0_49] : memref<11x32xf32, #tpu.memory_space<vmem>>, vector<7x32xf32>
    tpu.vector_store %arg23[%c2, %c0_49], %93 {strides = array<i32>} : memref<11x32xf32, #tpu.memory_space<vmem>>, vector<7x32xf32>,
    %c0_50 = arith.constant 0 : index
    %c0_51 = arith.constant 0 : index
    %c0_52 = arith.constant 0 : index
    %95 = vector.load %arg13[%c0_50, %c0_51, %c0_52] : memref<4x3x32xf32, #tpu.memory_space<vmem>>, vector<1x3x32xf32>
    %96 = vector.shape_cast %95 : vector<1x3x32xf32> to vector<3x32xf32>
    %c0_53 = arith.constant 0 : index
    %c0_54 = arith.constant 0 : index
    %c0_55 = arith.constant 0 : index
    %97 = vector.load %arg14[%c0_53, %c0_54, %c0_55] : memref<4x1x32xf32, #tpu.memory_space<vmem>>, vector<1x1x32xf32>
    %98 = vector.shape_cast %97 : vector<1x1x32xf32> to vector<1x32xf32>
    %c1_56 = arith.constant 1 : index
    %c0_57 = arith.constant 0 : index
    %99 = vector.load %arg23[%c1_56, %c0_57] : memref<11x32xf32, #tpu.memory_space<vmem>>, vector<7x32xf32>
    %100 = vector.extract_strided_slice %96 {offsets = [0, 0], sizes = [1, 32], strides = [1, 1]} : vector<3x32xf32> to vector<1x32xf32>
    %101 = vector.broadcast %100 : vector<1x32xf32> to vector<7x32xf32>
    %102 = arith.mulf %99, %101 : vector<7x32xf32>
    %103 = vector.broadcast %98 : vector<1x32xf32> to vector<7x32xf32>
    %104 = arith.addf %103, %102 : vector<7x32xf32>
    %c2_58 = arith.constant 2 : index
    %c0_59 = arith.constant 0 : index
    %105 = vector.load %arg23[%c2_58, %c0_59] : memref<11x32xf32, #tpu.memory_space<vmem>>, vector<7x32xf32>
    %106 = vector.extract_strided_slice %96 {offsets = [1, 0], sizes = [1, 32], strides = [1, 1]} : vector<3x32xf32> to vector<1x32xf32>
    %107 = vector.broadcast %106 : vector<1x32xf32> to vector<7x32xf32>
    %108 = arith.mulf %105, %107 : vector<7x32xf32>
    %109 = arith.addf %104, %108 : vector<7x32xf32>
    %c3 = arith.constant 3 : index
    %c0_60 = arith.constant 0 : index
    %110 = vector.load %arg23[%c3, %c0_60] : memref<11x32xf32, #tpu.memory_space<vmem>>, vector<7x32xf32>
    %111 = vector.extract_strided_slice %96 {offsets = [2, 0], sizes = [1, 32], strides = [1, 1]} : vector<3x32xf32> to vector<1x32xf32>
    %112 = vector.broadcast %111 : vector<1x32xf32> to vector<7x32xf32>
    %113 = arith.mulf %110, %112 : vector<7x32xf32>
    %114 = arith.addf %109, %113 : vector<7x32xf32>
    %cst_61 = arith.constant 0.000000e+00 : f32
    %115 = vector.broadcast %cst_61 : f32 to vector<7x32xf32>
    %116 = arith.cmpf oge, %114, %115 : vector<7x32xf32>
    %117 = vector.broadcast %49 : f32 to vector<7x32xf32>
    %118 = arith.mulf %117, %114 : vector<7x32xf32>
    %119 = arith.select %116, %114, %118 : vector<7x32xi1>, vector<7x32xf32>
    %c0_62 = arith.constant 0 : index
    %c0_63 = arith.constant 0 : index
    %c0_64 = arith.constant 0 : index
    %120 = vector.load %arg15[%c0_62, %c0_63, %c0_64] : memref<4x1x32xf32, #tpu.memory_space<vmem>>, vector<1x1x32xf32>
    %121 = vector.shape_cast %120 : vector<1x1x32xf32> to vector<1x32xf32>
    %c0_65 = arith.constant 0 : index
    %c0_66 = arith.constant 0 : index
    %c0_67 = arith.constant 0 : index
    %122 = vector.load %arg16[%c0_65, %c0_66, %c0_67] : memref<4x1x32xf32, #tpu.memory_space<vmem>>, vector<1x1x32xf32>
    %123 = vector.shape_cast %122 : vector<1x1x32xf32> to vector<1x32xf32>
    %cst_68 = arith.constant dense<0.000000e+00> : vector<7xf32>
    %124 = vector.multi_reduction <add>, %119, %cst_68 [1] : vector<7x32xf32> to vector<7xf32>
    %125 = vector.shape_cast %124 : vector<7xf32> to vector<7x1xf32>
    %cst_69 = arith.constant dense<0.000000e+00> : vector<1xf32>
    %126 = vector.multi_reduction <add>, %125, %cst_69 [0] : vector<7x1xf32> to vector<1xf32>
    %127 = vector.shape_cast %126 : vector<1xf32> to vector<1x1xf32>
    %cst_70 = arith.constant 0.00446428591 : f32
    %128 = vector.broadcast %cst_70 : f32 to vector<1x1xf32>
    %129 = arith.mulf %127, %128 : vector<1x1xf32>
    %130 = arith.mulf %119, %119 : vector<7x32xf32>
    %cst_71 = arith.constant dense<0.000000e+00> : vector<7xf32>
    %131 = vector.multi_reduction <add>, %130, %cst_71 [1] : vector<7x32xf32> to vector<7xf32>
    %132 = vector.shape_cast %131 : vector<7xf32> to vector<7x1xf32>
    %cst_72 = arith.constant dense<0.000000e+00> : vector<1xf32>
    %133 = vector.multi_reduction <add>, %132, %cst_72 [0] : vector<7x1xf32> to vector<1xf32>
    %134 = vector.shape_cast %133 : vector<1xf32> to vector<1x1xf32>
    %cst_73 = arith.constant 0.00446428591 : f32
    %135 = vector.broadcast %cst_73 : f32 to vector<1x1xf32>
    %136 = arith.mulf %134, %135 : vector<1x1xf32>
    %137 = arith.mulf %129, %129 : vector<1x1xf32>
    %138 = arith.subf %136, %137 : vector<1x1xf32>
    %cst_74 = arith.constant 0.000000e+00 : f32
    %139 = vector.broadcast %cst_74 : f32 to vector<1x1xf32>
    %140 = arith.maximumf %138, %139 : vector<1x1xf32>
    %141 = vector.broadcast %129 : vector<1x1xf32> to vector<7x32xf32>
    %142 = arith.subf %119, %141 : vector<7x32xf32>
    %143 = vector.broadcast %121 : vector<1x32xf32> to vector<7x32xf32>
    %144 = arith.mulf %143, %142 : vector<7x32xf32>
    %cst_75 = arith.constant 9.99999993E-9 : f32
    %145 = vector.broadcast %cst_75 : f32 to vector<1x1xf32>
    %146 = arith.addf %140, %145 : vector<1x1xf32>
    %147 = math.rsqrt %146 : vector<1x1xf32>
    %148 = vector.broadcast %147 : vector<1x1xf32> to vector<7x32xf32>
    %149 = arith.mulf %144, %148 : vector<7x32xf32>
    %150 = vector.broadcast %123 : vector<1x32xf32> to vector<7x32xf32>
    %151 = arith.addf %149, %150 : vector<7x32xf32>
    %c0_76 = arith.constant 0 : index
    %c0_77 = arith.constant 0 : index
    %c0_78 = arith.constant 0 : index
    %152 = vector.load %arg17[%c0_76, %c0_77, %c0_78] : memref<4x32x16xf32, #tpu.memory_space<vmem>>, vector<1x32x16xf32>
    %153 = vector.shape_cast %152 : vector<1x32x16xf32> to vector<32x16xf32>
    %cst_79 = arith.constant dense<0.000000e+00> : vector<7x16xf32>
    %154 = tpu.matmul %151, %153, %cst_79 {dimension_numbers = #tpu.dot_dimension_numbers<[1], [0], [0], [1], [0, 0, 1, 1], [], []>} : vector<7x32xf32>, vector<32x16xf32>, vector<7x16xf32> -> vector<7x16xf32>
    %155 = arith.addf %45, %154 : vector<7x16xf32>
    %c0_80 = arith.constant 0 : index
    %c0_81 = arith.constant 0 : index
    %c0_82 = arith.constant 0 : index
    %156 = vector.load %arg18[%c0_80, %c0_81, %c0_82] : memref<4x1x16xf32, #tpu.memory_space<vmem>>, vector<1x1x16xf32>
    %157 = vector.shape_cast %156 : vector<1x1x16xf32> to vector<1x16xf32>
    %158 = vector.broadcast %157 : vector<1x16xf32> to vector<7x16xf32>
    %159 = arith.addf %155, %158 : vector<7x16xf32>
    %c2_83 = arith.constant 2 : index
    %160 = memref.load %arg1[%c2_83] : memref<9xf32, #tpu.memory_space<smem>>
    %c3_84 = arith.constant 3 : index
    %161 = memref.load %arg1[%c3_84] : memref<9xf32, #tpu.memory_space<smem>>
    %c1_85 = arith.constant 1 : index
    %c0_86 = arith.constant 0 : index
    %c0_87 = arith.constant 0 : index
    %162 = vector.load %arg9[%c1_85, %c0_86, %c0_87] : memref<4x16x32xf32, #tpu.memory_space<vmem>>, vector<1x16x32xf32>
    %163 = vector.shape_cast %162 : vector<1x16x32xf32> to vector<16x32xf32>
    %cst_88 = arith.constant dense<0.000000e+00> : vector<7x32xf32>
    %164 = tpu.matmul %159, %163, %cst_88 {dimension_numbers = #tpu.dot_dimension_numbers<[1], [0], [0], [1], [0, 0, 1, 1], [], []>} : vector<7x16xf32>, vector<16x32xf32>, vector<7x32xf32> -> vector<7x32xf32>
    %c1_89 = arith.constant 1 : index
    %c0_90 = arith.constant 0 : index
    %c0_91 = arith.constant 0 : index
    %165 = vector.load %arg10[%c1_89, %c0_90, %c0_91] : memref<4x1x32xf32, #tpu.memory_space<vmem>>, vector<1x1x32xf32>
    %166 = vector.shape_cast %165 : vector<1x1x32xf32> to vector<1x32xf32>
    %167 = vector.broadcast %166 : vector<1x32xf32> to vector<7x32xf32>
    %168 = arith.addf %164, %167 : vector<7x32xf32>
    %cst_92 = arith.constant 0.000000e+00 : f32
    %169 = vector.broadcast %cst_92 : f32 to vector<7x32xf32>
    %170 = arith.cmpf oge, %168, %169 : vector<7x32xf32>
    %171 = vector.broadcast %160 : f32 to vector<7x32xf32>
    %172 = arith.mulf %171, %168 : vector<7x32xf32>
    %173 = arith.select %170, %168, %172 : vector<7x32xi1>, vector<7x32xf32>
    %c1_93 = arith.constant 1 : index
    %c0_94 = arith.constant 0 : index
    %c0_95 = arith.constant 0 : index
    %174 = vector.load %arg11[%c1_93, %c0_94, %c0_95] : memref<4x1x32xf32, #tpu.memory_space<vmem>>, vector<1x1x32xf32>
    %175 = vector.shape_cast %174 : vector<1x1x32xf32> to vector<1x32xf32>
    %c1_96 = arith.constant 1 : index
    %c0_97 = arith.constant 0 : index
    %c0_98 = arith.constant 0 : index
    %176 = vector.load %arg12[%c1_96, %c0_97, %c0_98] : memref<4x1x32xf32, #tpu.memory_space<vmem>>, vector<1x1x32xf32>
    %177 = vector.shape_cast %176 : vector<1x1x32xf32> to vector<1x32xf32>
    %cst_99 = arith.constant dense<0.000000e+00> : vector<7xf32>
    %178 = vector.multi_reduction <add>, %173, %cst_99 [1] : vector<7x32xf32> to vector<7xf32>
    %179 = vector.shape_cast %178 : vector<7xf32> to vector<7x1xf32>
    %cst_100 = arith.constant dense<0.000000e+00> : vector<1xf32>
    %180 = vector.multi_reduction <add>, %179, %cst_100 [0] : vector<7x1xf32> to vector<1xf32>
    %181 = vector.shape_cast %180 : vector<1xf32> to vector<1x1xf32>
    %cst_101 = arith.constant 0.00446428591 : f32
    %182 = vector.broadcast %cst_101 : f32 to vector<1x1xf32>
    %183 = arith.mulf %181, %182 : vector<1x1xf32>
    %184 = arith.mulf %173, %173 : vector<7x32xf32>
    %cst_102 = arith.constant dense<0.000000e+00> : vector<7xf32>
    %185 = vector.multi_reduction <add>, %184, %cst_102 [1] : vector<7x32xf32> to vector<7xf32>
    %186 = vector.shape_cast %185 : vector<7xf32> to vector<7x1xf32>
    %cst_103 = arith.constant dense<0.000000e+00> : vector<1xf32>
    %187 = vector.multi_reduction <add>, %186, %cst_103 [0] : vector<7x1xf32> to vector<1xf32>
    %188 = vector.shape_cast %187 : vector<1xf32> to vector<1x1xf32>
    %cst_104 = arith.constant 0.00446428591 : f32
    %189 = vector.broadcast %cst_104 : f32 to vector<1x1xf32>
    %190 = arith.mulf %188, %189 : vector<1x1xf32>
    %191 = arith.mulf %183, %183 : vector<1x1xf32>
    %192 = arith.subf %190, %191 : vector<1x1xf32>
    %cst_105 = arith.constant 0.000000e+00 : f32
    %193 = vector.broadcast %cst_105 : f32 to vector<1x1xf32>
    %194 = arith.maximumf %192, %193 : vector<1x1xf32>
    %195 = vector.broadcast %183 : vector<1x1xf32> to vector<7x32xf32>
    %196 = arith.subf %173, %195 : vector<7x32xf32>
    %197 = vector.broadcast %175 : vector<1x32xf32> to vector<7x32xf32>
    %198 = arith.mulf %197, %196 : vector<7x32xf32>
    %cst_106 = arith.constant 9.99999993E-9 : f32
    %199 = vector.broadcast %cst_106 : f32 to vector<1x1xf32>
    %200 = arith.addf %194, %199 : vector<1x1xf32>
    %201 = math.rsqrt %200 : vector<1x1xf32>
    %202 = vector.broadcast %201 : vector<1x1xf32> to vector<7x32xf32>
    %203 = arith.mulf %198, %202 : vector<7x32xf32>
    %204 = vector.broadcast %177 : vector<1x32xf32> to vector<7x32xf32>
    %205 = arith.addf %203, %204 : vector<7x32xf32>
    %c2_107 = arith.constant 2 : index
    %c0_108 = arith.constant 0 : index
    %206 = vector.load %arg23[%c2_107, %c0_108] : memref<11x32xf32, #tpu.memory_space<vmem>>, vector<7x32xf32>
    tpu.vector_store %arg23[%c2_107, %c0_108], %205 {strides = array<i32>} : memref<11x32xf32, #tpu.memory_space<vmem>>, vector<7x32xf32>,
    %c1_109 = arith.constant 1 : index
    %c0_110 = arith.constant 0 : index
    %c0_111 = arith.constant 0 : index
    %207 = vector.load %arg13[%c1_109, %c0_110, %c0_111] : memref<4x3x32xf32, #tpu.memory_space<vmem>>, vector<1x3x32xf32>
    %208 = vector.shape_cast %207 : vector<1x3x32xf32> to vector<3x32xf32>
    %c1_112 = arith.constant 1 : index
    %c0_113 = arith.constant 0 : index
    %c0_114 = arith.constant 0 : index
    %209 = vector.load %arg14[%c1_112, %c0_113, %c0_114] : memref<4x1x32xf32, #tpu.memory_space<vmem>>, vector<1x1x32xf32>
    %210 = vector.shape_cast %209 : vector<1x1x32xf32> to vector<1x32xf32>
    %c0_115 = arith.constant 0 : index
    %c0_116 = arith.constant 0 : index
    %211 = vector.load %arg23[%c0_115, %c0_116] : memref<11x32xf32, #tpu.memory_space<vmem>>, vector<7x32xf32>
    %212 = vector.extract_strided_slice %208 {offsets = [0, 0], sizes = [1, 32], strides = [1, 1]} : vector<3x32xf32> to vector<1x32xf32>
    %213 = vector.broadcast %212 : vector<1x32xf32> to vector<7x32xf32>
    %214 = arith.mulf %211, %213 : vector<7x32xf32>
    %215 = vector.broadcast %210 : vector<1x32xf32> to vector<7x32xf32>
    %216 = arith.addf %215, %214 : vector<7x32xf32>
    %c2_117 = arith.constant 2 : index
    %c0_118 = arith.constant 0 : index
    %217 = vector.load %arg23[%c2_117, %c0_118] : memref<11x32xf32, #tpu.memory_space<vmem>>, vector<7x32xf32>
    %218 = vector.extract_strided_slice %208 {offsets = [1, 0], sizes = [1, 32], strides = [1, 1]} : vector<3x32xf32> to vector<1x32xf32>
    %219 = vector.broadcast %218 : vector<1x32xf32> to vector<7x32xf32>
    %220 = arith.mulf %217, %219 : vector<7x32xf32>
    %221 = arith.addf %216, %220 : vector<7x32xf32>
    %c4 = arith.constant 4 : index
    %c0_119 = arith.constant 0 : index
    %222 = vector.load %arg23[%c4, %c0_119] : memref<11x32xf32, #tpu.memory_space<vmem>>, vector<7x32xf32>
    %223 = vector.extract_strided_slice %208 {offsets = [2, 0], sizes = [1, 32], strides = [1, 1]} : vector<3x32xf32> to vector<1x32xf32>
    %224 = vector.broadcast %223 : vector<1x32xf32> to vector<7x32xf32>
    %225 = arith.mulf %222, %224 : vector<7x32xf32>
    %226 = arith.addf %221, %225 : vector<7x32xf32>
    %cst_120 = arith.constant 0.000000e+00 : f32
    %227 = vector.broadcast %cst_120 : f32 to vector<7x32xf32>
    %228 = arith.cmpf oge, %226, %227 : vector<7x32xf32>
    %229 = vector.broadcast %161 : f32 to vector<7x32xf32>
    %230 = arith.mulf %229, %226 : vector<7x32xf32>
    %231 = arith.select %228, %226, %230 : vector<7x32xi1>, vector<7x32xf32>
    %c1_121 = arith.constant 1 : index
    %c0_122 = arith.constant 0 : index
    %c0_123 = arith.constant 0 : index
    %232 = vector.load %arg15[%c1_121, %c0_122, %c0_123] : memref<4x1x32xf32, #tpu.memory_space<vmem>>, vector<1x1x32xf32>
    %233 = vector.shape_cast %232 : vector<1x1x32xf32> to vector<1x32xf32>
    %c1_124 = arith.constant 1 : index
    %c0_125 = arith.constant 0 : index
    %c0_126 = arith.constant 0 : index
    %234 = vector.load %arg16[%c1_124, %c0_125, %c0_126] : memref<4x1x32xf32, #tpu.memory_space<vmem>>, vector<1x1x32xf32>
    %235 = vector.shape_cast %234 : vector<1x1x32xf32> to vector<1x32xf32>
    %cst_127 = arith.constant dense<0.000000e+00> : vector<7xf32>
    %236 = vector.multi_reduction <add>, %231, %cst_127 [1] : vector<7x32xf32> to vector<7xf32>
    %237 = vector.shape_cast %236 : vector<7xf32> to vector<7x1xf32>
    %cst_128 = arith.constant dense<0.000000e+00> : vector<1xf32>
    %238 = vector.multi_reduction <add>, %237, %cst_128 [0] : vector<7x1xf32> to vector<1xf32>
    %239 = vector.shape_cast %238 : vector<1xf32> to vector<1x1xf32>
    %cst_129 = arith.constant 0.00446428591 : f32
    %240 = vector.broadcast %cst_129 : f32 to vector<1x1xf32>
    %241 = arith.mulf %239, %240 : vector<1x1xf32>
    %242 = arith.mulf %231, %231 : vector<7x32xf32>
    %cst_130 = arith.constant dense<0.000000e+00> : vector<7xf32>
    %243 = vector.multi_reduction <add>, %242, %cst_130 [1] : vector<7x32xf32> to vector<7xf32>
    %244 = vector.shape_cast %243 : vector<7xf32> to vector<7x1xf32>
    %cst_131 = arith.constant dense<0.000000e+00> : vector<1xf32>
    %245 = vector.multi_reduction <add>, %244, %cst_131 [0] : vector<7x1xf32> to vector<1xf32>
    %246 = vector.shape_cast %245 : vector<1xf32> to vector<1x1xf32>
    %cst_132 = arith.constant 0.00446428591 : f32
    %247 = vector.broadcast %cst_132 : f32 to vector<1x1xf32>
    %248 = arith.mulf %246, %247 : vector<1x1xf32>
    %249 = arith.mulf %241, %241 : vector<1x1xf32>
    %250 = arith.subf %248, %249 : vector<1x1xf32>
    %cst_133 = arith.constant 0.000000e+00 : f32
    %251 = vector.broadcast %cst_133 : f32 to vector<1x1xf32>
    %252 = arith.maximumf %250, %251 : vector<1x1xf32>
    %253 = vector.broadcast %241 : vector<1x1xf32> to vector<7x32xf32>
    %254 = arith.subf %231, %253 : vector<7x32xf32>
    %255 = vector.broadcast %233 : vector<1x32xf32> to vector<7x32xf32>
    %256 = arith.mulf %255, %254 : vector<7x32xf32>
    %cst_134 = arith.constant 9.99999993E-9 : f32
    %257 = vector.broadcast %cst_134 : f32 to vector<1x1xf32>
    %258 = arith.addf %252, %257 : vector<1x1xf32>
    %259 = math.rsqrt %258 : vector<1x1xf32>
    %260 = vector.broadcast %259 : vector<1x1xf32> to vector<7x32xf32>
    %261 = arith.mulf %256, %260 : vector<7x32xf32>
    %262 = vector.broadcast %235 : vector<1x32xf32> to vector<7x32xf32>
    %263 = arith.addf %261, %262 : vector<7x32xf32>
    %c1_135 = arith.constant 1 : index
    %c0_136 = arith.constant 0 : index
    %c0_137 = arith.constant 0 : index
    %264 = vector.load %arg17[%c1_135, %c0_136, %c0_137] : memref<4x32x16xf32, #tpu.memory_space<vmem>>, vector<1x32x16xf32>
    %265 = vector.shape_cast %264 : vector<1x32x16xf32> to vector<32x16xf32>
    %cst_138 = arith.constant dense<0.000000e+00> : vector<7x16xf32>
    %266 = tpu.matmul %263, %265, %cst_138 {dimension_numbers = #tpu.dot_dimension_numbers<[1], [0], [0], [1], [0, 0, 1, 1], [], []>} : vector<7x32xf32>, vector<32x16xf32>, vector<7x16xf32> -> vector<7x16xf32>
    %267 = arith.addf %159, %266 : vector<7x16xf32>
    %c1_139 = arith.constant 1 : index
    %c0_140 = arith.constant 0 : index
    %c0_141 = arith.constant 0 : index
    %268 = vector.load %arg18[%c1_139, %c0_140, %c0_141] : memref<4x1x16xf32, #tpu.memory_space<vmem>>, vector<1x1x16xf32>
    %269 = vector.shape_cast %268 : vector<1x1x16xf32> to vector<1x16xf32>
    %270 = vector.broadcast %269 : vector<1x16xf32> to vector<7x16xf32>
    %271 = arith.addf %267, %270 : vector<7x16xf32>
    %c4_142 = arith.constant 4 : index
    %272 = memref.load %arg1[%c4_142] : memref<9xf32, #tpu.memory_space<smem>>
    %c5 = arith.constant 5 : index
    %273 = memref.load %arg1[%c5] : memref<9xf32, #tpu.memory_space<smem>>
    %c2_143 = arith.constant 2 : index
    %c0_144 = arith.constant 0 : index
    %c0_145 = arith.constant 0 : index
    %274 = vector.load %arg9[%c2_143, %c0_144, %c0_145] : memref<4x16x32xf32, #tpu.memory_space<vmem>>, vector<1x16x32xf32>
    %275 = vector.shape_cast %274 : vector<1x16x32xf32> to vector<16x32xf32>
    %cst_146 = arith.constant dense<0.000000e+00> : vector<7x32xf32>
    %276 = tpu.matmul %271, %275, %cst_146 {dimension_numbers = #tpu.dot_dimension_numbers<[1], [0], [0], [1], [0, 0, 1, 1], [], []>} : vector<7x16xf32>, vector<16x32xf32>, vector<7x32xf32> -> vector<7x32xf32>
    %c2_147 = arith.constant 2 : index
    %c0_148 = arith.constant 0 : index
    %c0_149 = arith.constant 0 : index
    %277 = vector.load %arg10[%c2_147, %c0_148, %c0_149] : memref<4x1x32xf32, #tpu.memory_space<vmem>>, vector<1x1x32xf32>
    %278 = vector.shape_cast %277 : vector<1x1x32xf32> to vector<1x32xf32>
    %279 = vector.broadcast %278 : vector<1x32xf32> to vector<7x32xf32>
    %280 = arith.addf %276, %279 : vector<7x32xf32>
    %cst_150 = arith.constant 0.000000e+00 : f32
    %281 = vector.broadcast %cst_150 : f32 to vector<7x32xf32>
    %282 = arith.cmpf oge, %280, %281 : vector<7x32xf32>
    %283 = vector.broadcast %272 : f32 to vector<7x32xf32>
    %284 = arith.mulf %283, %280 : vector<7x32xf32>
    %285 = arith.select %282, %280, %284 : vector<7x32xi1>, vector<7x32xf32>
    %c2_151 = arith.constant 2 : index
    %c0_152 = arith.constant 0 : index
    %c0_153 = arith.constant 0 : index
    %286 = vector.load %arg11[%c2_151, %c0_152, %c0_153] : memref<4x1x32xf32, #tpu.memory_space<vmem>>, vector<1x1x32xf32>
    %287 = vector.shape_cast %286 : vector<1x1x32xf32> to vector<1x32xf32>
    %c2_154 = arith.constant 2 : index
    %c0_155 = arith.constant 0 : index
    %c0_156 = arith.constant 0 : index
    %288 = vector.load %arg12[%c2_154, %c0_155, %c0_156] : memref<4x1x32xf32, #tpu.memory_space<vmem>>, vector<1x1x32xf32>
    %289 = vector.shape_cast %288 : vector<1x1x32xf32> to vector<1x32xf32>
    %cst_157 = arith.constant dense<0.000000e+00> : vector<7xf32>
    %290 = vector.multi_reduction <add>, %285, %cst_157 [1] : vector<7x32xf32> to vector<7xf32>
    %291 = vector.shape_cast %290 : vector<7xf32> to vector<7x1xf32>
    %cst_158 = arith.constant dense<0.000000e+00> : vector<1xf32>
    %292 = vector.multi_reduction <add>, %291, %cst_158 [0] : vector<7x1xf32> to vector<1xf32>
    %293 = vector.shape_cast %292 : vector<1xf32> to vector<1x1xf32>
    %cst_159 = arith.constant 0.00446428591 : f32
    %294 = vector.broadcast %cst_159 : f32 to vector<1x1xf32>
    %295 = arith.mulf %293, %294 : vector<1x1xf32>
    %296 = arith.mulf %285, %285 : vector<7x32xf32>
    %cst_160 = arith.constant dense<0.000000e+00> : vector<7xf32>
    %297 = vector.multi_reduction <add>, %296, %cst_160 [1] : vector<7x32xf32> to vector<7xf32>
    %298 = vector.shape_cast %297 : vector<7xf32> to vector<7x1xf32>
    %cst_161 = arith.constant dense<0.000000e+00> : vector<1xf32>
    %299 = vector.multi_reduction <add>, %298, %cst_161 [0] : vector<7x1xf32> to vector<1xf32>
    %300 = vector.shape_cast %299 : vector<1xf32> to vector<1x1xf32>
    %cst_162 = arith.constant 0.00446428591 : f32
    %301 = vector.broadcast %cst_162 : f32 to vector<1x1xf32>
    %302 = arith.mulf %300, %301 : vector<1x1xf32>
    %303 = arith.mulf %295, %295 : vector<1x1xf32>
    %304 = arith.subf %302, %303 : vector<1x1xf32>
    %cst_163 = arith.constant 0.000000e+00 : f32
    %305 = vector.broadcast %cst_163 : f32 to vector<1x1xf32>
    %306 = arith.maximumf %304, %305 : vector<1x1xf32>
    %307 = vector.broadcast %295 : vector<1x1xf32> to vector<7x32xf32>
    %308 = arith.subf %285, %307 : vector<7x32xf32>
    %309 = vector.broadcast %287 : vector<1x32xf32> to vector<7x32xf32>
    %310 = arith.mulf %309, %308 : vector<7x32xf32>
    %cst_164 = arith.constant 9.99999993E-9 : f32
    %311 = vector.broadcast %cst_164 : f32 to vector<1x1xf32>
    %312 = arith.addf %306, %311 : vector<1x1xf32>
    %313 = math.rsqrt %312 : vector<1x1xf32>
    %314 = vector.broadcast %313 : vector<1x1xf32> to vector<7x32xf32>
    %315 = arith.mulf %310, %314 : vector<7x32xf32>
    %316 = vector.broadcast %289 : vector<1x32xf32> to vector<7x32xf32>
    %317 = arith.addf %315, %316 : vector<7x32xf32>
    %c2_165 = arith.constant 2 : index
    %c0_166 = arith.constant 0 : index
    %318 = vector.load %arg23[%c2_165, %c0_166] : memref<11x32xf32, #tpu.memory_space<vmem>>, vector<7x32xf32>
    tpu.vector_store %arg23[%c2_165, %c0_166], %317 {strides = array<i32>} : memref<11x32xf32, #tpu.memory_space<vmem>>, vector<7x32xf32>,
    %c2_167 = arith.constant 2 : index
    %c0_168 = arith.constant 0 : index
    %c0_169 = arith.constant 0 : index
    %319 = vector.load %arg13[%c2_167, %c0_168, %c0_169] : memref<4x3x32xf32, #tpu.memory_space<vmem>>, vector<1x3x32xf32>
    %320 = vector.shape_cast %319 : vector<1x3x32xf32> to vector<3x32xf32>
    %c2_170 = arith.constant 2 : index
    %c0_171 = arith.constant 0 : index
    %c0_172 = arith.constant 0 : index
    %321 = vector.load %arg14[%c2_170, %c0_171, %c0_172] : memref<4x1x32xf32, #tpu.memory_space<vmem>>, vector<1x1x32xf32>
    %322 = vector.shape_cast %321 : vector<1x1x32xf32> to vector<1x32xf32>
    %c1_173 = arith.constant 1 : index
    %c0_174 = arith.constant 0 : index
    %323 = vector.load %arg23[%c1_173, %c0_174] : memref<11x32xf32, #tpu.memory_space<vmem>>, vector<7x32xf32>
    %324 = vector.extract_strided_slice %320 {offsets = [0, 0], sizes = [1, 32], strides = [1, 1]} : vector<3x32xf32> to vector<1x32xf32>
    %325 = vector.broadcast %324 : vector<1x32xf32> to vector<7x32xf32>
    %326 = arith.mulf %323, %325 : vector<7x32xf32>
    %327 = vector.broadcast %322 : vector<1x32xf32> to vector<7x32xf32>
    %328 = arith.addf %327, %326 : vector<7x32xf32>
    %c2_175 = arith.constant 2 : index
    %c0_176 = arith.constant 0 : index
    %329 = vector.load %arg23[%c2_175, %c0_176] : memref<11x32xf32, #tpu.memory_space<vmem>>, vector<7x32xf32>
    %330 = vector.extract_strided_slice %320 {offsets = [1, 0], sizes = [1, 32], strides = [1, 1]} : vector<3x32xf32> to vector<1x32xf32>
    %331 = vector.broadcast %330 : vector<1x32xf32> to vector<7x32xf32>
    %332 = arith.mulf %329, %331 : vector<7x32xf32>
    %333 = arith.addf %328, %332 : vector<7x32xf32>
    %c3_177 = arith.constant 3 : index
    %c0_178 = arith.constant 0 : index
    %334 = vector.load %arg23[%c3_177, %c0_178] : memref<11x32xf32, #tpu.memory_space<vmem>>, vector<7x32xf32>
    %335 = vector.extract_strided_slice %320 {offsets = [2, 0], sizes = [1, 32], strides = [1, 1]} : vector<3x32xf32> to vector<1x32xf32>
    %336 = vector.broadcast %335 : vector<1x32xf32> to vector<7x32xf32>
    %337 = arith.mulf %334, %336 : vector<7x32xf32>
    %338 = arith.addf %333, %337 : vector<7x32xf32>
    %cst_179 = arith.constant 0.000000e+00 : f32
    %339 = vector.broadcast %cst_179 : f32 to vector<7x32xf32>
    %340 = arith.cmpf oge, %338, %339 : vector<7x32xf32>
    %341 = vector.broadcast %273 : f32 to vector<7x32xf32>
    %342 = arith.mulf %341, %338 : vector<7x32xf32>
    %343 = arith.select %340, %338, %342 : vector<7x32xi1>, vector<7x32xf32>
    %c2_180 = arith.constant 2 : index
    %c0_181 = arith.constant 0 : index
    %c0_182 = arith.constant 0 : index
    %344 = vector.load %arg15[%c2_180, %c0_181, %c0_182] : memref<4x1x32xf32, #tpu.memory_space<vmem>>, vector<1x1x32xf32>
    %345 = vector.shape_cast %344 : vector<1x1x32xf32> to vector<1x32xf32>
    %c2_183 = arith.constant 2 : index
    %c0_184 = arith.constant 0 : index
    %c0_185 = arith.constant 0 : index
    %346 = vector.load %arg16[%c2_183, %c0_184, %c0_185] : memref<4x1x32xf32, #tpu.memory_space<vmem>>, vector<1x1x32xf32>
    %347 = vector.shape_cast %346 : vector<1x1x32xf32> to vector<1x32xf32>
    %cst_186 = arith.constant dense<0.000000e+00> : vector<7xf32>
    %348 = vector.multi_reduction <add>, %343, %cst_186 [1] : vector<7x32xf32> to vector<7xf32>
    %349 = vector.shape_cast %348 : vector<7xf32> to vector<7x1xf32>
    %cst_187 = arith.constant dense<0.000000e+00> : vector<1xf32>
    %350 = vector.multi_reduction <add>, %349, %cst_187 [0] : vector<7x1xf32> to vector<1xf32>
    %351 = vector.shape_cast %350 : vector<1xf32> to vector<1x1xf32>
    %cst_188 = arith.constant 0.00446428591 : f32
    %352 = vector.broadcast %cst_188 : f32 to vector<1x1xf32>
    %353 = arith.mulf %351, %352 : vector<1x1xf32>
    %354 = arith.mulf %343, %343 : vector<7x32xf32>
    %cst_189 = arith.constant dense<0.000000e+00> : vector<7xf32>
    %355 = vector.multi_reduction <add>, %354, %cst_189 [1] : vector<7x32xf32> to vector<7xf32>
    %356 = vector.shape_cast %355 : vector<7xf32> to vector<7x1xf32>
    %cst_190 = arith.constant dense<0.000000e+00> : vector<1xf32>
    %357 = vector.multi_reduction <add>, %356, %cst_190 [0] : vector<7x1xf32> to vector<1xf32>
    %358 = vector.shape_cast %357 : vector<1xf32> to vector<1x1xf32>
    %cst_191 = arith.constant 0.00446428591 : f32
    %359 = vector.broadcast %cst_191 : f32 to vector<1x1xf32>
    %360 = arith.mulf %358, %359 : vector<1x1xf32>
    %361 = arith.mulf %353, %353 : vector<1x1xf32>
    %362 = arith.subf %360, %361 : vector<1x1xf32>
    %cst_192 = arith.constant 0.000000e+00 : f32
    %363 = vector.broadcast %cst_192 : f32 to vector<1x1xf32>
    %364 = arith.maximumf %362, %363 : vector<1x1xf32>
    %365 = vector.broadcast %353 : vector<1x1xf32> to vector<7x32xf32>
    %366 = arith.subf %343, %365 : vector<7x32xf32>
    %367 = vector.broadcast %345 : vector<1x32xf32> to vector<7x32xf32>
    %368 = arith.mulf %367, %366 : vector<7x32xf32>
    %cst_193 = arith.constant 9.99999993E-9 : f32
    %369 = vector.broadcast %cst_193 : f32 to vector<1x1xf32>
    %370 = arith.addf %364, %369 : vector<1x1xf32>
    %371 = math.rsqrt %370 : vector<1x1xf32>
    %372 = vector.broadcast %371 : vector<1x1xf32> to vector<7x32xf32>
    %373 = arith.mulf %368, %372 : vector<7x32xf32>
    %374 = vector.broadcast %347 : vector<1x32xf32> to vector<7x32xf32>
    %375 = arith.addf %373, %374 : vector<7x32xf32>
    %c2_194 = arith.constant 2 : index
    %c0_195 = arith.constant 0 : index
    %c0_196 = arith.constant 0 : index
    %376 = vector.load %arg17[%c2_194, %c0_195, %c0_196] : memref<4x32x16xf32, #tpu.memory_space<vmem>>, vector<1x32x16xf32>
    %377 = vector.shape_cast %376 : vector<1x32x16xf32> to vector<32x16xf32>
    %cst_197 = arith.constant dense<0.000000e+00> : vector<7x16xf32>
    %378 = tpu.matmul %375, %377, %cst_197 {dimension_numbers = #tpu.dot_dimension_numbers<[1], [0], [0], [1], [0, 0, 1, 1], [], []>} : vector<7x32xf32>, vector<32x16xf32>, vector<7x16xf32> -> vector<7x16xf32>
    %379 = arith.addf %271, %378 : vector<7x16xf32>
    %c2_198 = arith.constant 2 : index
    %c0_199 = arith.constant 0 : index
    %c0_200 = arith.constant 0 : index
    %380 = vector.load %arg18[%c2_198, %c0_199, %c0_200] : memref<4x1x16xf32, #tpu.memory_space<vmem>>, vector<1x1x16xf32>
    %381 = vector.shape_cast %380 : vector<1x1x16xf32> to vector<1x16xf32>
    %382 = vector.broadcast %381 : vector<1x16xf32> to vector<7x16xf32>
    %383 = arith.addf %379, %382 : vector<7x16xf32>
    %c6 = arith.constant 6 : index
    %384 = memref.load %arg1[%c6] : memref<9xf32, #tpu.memory_space<smem>>
    %c7 = arith.constant 7 : index
    %385 = memref.load %arg1[%c7] : memref<9xf32, #tpu.memory_space<smem>>
    %c3_201 = arith.constant 3 : index
    %c0_202 = arith.constant 0 : index
    %c0_203 = arith.constant 0 : index
    %386 = vector.load %arg9[%c3_201, %c0_202, %c0_203] : memref<4x16x32xf32, #tpu.memory_space<vmem>>, vector<1x16x32xf32>
    %387 = vector.shape_cast %386 : vector<1x16x32xf32> to vector<16x32xf32>
    %cst_204 = arith.constant dense<0.000000e+00> : vector<7x32xf32>
    %388 = tpu.matmul %383, %387, %cst_204 {dimension_numbers = #tpu.dot_dimension_numbers<[1], [0], [0], [1], [0, 0, 1, 1], [], []>} : vector<7x16xf32>, vector<16x32xf32>, vector<7x32xf32> -> vector<7x32xf32>
    %c3_205 = arith.constant 3 : index
    %c0_206 = arith.constant 0 : index
    %c0_207 = arith.constant 0 : index
    %389 = vector.load %arg10[%c3_205, %c0_206, %c0_207] : memref<4x1x32xf32, #tpu.memory_space<vmem>>, vector<1x1x32xf32>
    %390 = vector.shape_cast %389 : vector<1x1x32xf32> to vector<1x32xf32>
    %391 = vector.broadcast %390 : vector<1x32xf32> to vector<7x32xf32>
    %392 = arith.addf %388, %391 : vector<7x32xf32>
    %cst_208 = arith.constant 0.000000e+00 : f32
    %393 = vector.broadcast %cst_208 : f32 to vector<7x32xf32>
    %394 = arith.cmpf oge, %392, %393 : vector<7x32xf32>
    %395 = vector.broadcast %384 : f32 to vector<7x32xf32>
    %396 = arith.mulf %395, %392 : vector<7x32xf32>
    %397 = arith.select %394, %392, %396 : vector<7x32xi1>, vector<7x32xf32>
    %c3_209 = arith.constant 3 : index
    %c0_210 = arith.constant 0 : index
    %c0_211 = arith.constant 0 : index
    %398 = vector.load %arg11[%c3_209, %c0_210, %c0_211] : memref<4x1x32xf32, #tpu.memory_space<vmem>>, vector<1x1x32xf32>
    %399 = vector.shape_cast %398 : vector<1x1x32xf32> to vector<1x32xf32>
    %c3_212 = arith.constant 3 : index
    %c0_213 = arith.constant 0 : index
    %c0_214 = arith.constant 0 : index
    %400 = vector.load %arg12[%c3_212, %c0_213, %c0_214] : memref<4x1x32xf32, #tpu.memory_space<vmem>>, vector<1x1x32xf32>
    %401 = vector.shape_cast %400 : vector<1x1x32xf32> to vector<1x32xf32>
    %cst_215 = arith.constant dense<0.000000e+00> : vector<7xf32>
    %402 = vector.multi_reduction <add>, %397, %cst_215 [1] : vector<7x32xf32> to vector<7xf32>
    %403 = vector.shape_cast %402 : vector<7xf32> to vector<7x1xf32>
    %cst_216 = arith.constant dense<0.000000e+00> : vector<1xf32>
    %404 = vector.multi_reduction <add>, %403, %cst_216 [0] : vector<7x1xf32> to vector<1xf32>
    %405 = vector.shape_cast %404 : vector<1xf32> to vector<1x1xf32>
    %cst_217 = arith.constant 0.00446428591 : f32
    %406 = vector.broadcast %cst_217 : f32 to vector<1x1xf32>
    %407 = arith.mulf %405, %406 : vector<1x1xf32>
    %408 = arith.mulf %397, %397 : vector<7x32xf32>
    %cst_218 = arith.constant dense<0.000000e+00> : vector<7xf32>
    %409 = vector.multi_reduction <add>, %408, %cst_218 [1] : vector<7x32xf32> to vector<7xf32>
    %410 = vector.shape_cast %409 : vector<7xf32> to vector<7x1xf32>
    %cst_219 = arith.constant dense<0.000000e+00> : vector<1xf32>
    %411 = vector.multi_reduction <add>, %410, %cst_219 [0] : vector<7x1xf32> to vector<1xf32>
    %412 = vector.shape_cast %411 : vector<1xf32> to vector<1x1xf32>
    %cst_220 = arith.constant 0.00446428591 : f32
    %413 = vector.broadcast %cst_220 : f32 to vector<1x1xf32>
    %414 = arith.mulf %412, %413 : vector<1x1xf32>
    %415 = arith.mulf %407, %407 : vector<1x1xf32>
    %416 = arith.subf %414, %415 : vector<1x1xf32>
    %cst_221 = arith.constant 0.000000e+00 : f32
    %417 = vector.broadcast %cst_221 : f32 to vector<1x1xf32>
    %418 = arith.maximumf %416, %417 : vector<1x1xf32>
    %419 = vector.broadcast %407 : vector<1x1xf32> to vector<7x32xf32>
    %420 = arith.subf %397, %419 : vector<7x32xf32>
    %421 = vector.broadcast %399 : vector<1x32xf32> to vector<7x32xf32>
    %422 = arith.mulf %421, %420 : vector<7x32xf32>
    %cst_222 = arith.constant 9.99999993E-9 : f32
    %423 = vector.broadcast %cst_222 : f32 to vector<1x1xf32>
    %424 = arith.addf %418, %423 : vector<1x1xf32>
    %425 = math.rsqrt %424 : vector<1x1xf32>
    %426 = vector.broadcast %425 : vector<1x1xf32> to vector<7x32xf32>
    %427 = arith.mulf %422, %426 : vector<7x32xf32>
    %428 = vector.broadcast %401 : vector<1x32xf32> to vector<7x32xf32>
    %429 = arith.addf %427, %428 : vector<7x32xf32>
    %c2_223 = arith.constant 2 : index
    %c0_224 = arith.constant 0 : index
    %430 = vector.load %arg23[%c2_223, %c0_224] : memref<11x32xf32, #tpu.memory_space<vmem>>, vector<7x32xf32>
    tpu.vector_store %arg23[%c2_223, %c0_224], %429 {strides = array<i32>} : memref<11x32xf32, #tpu.memory_space<vmem>>, vector<7x32xf32>,
    %c3_225 = arith.constant 3 : index
    %c0_226 = arith.constant 0 : index
    %c0_227 = arith.constant 0 : index
    %431 = vector.load %arg13[%c3_225, %c0_226, %c0_227] : memref<4x3x32xf32, #tpu.memory_space<vmem>>, vector<1x3x32xf32>
    %432 = vector.shape_cast %431 : vector<1x3x32xf32> to vector<3x32xf32>
    %c3_228 = arith.constant 3 : index
    %c0_229 = arith.constant 0 : index
    %c0_230 = arith.constant 0 : index
    %433 = vector.load %arg14[%c3_228, %c0_229, %c0_230] : memref<4x1x32xf32, #tpu.memory_space<vmem>>, vector<1x1x32xf32>
    %434 = vector.shape_cast %433 : vector<1x1x32xf32> to vector<1x32xf32>
    %c0_231 = arith.constant 0 : index
    %c0_232 = arith.constant 0 : index
    %435 = vector.load %arg23[%c0_231, %c0_232] : memref<11x32xf32, #tpu.memory_space<vmem>>, vector<7x32xf32>
    %436 = vector.extract_strided_slice %432 {offsets = [0, 0], sizes = [1, 32], strides = [1, 1]} : vector<3x32xf32> to vector<1x32xf32>
    %437 = vector.broadcast %436 : vector<1x32xf32> to vector<7x32xf32>
    %438 = arith.mulf %435, %437 : vector<7x32xf32>
    %439 = vector.broadcast %434 : vector<1x32xf32> to vector<7x32xf32>
    %440 = arith.addf %439, %438 : vector<7x32xf32>
    %c2_233 = arith.constant 2 : index
    %c0_234 = arith.constant 0 : index
    %441 = vector.load %arg23[%c2_233, %c0_234] : memref<11x32xf32, #tpu.memory_space<vmem>>, vector<7x32xf32>
    %442 = vector.extract_strided_slice %432 {offsets = [1, 0], sizes = [1, 32], strides = [1, 1]} : vector<3x32xf32> to vector<1x32xf32>
    %443 = vector.broadcast %442 : vector<1x32xf32> to vector<7x32xf32>
    %444 = arith.mulf %441, %443 : vector<7x32xf32>
    %445 = arith.addf %440, %444 : vector<7x32xf32>
    %c4_235 = arith.constant 4 : index
    %c0_236 = arith.constant 0 : index
    %446 = vector.load %arg23[%c4_235, %c0_236] : memref<11x32xf32, #tpu.memory_space<vmem>>, vector<7x32xf32>
    %447 = vector.extract_strided_slice %432 {offsets = [2, 0], sizes = [1, 32], strides = [1, 1]} : vector<3x32xf32> to vector<1x32xf32>
    %448 = vector.broadcast %447 : vector<1x32xf32> to vector<7x32xf32>
    %449 = arith.mulf %446, %448 : vector<7x32xf32>
    %450 = arith.addf %445, %449 : vector<7x32xf32>
    %cst_237 = arith.constant 0.000000e+00 : f32
    %451 = vector.broadcast %cst_237 : f32 to vector<7x32xf32>
    %452 = arith.cmpf oge, %450, %451 : vector<7x32xf32>
    %453 = vector.broadcast %385 : f32 to vector<7x32xf32>
    %454 = arith.mulf %453, %450 : vector<7x32xf32>
    %455 = arith.select %452, %450, %454 : vector<7x32xi1>, vector<7x32xf32>
    %c3_238 = arith.constant 3 : index
    %c0_239 = arith.constant 0 : index
    %c0_240 = arith.constant 0 : index
    %456 = vector.load %arg15[%c3_238, %c0_239, %c0_240] : memref<4x1x32xf32, #tpu.memory_space<vmem>>, vector<1x1x32xf32>
    %457 = vector.shape_cast %456 : vector<1x1x32xf32> to vector<1x32xf32>
    %c3_241 = arith.constant 3 : index
    %c0_242 = arith.constant 0 : index
    %c0_243 = arith.constant 0 : index
    %458 = vector.load %arg16[%c3_241, %c0_242, %c0_243] : memref<4x1x32xf32, #tpu.memory_space<vmem>>, vector<1x1x32xf32>
    %459 = vector.shape_cast %458 : vector<1x1x32xf32> to vector<1x32xf32>
    %cst_244 = arith.constant dense<0.000000e+00> : vector<7xf32>
    %460 = vector.multi_reduction <add>, %455, %cst_244 [1] : vector<7x32xf32> to vector<7xf32>
    %461 = vector.shape_cast %460 : vector<7xf32> to vector<7x1xf32>
    %cst_245 = arith.constant dense<0.000000e+00> : vector<1xf32>
    %462 = vector.multi_reduction <add>, %461, %cst_245 [0] : vector<7x1xf32> to vector<1xf32>
    %463 = vector.shape_cast %462 : vector<1xf32> to vector<1x1xf32>
    %cst_246 = arith.constant 0.00446428591 : f32
    %464 = vector.broadcast %cst_246 : f32 to vector<1x1xf32>
    %465 = arith.mulf %463, %464 : vector<1x1xf32>
    %466 = arith.mulf %455, %455 : vector<7x32xf32>
    %cst_247 = arith.constant dense<0.000000e+00> : vector<7xf32>
    %467 = vector.multi_reduction <add>, %466, %cst_247 [1] : vector<7x32xf32> to vector<7xf32>
    %468 = vector.shape_cast %467 : vector<7xf32> to vector<7x1xf32>
    %cst_248 = arith.constant dense<0.000000e+00> : vector<1xf32>
    %469 = vector.multi_reduction <add>, %468, %cst_248 [0] : vector<7x1xf32> to vector<1xf32>
    %470 = vector.shape_cast %469 : vector<1xf32> to vector<1x1xf32>
    %cst_249 = arith.constant 0.00446428591 : f32
    %471 = vector.broadcast %cst_249 : f32 to vector<1x1xf32>
    %472 = arith.mulf %470, %471 : vector<1x1xf32>
    %473 = arith.mulf %465, %465 : vector<1x1xf32>
    %474 = arith.subf %472, %473 : vector<1x1xf32>
    %cst_250 = arith.constant 0.000000e+00 : f32
    %475 = vector.broadcast %cst_250 : f32 to vector<1x1xf32>
    %476 = arith.maximumf %474, %475 : vector<1x1xf32>
    %477 = vector.broadcast %465 : vector<1x1xf32> to vector<7x32xf32>
    %478 = arith.subf %455, %477 : vector<7x32xf32>
    %479 = vector.broadcast %457 : vector<1x32xf32> to vector<7x32xf32>
    %480 = arith.mulf %479, %478 : vector<7x32xf32>
    %cst_251 = arith.constant 9.99999993E-9 : f32
    %481 = vector.broadcast %cst_251 : f32 to vector<1x1xf32>
    %482 = arith.addf %476, %481 : vector<1x1xf32>
    %483 = math.rsqrt %482 : vector<1x1xf32>
    %484 = vector.broadcast %483 : vector<1x1xf32> to vector<7x32xf32>
    %485 = arith.mulf %480, %484 : vector<7x32xf32>
    %486 = vector.broadcast %459 : vector<1x32xf32> to vector<7x32xf32>
    %487 = arith.addf %485, %486 : vector<7x32xf32>
    %c3_252 = arith.constant 3 : index
    %c0_253 = arith.constant 0 : index
    %c0_254 = arith.constant 0 : index
    %488 = vector.load %arg17[%c3_252, %c0_253, %c0_254] : memref<4x32x16xf32, #tpu.memory_space<vmem>>, vector<1x32x16xf32>
    %489 = vector.shape_cast %488 : vector<1x32x16xf32> to vector<32x16xf32>
    %cst_255 = arith.constant dense<0.000000e+00> : vector<7x16xf32>
    %490 = tpu.matmul %487, %489, %cst_255 {dimension_numbers = #tpu.dot_dimension_numbers<[1], [0], [0], [1], [0, 0, 1, 1], [], []>} : vector<7x32xf32>, vector<32x16xf32>, vector<7x16xf32> -> vector<7x16xf32>
    %491 = arith.addf %383, %490 : vector<7x16xf32>
    %c3_256 = arith.constant 3 : index
    %c0_257 = arith.constant 0 : index
    %c0_258 = arith.constant 0 : index
    %492 = vector.load %arg18[%c3_256, %c0_257, %c0_258] : memref<4x1x16xf32, #tpu.memory_space<vmem>>, vector<1x1x16xf32>
    %493 = vector.shape_cast %492 : vector<1x1x16xf32> to vector<1x16xf32>
    %494 = vector.broadcast %493 : vector<1x16xf32> to vector<7x16xf32>
    %495 = arith.addf %491, %494 : vector<7x16xf32>
    %c0_259 = arith.constant 0 : index
    %c0_260 = arith.constant 0 : index
    %496 = vector.load %arg19[%c0_259, %c0_260] : memref<16x64xf32, #tpu.memory_space<vmem>>, vector<16x64xf32>
    %cst_261 = arith.constant dense<0.000000e+00> : vector<7x64xf32>
    %497 = tpu.matmul %495, %496, %cst_261 {dimension_numbers = #tpu.dot_dimension_numbers<[1], [0], [0], [1], [0, 0, 1, 1], [], []>} : vector<7x16xf32>, vector<16x64xf32>, vector<7x64xf32> -> vector<7x64xf32>
    %c0_262 = arith.constant 0 : index
    %c0_263 = arith.constant 0 : index
    %498 = vector.load %arg20[%c0_262, %c0_263] : memref<1x64xf32, #tpu.memory_space<vmem>>, vector<1x64xf32>
    %499 = vector.broadcast %498 : vector<1x64xf32> to vector<7x64xf32>
    %500 = arith.addf %497, %499 : vector<7x64xf32>
    %cst_264 = arith.constant 0.000000e+00 : f32
    %501 = vector.broadcast %cst_264 : f32 to vector<7x64xf32>
    %502 = arith.maximumf %500, %501 : vector<7x64xf32>
    %c8 = arith.constant 8 : index
    %503 = memref.load %arg1[%c8] : memref<9xf32, #tpu.memory_space<smem>>
    %504 = vector.extract_strided_slice %502 {offsets = [0, 0], sizes = [7, 32], strides = [1, 1]} : vector<7x64xf32> to vector<7x32xf32>
    %505 = arith.mulf %14, %504 : vector<7x32xf32>
    %506 = vector.extract_strided_slice %502 {offsets = [0, 32], sizes = [7, 32], strides = [1, 1]} : vector<7x64xf32> to vector<7x32xf32>
    %507 = arith.mulf %14, %506 : vector<7x32xf32>
    %508 = tpu.concatenate %505, %507 in 0 : vector<7x32xf32>, vector<7x32xf32> -> vector<14x32xf32>
    %c0_265 = arith.constant 0 : index
    %c0_266 = arith.constant 0 : index
    %509 = vector.load %arg21[%c0_265, %c0_266] : memref<32x16xf32, #tpu.memory_space<vmem>>, vector<32x16xf32>
    %cst_267 = arith.constant dense<0.000000e+00> : vector<14x16xf32>
    %510 = tpu.matmul %508, %509, %cst_267 {dimension_numbers = #tpu.dot_dimension_numbers<[1], [0], [0], [1], [0, 0, 1, 1], [], []>} : vector<14x32xf32>, vector<32x16xf32>, vector<14x16xf32> -> vector<14x16xf32>
    %cst_268 = arith.constant 0.000000e+00 : f32
    %511 = vector.broadcast %cst_268 : f32 to vector<1x8xf32>
    %512 = vector.extract_strided_slice %510 {offsets = [0, 0], sizes = [7, 16], strides = [1, 1]} : vector<14x16xf32> to vector<7x16xf32>
    %513 = vector.extract_strided_slice %512 {offsets = [0, 0], sizes = [7, 8], strides = [1, 1]} : vector<7x16xf32> to vector<7x8xf32>
    %514 = tpu.concatenate %513, %511 in 0 : vector<7x8xf32>, vector<1x8xf32> -> vector<8x8xf32>
    %515 = vector.extract_strided_slice %512 {offsets = [0, 8], sizes = [7, 8], strides = [1, 1]} : vector<7x16xf32> to vector<7x8xf32>
    %516 = tpu.concatenate %511, %515 in 0 : vector<1x8xf32>, vector<7x8xf32> -> vector<8x8xf32>
    %517 = arith.addf %514, %516 : vector<8x8xf32>
    %518 = vector.extract_strided_slice %510 {offsets = [7, 0], sizes = [7, 16], strides = [1, 1]} : vector<14x16xf32> to vector<7x16xf32>
    %519 = vector.extract_strided_slice %518 {offsets = [0, 0], sizes = [7, 8], strides = [1, 1]} : vector<7x16xf32> to vector<7x8xf32>
    %520 = tpu.concatenate %519, %511 in 0 : vector<7x8xf32>, vector<1x8xf32> -> vector<8x8xf32>
    %521 = vector.extract_strided_slice %518 {offsets = [0, 8], sizes = [7, 8], strides = [1, 1]} : vector<7x16xf32> to vector<7x8xf32>
    %522 = tpu.concatenate %511, %521 in 0 : vector<1x8xf32>, vector<7x8xf32> -> vector<8x8xf32>
    %523 = arith.addf %520, %522 : vector<8x8xf32>
    %524 = tpu.concatenate %517, %523 in 0 : vector<8x8xf32>, vector<8x8xf32> -> vector<16x8xf32>
    %525 = tpu.iota {dimensions = array<i32: 0>} : vector<16x128xi32>
    %526 = tpu.iota {dimensions = array<i32: 1>} : vector<16x128xi32>
    %c8_i32 = arith.constant 8 : i32
    %527 = vector.broadcast %c8_i32 : i32 to vector<16x128xi32>
    %528 = arith.muli %525, %527 : vector<16x128xi32>
    %529 = arith.subi %526, %528 : vector<16x128xi32>
    %cst_269 = arith.constant 0.000000e+00 : f32
    %530 = vector.broadcast %cst_269 : f32 to vector<16x128xf32>
    %c0_i32 = arith.constant 0 : i32
    %531 = vector.broadcast %c0_i32 : i32 to vector<16x128xi32>
    %532 = arith.cmpi eq, %529, %531 : vector<16x128xi32>
    %533 = vector.extract_strided_slice %524 {offsets = [0, 0], sizes = [16, 1], strides = [1, 1]} : vector<16x8xf32> to vector<16x1xf32>
    %cst_270 = arith.constant 0.000000e+00 : f32
    %534 = vector.shape_cast %533 : vector<16x1xf32> to vector<16x1xf32>
    %535 = vector.broadcast %534 : vector<16x1xf32> to vector<16x128xf32>
    %536 = vector.broadcast %cst_270 : f32 to vector<16x128xf32>
    %537 = arith.select %532, %535, %536 : vector<16x128xi1>, vector<16x128xf32>
    %538 = arith.addf %530, %537 : vector<16x128xf32>
    %c1_i32 = arith.constant 1 : i32
    %539 = vector.broadcast %c1_i32 : i32 to vector<16x128xi32>
    %540 = arith.cmpi eq, %529, %539 : vector<16x128xi32>
    %541 = vector.extract_strided_slice %524 {offsets = [0, 1], sizes = [16, 1], strides = [1, 1]} : vector<16x8xf32> to vector<16x1xf32>
    %cst_271 = arith.constant 0.000000e+00 : f32
    %542 = vector.shape_cast %541 : vector<16x1xf32> to vector<16x1xf32>
    %543 = vector.broadcast %542 : vector<16x1xf32> to vector<16x128xf32>
    %544 = vector.broadcast %cst_271 : f32 to vector<16x128xf32>
    %545 = arith.select %540, %543, %544 : vector<16x128xi1>, vector<16x128xf32>
    %546 = arith.addf %538, %545 : vector<16x128xf32>
    %c2_i32 = arith.constant 2 : i32
    %547 = vector.broadcast %c2_i32 : i32 to vector<16x128xi32>
    %548 = arith.cmpi eq, %529, %547 : vector<16x128xi32>
    %549 = vector.extract_strided_slice %524 {offsets = [0, 2], sizes = [16, 1], strides = [1, 1]} : vector<16x8xf32> to vector<16x1xf32>
    %cst_272 = arith.constant 0.000000e+00 : f32
    %550 = vector.shape_cast %549 : vector<16x1xf32> to vector<16x1xf32>
    %551 = vector.broadcast %550 : vector<16x1xf32> to vector<16x128xf32>
    %552 = vector.broadcast %cst_272 : f32 to vector<16x128xf32>
    %553 = arith.select %548, %551, %552 : vector<16x128xi1>, vector<16x128xf32>
    %554 = arith.addf %546, %553 : vector<16x128xf32>
    %c3_i32 = arith.constant 3 : i32
    %555 = vector.broadcast %c3_i32 : i32 to vector<16x128xi32>
    %556 = arith.cmpi eq, %529, %555 : vector<16x128xi32>
    %557 = vector.extract_strided_slice %524 {offsets = [0, 3], sizes = [16, 1], strides = [1, 1]} : vector<16x8xf32> to vector<16x1xf32>
    %cst_273 = arith.constant 0.000000e+00 : f32
    %558 = vector.shape_cast %557 : vector<16x1xf32> to vector<16x1xf32>
    %559 = vector.broadcast %558 : vector<16x1xf32> to vector<16x128xf32>
    %560 = vector.broadcast %cst_273 : f32 to vector<16x128xf32>
    %561 = arith.select %556, %559, %560 : vector<16x128xi1>, vector<16x128xf32>
    %562 = arith.addf %554, %561 : vector<16x128xf32>
    %c4_i32 = arith.constant 4 : i32
    %563 = vector.broadcast %c4_i32 : i32 to vector<16x128xi32>
    %564 = arith.cmpi eq, %529, %563 : vector<16x128xi32>
    %565 = vector.extract_strided_slice %524 {offsets = [0, 4], sizes = [16, 1], strides = [1, 1]} : vector<16x8xf32> to vector<16x1xf32>
    %cst_274 = arith.constant 0.000000e+00 : f32
    %566 = vector.shape_cast %565 : vector<16x1xf32> to vector<16x1xf32>
    %567 = vector.broadcast %566 : vector<16x1xf32> to vector<16x128xf32>
    %568 = vector.broadcast %cst_274 : f32 to vector<16x128xf32>
    %569 = arith.select %564, %567, %568 : vector<16x128xi1>, vector<16x128xf32>
    %570 = arith.addf %562, %569 : vector<16x128xf32>
    %c5_i32 = arith.constant 5 : i32
    %571 = vector.broadcast %c5_i32 : i32 to vector<16x128xi32>
    %572 = arith.cmpi eq, %529, %571 : vector<16x128xi32>
    %573 = vector.extract_strided_slice %524 {offsets = [0, 5], sizes = [16, 1], strides = [1, 1]} : vector<16x8xf32> to vector<16x1xf32>
    %cst_275 = arith.constant 0.000000e+00 : f32
    %574 = vector.shape_cast %573 : vector<16x1xf32> to vector<16x1xf32>
    %575 = vector.broadcast %574 : vector<16x1xf32> to vector<16x128xf32>
    %576 = vector.broadcast %cst_275 : f32 to vector<16x128xf32>
    %577 = arith.select %572, %575, %576 : vector<16x128xi1>, vector<16x128xf32>
    %578 = arith.addf %570, %577 : vector<16x128xf32>
    %c6_i32 = arith.constant 6 : i32
    %579 = vector.broadcast %c6_i32 : i32 to vector<16x128xi32>
    %580 = arith.cmpi eq, %529, %579 : vector<16x128xi32>
    %581 = vector.extract_strided_slice %524 {offsets = [0, 6], sizes = [16, 1], strides = [1, 1]} : vector<16x8xf32> to vector<16x1xf32>
    %cst_276 = arith.constant 0.000000e+00 : f32
    %582 = vector.shape_cast %581 : vector<16x1xf32> to vector<16x1xf32>
    %583 = vector.broadcast %582 : vector<16x1xf32> to vector<16x128xf32>
    %584 = vector.broadcast %cst_276 : f32 to vector<16x128xf32>
    %585 = arith.select %580, %583, %584 : vector<16x128xi1>, vector<16x128xf32>
    %586 = arith.addf %578, %585 : vector<16x128xf32>
    %c7_i32 = arith.constant 7 : i32
    %587 = vector.broadcast %c7_i32 : i32 to vector<16x128xi32>
    %588 = arith.cmpi eq, %529, %587 : vector<16x128xi32>
    %589 = vector.extract_strided_slice %524 {offsets = [0, 7], sizes = [16, 1], strides = [1, 1]} : vector<16x8xf32> to vector<16x1xf32>
    %cst_277 = arith.constant 0.000000e+00 : f32
    %590 = vector.shape_cast %589 : vector<16x1xf32> to vector<16x1xf32>
    %591 = vector.broadcast %590 : vector<16x1xf32> to vector<16x128xf32>
    %592 = vector.broadcast %cst_277 : f32 to vector<16x128xf32>
    %593 = arith.select %588, %591, %592 : vector<16x128xi1>, vector<16x128xf32>
    %594 = arith.addf %586, %593 : vector<16x128xf32>
    %cst_278 = arith.constant dense<0.000000e+00> : vector<128xf32>
    %595 = vector.multi_reduction <add>, %594, %cst_278 [0] : vector<16x128xf32> to vector<128xf32>
    %596 = vector.shape_cast %595 : vector<128xf32> to vector<1x128xf32>
    %597 = vector.broadcast %503 : f32 to vector<1x128xf32>
    %598 = arith.addf %596, %597 : vector<1x128xf32>
    %c0_279 = arith.constant 0 : index
    %c0_280 = arith.constant 0 : index
    %c0_281 = arith.constant 0 : index
    %599 = vector.load %arg22[%c0_279, %c0_280, %c0_281] : memref<1x1x128xf32, #tpu.memory_space<vmem>>, vector<1x1x128xf32>
    %600 = vector.shape_cast %599 : vector<1x1x128xf32> to vector<1x128xf32>
    %601 = vector.shape_cast %598 : vector<1x128xf32> to vector<1x1x128xf32>
    tpu.vector_store %arg22[%c0_279, %c0_280, %c0_281], %601 {strides = array<i32>} : memref<1x1x128xf32, #tpu.memory_space<vmem>>, vector<1x1x128xf32>,
    return
  }
  func.func @transform_0(%arg0: i32) -> i32 {
    %c0_i32 = arith.constant 0 : i32
    %c0_i32_0 = arith.constant 0 : i32
    return %c0_i32 : i32
  }
  func.func @transform_1(%arg0: i32) -> (i32, i32, i32) {
    %c0_i32 = arith.constant 0 : i32
    %c0_i32_0 = arith.constant 0 : i32
    %c0_i32_1 = arith.constant 0 : i32
    return %arg0, %c0_i32, %c0_i32_0 : i32, i32, i32
  }
  func.func @transform_2(%arg0: i32) -> (i32, i32) {
    %c0_i32 = arith.constant 0 : i32
    %c0_i32_0 = arith.constant 0 : i32
    %c0_i32_1 = arith.constant 0 : i32
    return %c0_i32, %c0_i32_0 : i32, i32
  }
  func.func @transform_3(%arg0: i32) -> (i32, i32) {
    %c0_i32 = arith.constant 0 : i32
    %c0_i32_0 = arith.constant 0 : i32
    %c0_i32_1 = arith.constant 0 : i32
    return %c0_i32, %c0_i32_0 : i32, i32
  }
  func.func @transform_4(%arg0: i32) -> (i32, i32) {
    %c0_i32 = arith.constant 0 : i32
    %c0_i32_0 = arith.constant 0 : i32
    %c0_i32_1 = arith.constant 0 : i32
    return %c0_i32, %c0_i32_0 : i32, i32
  }
  func.func @transform_5(%arg0: i32) -> (i32, i32) {
    %c0_i32 = arith.constant 0 : i32
    %c0_i32_0 = arith.constant 0 : i32
    %c0_i32_1 = arith.constant 0 : i32
    return %c0_i32, %c0_i32_0 : i32, i32
  }
  func.func @transform_6(%arg0: i32) -> (i32, i32) {
    %c0_i32 = arith.constant 0 : i32
    %c0_i32_0 = arith.constant 0 : i32
    %c0_i32_1 = arith.constant 0 : i32
    return %c0_i32, %c0_i32_0 : i32, i32
  }
  func.func @transform_7(%arg0: i32) -> (i32, i32) {
    %c0_i32 = arith.constant 0 : i32
    %c0_i32_0 = arith.constant 0 : i32
    %c0_i32_1 = arith.constant 0 : i32
    return %c0_i32, %c0_i32_0 : i32, i32
  }
  func.func @transform_8(%arg0: i32) -> (i32, i32, i32) {
    %c0_i32 = arith.constant 0 : i32
    %c0_i32_0 = arith.constant 0 : i32
    %c0_i32_1 = arith.constant 0 : i32
    %c0_i32_2 = arith.constant 0 : i32
    return %c0_i32, %c0_i32_0, %c0_i32_1 : i32, i32, i32
  }
  func.func @transform_9(%arg0: i32) -> (i32, i32, i32) {
    %c0_i32 = arith.constant 0 : i32
    %c0_i32_0 = arith.constant 0 : i32
    %c0_i32_1 = arith.constant 0 : i32
    %c0_i32_2 = arith.constant 0 : i32
    return %c0_i32, %c0_i32_0, %c0_i32_1 : i32, i32, i32
  }
  func.func @transform_10(%arg0: i32) -> (i32, i32, i32) {
    %c0_i32 = arith.constant 0 : i32
    %c0_i32_0 = arith.constant 0 : i32
    %c0_i32_1 = arith.constant 0 : i32
    %c0_i32_2 = arith.constant 0 : i32
    return %c0_i32, %c0_i32_0, %c0_i32_1 : i32, i32, i32
  }
  func.func @transform_11(%arg0: i32) -> (i32, i32, i32) {
    %c0_i32 = arith.constant 0 : i32
    %c0_i32_0 = arith.constant 0 : i32
    %c0_i32_1 = arith.constant 0 : i32
    %c0_i32_2 = arith.constant 0 : i32
    return %c0_i32, %c0_i32_0, %c0_i32_1 : i32, i32, i32
  }
  func.func @transform_12(%arg0: i32) -> (i32, i32, i32) {
    %c0_i32 = arith.constant 0 : i32
    %c0_i32_0 = arith.constant 0 : i32
    %c0_i32_1 = arith.constant 0 : i32
    %c0_i32_2 = arith.constant 0 : i32
    return %c0_i32, %c0_i32_0, %c0_i32_1 : i32, i32, i32
  }
  func.func @transform_13(%arg0: i32) -> (i32, i32, i32) {
    %c0_i32 = arith.constant 0 : i32
    %c0_i32_0 = arith.constant 0 : i32
    %c0_i32_1 = arith.constant 0 : i32
    %c0_i32_2 = arith.constant 0 : i32
    return %c0_i32, %c0_i32_0, %c0_i32_1 : i32, i32, i32
  }
  func.func @transform_14(%arg0: i32) -> (i32, i32, i32) {
    %c0_i32 = arith.constant 0 : i32
    %c0_i32_0 = arith.constant 0 : i32
    %c0_i32_1 = arith.constant 0 : i32
    %c0_i32_2 = arith.constant 0 : i32
    return %c0_i32, %c0_i32_0, %c0_i32_1 : i32, i32, i32
  }
  func.func @transform_15(%arg0: i32) -> (i32, i32, i32) {
    %c0_i32 = arith.constant 0 : i32
    %c0_i32_0 = arith.constant 0 : i32
    %c0_i32_1 = arith.constant 0 : i32
    %c0_i32_2 = arith.constant 0 : i32
    return %c0_i32, %c0_i32_0, %c0_i32_1 : i32, i32, i32
  }
  func.func @transform_16(%arg0: i32) -> (i32, i32, i32) {
    %c0_i32 = arith.constant 0 : i32
    %c0_i32_0 = arith.constant 0 : i32
    %c0_i32_1 = arith.constant 0 : i32
    %c0_i32_2 = arith.constant 0 : i32
    return %c0_i32, %c0_i32_0, %c0_i32_1 : i32, i32, i32
  }
  func.func @transform_17(%arg0: i32) -> (i32, i32, i32) {
    %c0_i32 = arith.constant 0 : i32
    %c0_i32_0 = arith.constant 0 : i32
    %c0_i32_1 = arith.constant 0 : i32
    %c0_i32_2 = arith.constant 0 : i32
    return %c0_i32, %c0_i32_0, %c0_i32_1 : i32, i32, i32
  }
  func.func @transform_18(%arg0: i32) -> (i32, i32) {
    %c0_i32 = arith.constant 0 : i32
    %c0_i32_0 = arith.constant 0 : i32
    %c0_i32_1 = arith.constant 0 : i32
    return %c0_i32, %c0_i32_0 : i32, i32
  }
  func.func @transform_19(%arg0: i32) -> (i32, i32) {
    %c0_i32 = arith.constant 0 : i32
    %c0_i32_0 = arith.constant 0 : i32
    %c0_i32_1 = arith.constant 0 : i32
    return %c0_i32, %c0_i32_0 : i32, i32
  }
  func.func @transform_20(%arg0: i32) -> (i32, i32) {
    %c0_i32 = arith.constant 0 : i32
    %c0_i32_0 = arith.constant 0 : i32
    %c0_i32_1 = arith.constant 0 : i32
    return %c0_i32, %c0_i32_0 : i32, i32
  }
  func.func @transform_21(%arg0: i32) -> (i32, i32, i32) {
    %c0_i32 = arith.constant 0 : i32
    %c0_i32_0 = arith.constant 0 : i32
    %c0_i32_1 = arith.constant 0 : i32
    return %arg0, %c0_i32, %c0_i32_0 : i32, i32, i32
  }
}

</mosaic_0001>

<llo_original>
// kernel: tpu_custom_call.1
$region0: #{tpu_custom_call.1}
  #allocation0 [shape = 'u32[]', space=smem, size = 0x4, offset = 0x4, fixed_abs, tag = 'smem constant byte address 0x4 - core index']
  #allocation1 [shape = 'u32[144,128]{1,0:T(1,128)}', space=vmem, size = 0x12000, scoped, tag = 'internal scratch']
  #allocation2 [shape = 'f32[11,32]{1,0:T(8,128)}', space=vmem, size = 0x2000, scoped, tag = 'scratch operand']
  %s0 = inlined_call_operand.vmem [shape: f32[9], index: 0, kind: input, shape index: {}]
  %s1 = inlined_call_operand.vmem [shape: f32[2,8,8], index: 1, kind: input, shape index: {}]
  %s2 = inlined_call_operand.vmem [shape: f32[16,32], index: 2, kind: input, shape index: {}]
  %s3 = inlined_call_operand.vmem [shape: f32[1,32], index: 3, kind: input, shape index: {}]
  %s4 = inlined_call_operand.vmem [shape: f32[1,32], index: 4, kind: input, shape index: {}]
  %s5 = inlined_call_operand.vmem [shape: f32[1,32], index: 5, kind: input, shape index: {}]
  %s6 = inlined_call_operand.vmem [shape: f32[32,16], index: 6, kind: input, shape index: {}]
  %s7 = inlined_call_operand.vmem [shape: f32[1,16], index: 7, kind: input, shape index: {}]
  %s8 = inlined_call_operand.vmem [shape: f32[4,16,32], index: 8, kind: input, shape index: {}]
  %s9 = inlined_call_operand.vmem [shape: f32[4,1,32], index: 9, kind: input, shape index: {}]
  %s10 = inlined_call_operand.vmem [shape: f32[4,1,32], index: 10, kind: input, shape index: {}]
  %s11 = inlined_call_operand.vmem [shape: f32[4,1,32], index: 11, kind: input, shape index: {}]
  %s12 = inlined_call_operand.vmem [shape: f32[4,3,32], index: 12, kind: input, shape index: {}]
  %s13 = inlined_call_operand.vmem [shape: f32[4,1,32], index: 13, kind: input, shape index: {}]
  %s14 = inlined_call_operand.vmem [shape: f32[4,1,32], index: 14, kind: input, shape index: {}]
  %s15 = inlined_call_operand.vmem [shape: f32[4,1,32], index: 15, kind: input, shape index: {}]
  %s16 = inlined_call_operand.vmem [shape: f32[4,32,16], index: 16, kind: input, shape index: {}]
  %s17 = inlined_call_operand.vmem [shape: f32[4,1,16], index: 17, kind: input, shape index: {}]
  %s18 = inlined_call_operand.vmem [shape: f32[16,64], index: 18, kind: input, shape index: {}]
  %s19 = inlined_call_operand.vmem [shape: f32[1,64], index: 19, kind: input, shape index: {}]
  %s20 = inlined_call_operand.vmem [shape: f32[32,16], index: 20, kind: input, shape index: {}]
  %s21 = inlined_call_operand.hbm [shape: f32[2,1,128], index: 21, kind: output, shape index: {}]
  %s22 = sld [smem:[#allocation0]]
  $region121: #{tpu_custom_call.1} parent=0
    _
  %s24 = ssub.s32 1, %s22
  %s25 = scalar_select 0, %s24, %s22
  $region1: #{tpu_custom_call.1} parent=0
    #allocation3 [shape = 'u8[512]{0}', space=smem, size = 0x200, scoped, tag = 'input window, operand 0, single buffered']
    #allocation4 [shape = 's32[2]{0}', space=sflag, size = 0x8, scoped, tag = 'scoped memory for tpu_custom_call.1']
    #allocation5 [shape = 's32[2]{0}', space=sflag, size = 0x8, scoped, tag = 'scoped memory for tpu_custom_call.1']
    #allocation6 [shape = 'u8[1024]{0}', space=vmem, size = 0x400, scoped, tag = 'output window, operand 0']
    %26 = vsyncpa [#allocation5], 0
    %27 = vsyncpa [#allocation4], 0
    %s28 = scalar_lea.sflag [#allocation4], 1
    %29 = vsyncpa %s28, 0
    loop: start=0, step=1, limit=4
    $region2: #{tpu_custom_call.1} parent=1 // loop_pre_header
      _
    $region3: #{tpu_custom_call.1} parent=1 // loop_header
      %s31 = sphi 0, %s35
      %p32 = scmp.ge.s32.totalorder %s31, 4
      %s39 = sphi 0, %s39
      %s41 = sphi 0, %s39
      %s42 = sphi 0, %s41
      %s56 = sphi 0, %s42
      %s62 = sphi 0, %s64
      %s65 = sphi 0, %s62
      %s66 = sphi 0, %s65
      %s82 = sphi 0, %s66
      %s86 = sphi 0, %s86
      %s88 = sphi 0, %s86
      %s89 = sphi 0, %s88
      %s103 = sphi 0, %s89
      %s107 = sphi 0, %s107
      %s109 = sphi 0, %s107
      %s110 = sphi 0, %s109
      %s124 = sphi 0, %s110
      %s128 = sphi 0, %s128
      %s130 = sphi 0, %s128
      %s131 = sphi 0, %s130
      %s145 = sphi 0, %s131
      %s149 = sphi 0, %s149
      %s151 = sphi 0, %s149
      %s152 = sphi 0, %s151
      %s166 = sphi 0, %s152
      %s170 = sphi 0, %s170
      %s172 = sphi 0, %s170
      %s173 = sphi 0, %s172
      %s187 = sphi 0, %s173
      %s191 = sphi 0, %s191
      %s193 = sphi 0, %s191
      %s194 = sphi 0, %s193
      %s208 = sphi 0, %s194
      %s212 = sphi 0, %s212
      %s214 = sphi 0, %s212
      %s215 = sphi 0, %s214
      %s229 = sphi 0, %s215
      %s233 = sphi 0, %s233
      %s235 = sphi 0, %s233
      %s236 = sphi 0, %s235
      %s250 = sphi 0, %s236
      %s254 = sphi 0, %s254
      %s256 = sphi 0, %s254
      %s257 = sphi 0, %s256
      %s271 = sphi 0, %s257
      %s275 = sphi 0, %s275
      %s277 = sphi 0, %s275
      %s278 = sphi 0, %s277
      %s292 = sphi 0, %s278
      %s296 = sphi 0, %s296
      %s298 = sphi 0, %s296
      %s299 = sphi 0, %s298
      %s313 = sphi 0, %s299
      %s317 = sphi 0, %s317
      %s319 = sphi 0, %s317
      %s320 = sphi 0, %s319
      %s334 = sphi 0, %s320
      %s338 = sphi 0, %s338
      %s340 = sphi 0, %s338
      %s341 = sphi 0, %s340
      %s355 = sphi 0, %s341
      %s359 = sphi 0, %s359
      %s361 = sphi 0, %s359
      %s362 = sphi 0, %s361
      %s376 = sphi 0, %s362
      %s380 = sphi 0, %s380
      %s382 = sphi 0, %s380
      %s383 = sphi 0, %s382
      %s397 = sphi 0, %s383
      %s401 = sphi 0, %s401
      %s403 = sphi 0, %s401
      %s404 = sphi 0, %s403
      %s418 = sphi 0, %s404
      %s422 = sphi 0, %s422
      %s424 = sphi 0, %s422
      %s425 = sphi 0, %s424
      %s439 = sphi 0, %s425
      %s443 = sphi 0, %s443
      %s445 = sphi 0, %s443
      %s446 = sphi 0, %s445
      %s460 = sphi 0, %s446
      %s464 = sphi 0, %s464
      %s466 = sphi 0, %s464
      %s467 = sphi 0, %s466
      %s481 = sphi 0, %s467
      %s487 = sphi 0, %s489
      %s490 = sphi 0, %s487
      %s491 = sphi 0, %s490
      %s507 = sphi 0, %s491
    $region4: #{tpu_custom_call.1} parent=1 // loop_header_branch
      %34 = sbr.rel (%p32) target = $region8
    $region5: #{tpu_custom_call.1} parent=1 // loop_body
      %s36 = ssub.s32 %s31, 1
      %s37 = ssub.s32 %s31, 2
      %s38 = sadd.s32 %s31, 1
      %s40 = sadd.s32 %s39, 1
      %p43 = scmp.eq.s32.totalorder %s31, 1
      %p44 = scmp.ne.s32.totalorder %s39, %s41
      %p45 = scmp.eq.s32.totalorder %s31, 0
      %p46 = por %p44, %p45
      %p47 = scmp.ne.s32.totalorder %s39, %s41
      %p48 = scmp.eq.s32.totalorder %s36, 1
      %p49 = por %p47, %p48
      %p50 = scmp.ne.s32.totalorder %s41, %s42
      %p51 = scmp.eq.s32.totalorder %s36, 0
      %p52 = por %p50, %p51
      %p53 = scmp.ne.s32.totalorder %s41, %s42
      %p54 = scmp.eq.s32.totalorder %s37, 1
      %p55 = por %p53, %p54
      %p57 = scmp.ne.s32.totalorder %s42, %s56
      %p58 = scmp.eq.s32.totalorder %s37, 0
      %p59 = por %p57, %p58
      %s60 = ssub.s32 %s31, %s38
      %p61 = scmp.eq.s32.totalorder %s60, 0
      %s63 = sadd.s32 %s62, 1
      %s64 = scalar_select %p61, %s62, %s63
      %p67 = pneg %p61
      %p68 = scmp.eq.s32.totalorder %s31, 1
      %p69 = por %p67, %p68
      %p70 = scmp.ne.s32.totalorder %s62, %s65
      %p71 = scmp.eq.s32.totalorder %s31, 0
      %p72 = por %p70, %p71
      %p73 = scmp.ne.s32.totalorder %s62, %s65
      %p74 = scmp.eq.s32.totalorder %s36, 1
      %p75 = por %p73, %p74
      %p76 = scmp.ne.s32.totalorder %s65, %s66
      %p77 = scmp.eq.s32.totalorder %s36, 0
      %p78 = por %p76, %p77
      %p79 = scmp.ne.s32.totalorder %s65, %s66
      %p80 = scmp.eq.s32.totalorder %s37, 1
      %p81 = por %p79, %p80
      %p83 = scmp.ne.s32.totalorder %s66, %s82
      %p84 = scmp.eq.s32.totalorder %s37, 0
      %p85 = por %p83, %p84
      %s87 = sadd.s32 %s86, 1
      %p90 = scmp.eq.s32.totalorder %s31, 1
      %p91 = scmp.ne.s32.totalorder %s86, %s88
      %p92 = scmp.eq.s32.totalorder %s31, 0
      %p93 = por %p91, %p92
      %p94 = scmp.ne.s32.totalorder %s86, %s88
      %p95 = scmp.eq.s32.totalorder %s36, 1
      %p96 = por %p94, %p95
      %p97 = scmp.ne.s32.totalorder %s88, %s89
      %p98 = scmp.eq.s32.totalorder %s36, 0
      %p99 = por %p97, %p98
      %p100 = scmp.ne.s32.totalorder %s88, %s89
      %p101 = scmp.eq.s32.totalorder %s37, 1
      %p102 = por %p100, %p101
      %p104 = scmp.ne.s32.totalorder %s89, %s103
      %p105 = scmp.eq.s32.totalorder %s37, 0
      %p106 = por %p104, %p105
      %s108 = sadd.s32 %s107, 1
      %p111 = scmp.eq.s32.totalorder %s31, 1
      %p112 = scmp.ne.s32.totalorder %s107, %s109
      %p113 = scmp.eq.s32.totalorder %s31, 0
      %p114 = por %p112, %p113
      %p115 = scmp.ne.s32.totalorder %s107, %s109
      %p116 = scmp.eq.s32.totalorder %s36, 1
      %p117 = por %p115, %p116
      %p118 = scmp.ne.s32.totalorder %s109, %s110
      %p119 = scmp.eq.s32.totalorder %s36, 0
      %p120 = por %p118, %p119
      %p121 = scmp.ne.s32.totalorder %s109, %s110
      %p122 = scmp.eq.s32.totalorder %s37, 1
      %p123 = por %p121, %p122
      %p125 = scmp.ne.s32.totalorder %s110, %s124
      %p126 = scmp.eq.s32.totalorder %s37, 0
      %p127 = por %p125, %p126
      %s129 = sadd.s32 %s128, 1
      %p132 = scmp.eq.s32.totalorder %s31, 1
      %p133 = scmp.ne.s32.totalorder %s128, %s130
      %p134 = scmp.eq.s32.totalorder %s31, 0
      %p135 = por %p133, %p134
      %p136 = scmp.ne.s32.totalorder %s128, %s130
      %p137 = scmp.eq.s32.totalorder %s36, 1
      %p138 = por %p136, %p137
      %p139 = scmp.ne.s32.totalorder %s130, %s131
      %p140 = scmp.eq.s32.totalorder %s36, 0
      %p141 = por %p139, %p140
      %p142 = scmp.ne.s32.totalorder %s130, %s131
      %p143 = scmp.eq.s32.totalorder %s37, 1
      %p144 = por %p142, %p143
      %p146 = scmp.ne.s32.totalorder %s131, %s145
      %p147 = scmp.eq.s32.totalorder %s37, 0
      %p148 = por %p146, %p147
      %s150 = sadd.s32 %s149, 1
      %p153 = scmp.eq.s32.totalorder %s31, 1
      %p154 = scmp.ne.s32.totalorder %s149, %s151
      %p155 = scmp.eq.s32.totalorder %s31, 0
      %p156 = por %p154, %p155
      %p157 = scmp.ne.s32.totalorder %s149, %s151
      %p158 = scmp.eq.s32.totalorder %s36, 1
      %p159 = por %p157, %p158
      %p160 = scmp.ne.s32.totalorder %s151, %s152
      %p161 = scmp.eq.s32.totalorder %s36, 0
      %p162 = por %p160, %p161
      %p163 = scmp.ne.s32.totalorder %s151, %s152
      %p164 = scmp.eq.s32.totalorder %s37, 1
      %p165 = por %p163, %p164
      %p167 = scmp.ne.s32.totalorder %s152, %s166
      %p168 = scmp.eq.s32.totalorder %s37, 0
      %p169 = por %p167, %p168
      %s171 = sadd.s32 %s170, 1
      %p174 = scmp.eq.s32.totalorder %s31, 1
      %p175 = scmp.ne.s32.totalorder %s170, %s172
      %p176 = scmp.eq.s32.totalorder %s31, 0
      %p177 = por %p175, %p176
      %p178 = scmp.ne.s32.totalorder %s170, %s172
      %p179 = scmp.eq.s32.totalorder %s36, 1
      %p180 = por %p178, %p179
      %p181 = scmp.ne.s32.totalorder %s172, %s173
      %p182 = scmp.eq.s32.totalorder %s36, 0
      %p183 = por %p181, %p182
      %p184 = scmp.ne.s32.totalorder %s172, %s173
      %p185 = scmp.eq.s32.totalorder %s37, 1
      %p186 = por %p184, %p185
      %p188 = scmp.ne.s32.totalorder %s173, %s187
      %p189 = scmp.eq.s32.totalorder %s37, 0
      %p190 = por %p188, %p189
      %s192 = sadd.s32 %s191, 1
      %p195 = scmp.eq.s32.totalorder %s31, 1
      %p196 = scmp.ne.s32.totalorder %s191, %s193
      %p197 = scmp.eq.s32.totalorder %s31, 0
      %p198 = por %p196, %p197
      %p199 = scmp.ne.s32.totalorder %s191, %s193
      %p200 = scmp.eq.s32.totalorder %s36, 1
      %p201 = por %p199, %p200
      %p202 = scmp.ne.s32.totalorder %s193, %s194
      %p203 = scmp.eq.s32.totalorder %s36, 0
      %p204 = por %p202, %p203
      %p205 = scmp.ne.s32.totalorder %s193, %s194
      %p206 = scmp.eq.s32.totalorder %s37, 1
      %p207 = por %p205, %p206
      %p209 = scmp.ne.s32.totalorder %s194, %s208
      %p210 = scmp.eq.s32.totalorder %s37, 0
      %p211 = por %p209, %p210
      %s213 = sadd.s32 %s212, 1
      %p216 = scmp.eq.s32.totalorder %s31, 1
      %p217 = scmp.ne.s32.totalorder %s212, %s214
      %p218 = scmp.eq.s32.totalorder %s31, 0
      %p219 = por %p217, %p218
      %p220 = scmp.ne.s32.totalorder %s212, %s214
      %p221 = scmp.eq.s32.totalorder %s36, 1
      %p222 = por %p220, %p221
      %p223 = scmp.ne.s32.totalorder %s214, %s215
      %p224 = scmp.eq.s32.totalorder %s36, 0
      %p225 = por %p223, %p224
      %p226 = scmp.ne.s32.totalorder %s214, %s215
      %p227 = scmp.eq.s32.totalorder %s37, 1
      %p228 = por %p226, %p227
      %p230 = scmp.ne.s32.totalorder %s215, %s229
      %p231 = scmp.eq.s32.totalorder %s37, 0
      %p232 = por %p230, %p231
      %s234 = sadd.s32 %s233, 1
      %p237 = scmp.eq.s32.totalorder %s31, 1
      %p238 = scmp.ne.s32.totalorder %s233, %s235
      %p239 = scmp.eq.s32.totalorder %s31, 0
      %p240 = por %p238, %p239
      %p241 = scmp.ne.s32.totalorder %s233, %s235
      %p242 = scmp.eq.s32.totalorder %s36, 1
      %p243 = por %p241, %p242
      %p244 = scmp.ne.s32.totalorder %s235, %s236
      %p245 = scmp.eq.s32.totalorder %s36, 0
      %p246 = por %p244, %p245
      %p247 = scmp.ne.s32.totalorder %s235, %s236
      %p248 = scmp.eq.s32.totalorder %s37, 1
      %p249 = por %p247, %p248
      %p251 = scmp.ne.s32.totalorder %s236, %s250
      %p252 = scmp.eq.s32.totalorder %s37, 0
      %p253 = por %p251, %p252
      %s255 = sadd.s32 %s254, 1
      %p258 = scmp.eq.s32.totalorder %s31, 1
      %p259 = scmp.ne.s32.totalorder %s254, %s256
      %p260 = scmp.eq.s32.totalorder %s31, 0
      %p261 = por %p259, %p260
      %p262 = scmp.ne.s32.totalorder %s254, %s256
      %p263 = scmp.eq.s32.totalorder %s36, 1
      %p264 = por %p262, %p263
      %p265 = scmp.ne.s32.totalorder %s256, %s257
      %p266 = scmp.eq.s32.totalorder %s36, 0
      %p267 = por %p265, %p266
      %p268 = scmp.ne.s32.totalorder %s256, %s257
      %p269 = scmp.eq.s32.totalorder %s37, 1
      %p270 = por %p268, %p269
      %p272 = scmp.ne.s32.totalorder %s257, %s271
      %p273 = scmp.eq.s32.totalorder %s37, 0
      %p274 = por %p272, %p273
      %s276 = sadd.s32 %s275, 1
      %p279 = scmp.eq.s32.totalorder %s31, 1
      %p280 = scmp.ne.s32.totalorder %s275, %s277
      %p281 = scmp.eq.s32.totalorder %s31, 0
      %p282 = por %p280, %p281
      %p283 = scmp.ne.s32.totalorder %s275, %s277
      %p284 = scmp.eq.s32.totalorder %s36, 1
      %p285 = por %p283, %p284
      %p286 = scmp.ne.s32.totalorder %s277, %s278
      %p287 = scmp.eq.s32.totalorder %s36, 0
      %p288 = por %p286, %p287
      %p289 = scmp.ne.s32.totalorder %s277, %s278
      %p290 = scmp.eq.s32.totalorder %s37, 1
      %p291 = por %p289, %p290
      %p293 = scmp.ne.s32.totalorder %s278, %s292
      %p294 = scmp.eq.s32.totalorder %s37, 0
      %p295 = por %p293, %p294
      %s297 = sadd.s32 %s296, 1
      %p300 = scmp.eq.s32.totalorder %s31, 1
      %p301 = scmp.ne.s32.totalorder %s296, %s298
      %p302 = scmp.eq.s32.totalorder %s31, 0
      %p303 = por %p301, %p302
      %p304 = scmp.ne.s32.totalorder %s296, %s298
      %p305 = scmp.eq.s32.totalorder %s36, 1
      %p306 = por %p304, %p305
      %p307 = scmp.ne.s32.totalorder %s298, %s299
      %p308 = scmp.eq.s32.totalorder %s36, 0
      %p309 = por %p307, %p308
      %p310 = scmp.ne.s32.totalorder %s298, %s299
      %p311 = scmp.eq.s32.totalorder %s37, 1
      %p312 = por %p310, %p311
      %p314 = scmp.ne.s32.totalorder %s299, %s313
      %p315 = scmp.eq.s32.totalorder %s37, 0
      %p316 = por %p314, %p315
      %s318 = sadd.s32 %s317, 1
      %p321 = scmp.eq.s32.totalorder %s31, 1
      %p322 = scmp.ne.s32.totalorder %s317, %s319
      %p323 = scmp.eq.s32.totalorder %s31, 0
      %p324 = por %p322, %p323
      %p325 = scmp.ne.s32.totalorder %s317, %s319
      %p326 = scmp.eq.s32.totalorder %s36, 1
      %p327 = por %p325, %p326
      %p328 = scmp.ne.s32.totalorder %s319, %s320
      %p329 = scmp.eq.s32.totalorder %s36, 0
      %p330 = por %p328, %p329
      %p331 = scmp.ne.s32.totalorder %s319, %s320
      %p332 = scmp.eq.s32.totalorder %s37, 1
      %p333 = por %p331, %p332
      %p335 = scmp.ne.s32.totalorder %s320, %s334
      %p336 = scmp.eq.s32.totalorder %s37, 0
      %p337 = por %p335, %p336
      %s339 = sadd.s32 %s338, 1
      %p342 = scmp.eq.s32.totalorder %s31, 1
      %p343 = scmp.ne.s32.totalorder %s338, %s340
      %p344 = scmp.eq.s32.totalorder %s31, 0
      %p345 = por %p343, %p344
      %p346 = scmp.ne.s32.totalorder %s338, %s340
      %p347 = scmp.eq.s32.totalorder %s36, 1
      %p348 = por %p346, %p347
      %p349 = scmp.ne.s32.totalorder %s340, %s341
      %p350 = scmp.eq.s32.totalorder %s36, 0
      %p351 = por %p349, %p350
      %p352 = scmp.ne.s32.totalorder %s340, %s341
      %p353 = scmp.eq.s32.totalorder %s37, 1
      %p354 = por %p352, %p353
      %p356 = scmp.ne.s32.totalorder %s341, %s355
      %p357 = scmp.eq.s32.totalorder %s37, 0
      %p358 = por %p356, %p357
      %s360 = sadd.s32 %s359, 1
      %p363 = scmp.eq.s32.totalorder %s31, 1
      %p364 = scmp.ne.s32.totalorder %s359, %s361
      %p365 = scmp.eq.s32.totalorder %s31, 0
      %p366 = por %p364, %p365
      %p367 = scmp.ne.s32.totalorder %s359, %s361
      %p368 = scmp.eq.s32.totalorder %s36, 1
      %p369 = por %p367, %p368
      %p370 = scmp.ne.s32.totalorder %s361, %s362
      %p371 = scmp.eq.s32.totalorder %s36, 0
      %p372 = por %p370, %p371
      %p373 = scmp.ne.s32.totalorder %s361, %s362
      %p374 = scmp.eq.s32.totalorder %s37, 1
      %p375 = por %p373, %p374
      %p377 = scmp.ne.s32.totalorder %s362, %s376
      %p378 = scmp.eq.s32.totalorder %s37, 0
      %p379 = por %p377, %p378
      %s381 = sadd.s32 %s380, 1
      %p384 = scmp.eq.s32.totalorder %s31, 1
      %p385 = scmp.ne.s32.totalorder %s380, %s382
      %p386 = scmp.eq.s32.totalorder %s31, 0
      %p387 = por %p385, %p386
      %p388 = scmp.ne.s32.totalorder %s380, %s382
      %p389 = scmp.eq.s32.totalorder %s36, 1
      %p390 = por %p388, %p389
      %p391 = scmp.ne.s32.totalorder %s382, %s383
      %p392 = scmp.eq.s32.totalorder %s36, 0
      %p393 = por %p391, %p392
      %p394 = scmp.ne.s32.totalorder %s382, %s383
      %p395 = scmp.eq.s32.totalorder %s37, 1
      %p396 = por %p394, %p395
      %p398 = scmp.ne.s32.totalorder %s383, %s397
      %p399 = scmp.eq.s32.totalorder %s37, 0
      %p400 = por %p398, %p399
      %s402 = sadd.s32 %s401, 1
      %p405 = scmp.eq.s32.totalorder %s31, 1
      %p406 = scmp.ne.s32.totalorder %s401, %s403
      %p407 = scmp.eq.s32.totalorder %s31, 0
      %p408 = por %p406, %p407
      %p409 = scmp.ne.s32.totalorder %s401, %s403
      %p410 = scmp.eq.s32.totalorder %s36, 1
      %p411 = por %p409, %p410
      %p412 = scmp.ne.s32.totalorder %s403, %s404
      %p413 = scmp.eq.s32.totalorder %s36, 0
      %p414 = por %p412, %p413
      %p415 = scmp.ne.s32.totalorder %s403, %s404
      %p416 = scmp.eq.s32.totalorder %s37, 1
      %p417 = por %p415, %p416
      %p419 = scmp.ne.s32.totalorder %s404, %s418
      %p420 = scmp.eq.s32.totalorder %s37, 0
      %p421 = por %p419, %p420
      %s423 = sadd.s32 %s422, 1
      %p426 = scmp.eq.s32.totalorder %s31, 1
      %p427 = scmp.ne.s32.totalorder %s422, %s424
      %p428 = scmp.eq.s32.totalorder %s31, 0
      %p429 = por %p427, %p428
      %p430 = scmp.ne.s32.totalorder %s422, %s424
      %p431 = scmp.eq.s32.totalorder %s36, 1
      %p432 = por %p430, %p431
      %p433 = scmp.ne.s32.totalorder %s424, %s425
      %p434 = scmp.eq.s32.totalorder %s36, 0
      %p435 = por %p433, %p434
      %p436 = scmp.ne.s32.totalorder %s424, %s425
      %p437 = scmp.eq.s32.totalorder %s37, 1
      %p438 = por %p436, %p437
      %p440 = scmp.ne.s32.totalorder %s425, %s439
      %p441 = scmp.eq.s32.totalorder %s37, 0
      %p442 = por %p440, %p441
      %s444 = sadd.s32 %s443, 1
      %p447 = scmp.eq.s32.totalorder %s31, 1
      %p448 = scmp.ne.s32.totalorder %s443, %s445
      %p449 = scmp.eq.s32.totalorder %s31, 0
      %p450 = por %p448, %p449
      %p451 = scmp.ne.s32.totalorder %s443, %s445
      %p452 = scmp.eq.s32.totalorder %s36, 1
      %p453 = por %p451, %p452
      %p454 = scmp.ne.s32.totalorder %s445, %s446
      %p455 = scmp.eq.s32.totalorder %s36, 0
      %p456 = por %p454, %p455
      %p457 = scmp.ne.s32.totalorder %s445, %s446
      %p458 = scmp.eq.s32.totalorder %s37, 1
      %p459 = por %p457, %p458
      %p461 = scmp.ne.s32.totalorder %s446, %s460
      %p462 = scmp.eq.s32.totalorder %s37, 0
      %p463 = por %p461, %p462
      %s465 = sadd.s32 %s464, 1
      %p468 = scmp.eq.s32.totalorder %s31, 1
      %p469 = scmp.ne.s32.totalorder %s464, %s466
      %p470 = scmp.eq.s32.totalorder %s31, 0
      %p471 = por %p469, %p470
      %p472 = scmp.ne.s32.totalorder %s464, %s466
      %p473 = scmp.eq.s32.totalorder %s36, 1
      %p474 = por %p472, %p473
      %p475 = scmp.ne.s32.totalorder %s466, %s467
      %p476 = scmp.eq.s32.totalorder %s36, 0
      %p477 = por %p475, %p476
      %p478 = scmp.ne.s32.totalorder %s466, %s467
      %p479 = scmp.eq.s32.totalorder %s37, 1
      %p480 = por %p478, %p479
      %p482 = scmp.ne.s32.totalorder %s467, %s481
      %p483 = scmp.eq.s32.totalorder %s37, 0
      %p484 = por %p482, %p483
      %s485 = ssub.s32 %s31, %s38
      %p486 = scmp.eq.s32.totalorder %s485, 0
      %s488 = sadd.s32 %s487, 1
      %s489 = scalar_select %p486, %s487, %s488
      %p492 = pneg %p486
      %p493 = scmp.eq.s32.totalorder %s31, 1
      %p494 = por %p492, %p493
      %p495 = scmp.ne.s32.totalorder %s487, %s490
      %p496 = scmp.eq.s32.totalorder %s31, 0
      %p497 = por %p495, %p496
      %p498 = scmp.ne.s32.totalorder %s487, %s490
      %p499 = scmp.eq.s32.totalorder %s36, 1
      %p500 = por %p498, %p499
      %p501 = scmp.ne.s32.totalorder %s490, %s491
      %p502 = scmp.eq.s32.totalorder %s36, 0
      %p503 = por %p501, %p502
      %p504 = scmp.ne.s32.totalorder %s490, %s491
      %p505 = scmp.eq.s32.totalorder %s37, 1
      %p506 = por %p504, %p505
      %p508 = scmp.ne.s32.totalorder %s491, %s507
      %p509 = scmp.eq.s32.totalorder %s37, 0
      %p510 = por %p508, %p509
      %p511 = scmp.le.s32.totalorder 1, %s31
      %p512 = scmp.lt.s32.totalorder %s31, 3
      %p513 = pnand %p511, %p512
      %p514 = pneg %p513
      // Predicated region
      $region9: #{tpu_custom_call.1} parent=5 // pred_check
        _
      $region10: #{tpu_custom_call.1} parent=5 // pred_check_branch
        %516 = sbr.rel (%p513) target = $region12
      $region11: #{tpu_custom_call.1} parent=5 // pred_region
        %s517 = ssub.s32 %s31, 1
        // Predicated region
        $region13: #{tpu_custom_call.1} parent=11 // pred_check
          %p518 = pneg %p52
        $region14: #{tpu_custom_call.1} parent=11 // pred_check_branch
          %520 = sbr.rel (%p518) target = $region16
        $region15: #{tpu_custom_call.1} parent=11 // pred_region
          %s522 = ssub.s32 16, 16
          %523 = vsyncadd [#allocation5], %s522
          %s525 = sshll.u32 %s0, 4
          %s526 = int_to_ptr.vmem [resolvable:$true] %s525
          %528 = dma.vmem_to_smem %s526, 16, [#allocation3], [#allocation5]
        $region16: #{tpu_custom_call.1} parent=11 // pred_fallthru
          _
        // Predicated region
        $region17: #{tpu_custom_call.1} parent=11 // pred_check
          %p529 = pneg %p99
        $region18: #{tpu_custom_call.1} parent=11 // pred_check_branch
          %531 = sbr.rel (%p529) target = $region20
        $region19: #{tpu_custom_call.1} parent=11 // pred_region
          _
        $region20: #{tpu_custom_call.1} parent=11 // pred_fallthru
          _
        // Predicated region
        $region21: #{tpu_custom_call.1} parent=11 // pred_check
          %p532 = pneg %p120
        $region22: #{tpu_custom_call.1} parent=11 // pred_check_branch
          %534 = sbr.rel (%p532) target = $region24
        $region23: #{tpu_custom_call.1} parent=11 // pred_region
          _
        $region24: #{tpu_custom_call.1} parent=11 // pred_fallthru
          _
        // Predicated region
        $region25: #{tpu_custom_call.1} parent=11 // pred_check
          %p535 = pneg %p141
        $region26: #{tpu_custom_call.1} parent=11 // pred_check_branch
          %537 = sbr.rel (%p535) target = $region28
        $region27: #{tpu_custom_call.1} parent=11 // pred_region
          _
        $region28: #{tpu_custom_call.1} parent=11 // pred_fallthru
          _
        // Predicated region
        $region29: #{tpu_custom_call.1} parent=11 // pred_check
          %p538 = pneg %p162
        $region30: #{tpu_custom_call.1} parent=11 // pred_check_branch
          %540 = sbr.rel (%p538) target = $region32
        $region31: #{tpu_custom_call.1} parent=11 // pred_region
          _
        $region32: #{tpu_custom_call.1} parent=11 // pred_fallthru
          _
        // Predicated region
        $region33: #{tpu_custom_call.1} parent=11 // pred_check
          %p541 = pneg %p183
        $region34: #{tpu_custom_call.1} parent=11 // pred_check_branch
          %543 = sbr.rel (%p541) target = $region36
        $region35: #{tpu_custom_call.1} parent=11 // pred_region
          _
        $region36: #{tpu_custom_call.1} parent=11 // pred_fallthru
          _
        // Predicated region
        $region37: #{tpu_custom_call.1} parent=11 // pred_check
          %p544 = pneg %p204
        $region38: #{tpu_custom_call.1} parent=11 // pred_check_branch
          %546 = sbr.rel (%p544) target = $region40
        $region39: #{tpu_custom_call.1} parent=11 // pred_region
          _
        $region40: #{tpu_custom_call.1} parent=11 // pred_fallthru
          _
        // Predicated region
        $region41: #{tpu_custom_call.1} parent=11 // pred_check
          %p547 = pneg %p225
        $region42: #{tpu_custom_call.1} parent=11 // pred_check_branch
          %549 = sbr.rel (%p547) target = $region44
        $region43: #{tpu_custom_call.1} parent=11 // pred_region
          _
        $region44: #{tpu_custom_call.1} parent=11 // pred_fallthru
          _
        // Predicated region
        $region45: #{tpu_custom_call.1} parent=11 // pred_check
          %p550 = pneg %p246
        $region46: #{tpu_custom_call.1} parent=11 // pred_check_branch
          %552 = sbr.rel (%p550) target = $region48
        $region47: #{tpu_custom_call.1} parent=11 // pred_region
          _
        $region48: #{tpu_custom_call.1} parent=11 // pred_fallthru
          _
        // Predicated region
        $region49: #{tpu_custom_call.1} parent=11 // pred_check
          %p553 = pneg %p267
        $region50: #{tpu_custom_call.1} parent=11 // pred_check_branch
          %555 = sbr.rel (%p553) target = $region52
        $region51: #{tpu_custom_call.1} parent=11 // pred_region
          _
        $region52: #{tpu_custom_call.1} parent=11 // pred_fallthru
          _
        // Predicated region
        $region53: #{tpu_custom_call.1} parent=11 // pred_check
          %p556 = pneg %p288
        $region54: #{tpu_custom_call.1} parent=11 // pred_check_branch
          %558 = sbr.rel (%p556) target = $region56
        $region55: #{tpu_custom_call.1} parent=11 // pred_region
          _
        $region56: #{tpu_custom_call.1} parent=11 // pred_fallthru
          _
        // Predicated region
        $region57: #{tpu_custom_call.1} parent=11 // pred_check
          %p559 = pneg %p309
        $region58: #{tpu_custom_call.1} parent=11 // pred_check_branch
          %561 = sbr.rel (%p559) target = $region60
        $region59: #{tpu_custom_call.1} parent=11 // pred_region
          _
        $region60: #{tpu_custom_call.1} parent=11 // pred_fallthru
          _
        // Predicated region
        $region61: #{tpu_custom_call.1} parent=11 // pred_check
          %p562 = pneg %p330
        $region62: #{tpu_custom_call.1} parent=11 // pred_check_branch
          %564 = sbr.rel (%p562) target = $region64
        $region63: #{tpu_custom_call.1} parent=11 // pred_region
          _
        $region64: #{tpu_custom_call.1} parent=11 // pred_fallthru
          _
        // Predicated region
        $region65: #{tpu_custom_call.1} parent=11 // pred_check
          %p565 = pneg %p351
        $region66: #{tpu_custom_call.1} parent=11 // pred_check_branch
          %567 = sbr.rel (%p565) target = $region68
        $region67: #{tpu_custom_call.1} parent=11 // pred_region
          _
        $region68: #{tpu_custom_call.1} parent=11 // pred_fallthru
          _
        // Predicated region
        $region69: #{tpu_custom_call.1} parent=11 // pred_check
          %p568 = pneg %p372
        $region70: #{tpu_custom_call.1} parent=11 // pred_check_branch
          %570 = sbr.rel (%p568) target = $region72
        $region71: #{tpu_custom_call.1} parent=11 // pred_region
          _
        $region72: #{tpu_custom_call.1} parent=11 // pred_fallthru
          _
        // Predicated region
        $region73: #{tpu_custom_call.1} parent=11 // pred_check
          %p571 = pneg %p393
        $region74: #{tpu_custom_call.1} parent=11 // pred_check_branch
          %573 = sbr.rel (%p571) target = $region76
        $region75: #{tpu_custom_call.1} parent=11 // pred_region
          _
        $region76: #{tpu_custom_call.1} parent=11 // pred_fallthru
          _
        // Predicated region
        $region77: #{tpu_custom_call.1} parent=11 // pred_check
          %p574 = pneg %p414
        $region78: #{tpu_custom_call.1} parent=11 // pred_check_branch
          %576 = sbr.rel (%p574) target = $region80
        $region79: #{tpu_custom_call.1} parent=11 // pred_region
          _
        $region80: #{tpu_custom_call.1} parent=11 // pred_fallthru
          _
        // Predicated region
        $region81: #{tpu_custom_call.1} parent=11 // pred_check
          %p577 = pneg %p435
        $region82: #{tpu_custom_call.1} parent=11 // pred_check_branch
          %579 = sbr.rel (%p577) target = $region84
        $region83: #{tpu_custom_call.1} parent=11 // pred_region
          _
        $region84: #{tpu_custom_call.1} parent=11 // pred_fallthru
          _
        // Predicated region
        $region85: #{tpu_custom_call.1} parent=11 // pred_check
          %p580 = pneg %p456
        $region86: #{tpu_custom_call.1} parent=11 // pred_check_branch
          %582 = sbr.rel (%p580) target = $region88
        $region87: #{tpu_custom_call.1} parent=11 // pred_region
          _
        $region88: #{tpu_custom_call.1} parent=11 // pred_fallthru
          _
        // Predicated region
        $region89: #{tpu_custom_call.1} parent=11 // pred_check
          %p583 = pneg %p477
        $region90: #{tpu_custom_call.1} parent=11 // pred_check_branch
          %585 = sbr.rel (%p583) target = $region92
        $region91: #{tpu_custom_call.1} parent=11 // pred_region
          _
        $region92: #{tpu_custom_call.1} parent=11 // pred_fallthru
          _
      $region12: #{tpu_custom_call.1} parent=5 // pred_fallthru
        _
      %p586 = scmp.lt.s32.totalorder %s31, 2
      // Predicated region
      $region93: #{tpu_custom_call.1} parent=5 // pred_check
        %p587 = pneg %p586
      $region94: #{tpu_custom_call.1} parent=5 // pred_check_branch
        %589 = sbr.rel (%p587) target = $region96
      $region95: #{tpu_custom_call.1} parent=5 // pred_region
        // Predicated region
        $region97: #{tpu_custom_call.1} parent=95 // pred_check
          %p590 = pneg %p72
        $region98: #{tpu_custom_call.1} parent=95 // pred_check_branch
          %592 = sbr.rel (%p590) target = $region100
        $region99: #{tpu_custom_call.1} parent=95 // pred_region
          %p593 = scmp.lt.s32.totalorder %s31, 1
          %s594 = scalar_select %p593, %s31, 1
          %s595 = smul.addr %s594, 8
          %s596 = scalar_lea.vmem %s1, %s595
        $region100: #{tpu_custom_call.1} parent=95 // pred_fallthru
          _
      $region96: #{tpu_custom_call.1} parent=5 // pred_fallthru
        _
      %p597 = scmp.le.s32.totalorder 1, %s31
      %p598 = scmp.lt.s32.totalorder %s31, 3
      %p599 = pnand %p597, %p598
      %p600 = pneg %p599
      // Predicated region
      $region101: #{tpu_custom_call.1} parent=5 // pred_check
        _
      $region102: #{tpu_custom_call.1} parent=5 // pred_check_branch
        %602 = sbr.rel (%p599) target = $region104
      $region103: #{tpu_custom_call.1} parent=5 // pred_region
        %s603 = ssub.s32 %s31, 1
        // Predicated region
        $region105: #{tpu_custom_call.1} parent=103 // pred_check
          %p604 = pneg %p52
        $region106: #{tpu_custom_call.1} parent=103 // pred_check_branch
          %606 = sbr.rel (%p604) target = $region108
        $region107: #{tpu_custom_call.1} parent=103 // pred_region
          %607 = dma.done [#allocation5], 16
        $region108: #{tpu_custom_call.1} parent=103 // pred_fallthru
          _
        %608 = sfence
        %p609 = pneg %p52
        %p610 = pneg %p49
        %p611 = scmp.lt.s32.totalorder %s36, 1
        %s612 = scalar_select %p611, %s36, 1
        %s613 = smul.addr %s612, 8
        %s614 = scalar_lea.vmem %s1, %s613
        %p615 = pneg %p78
        %p616 = pneg %p75
        %p617 = pneg %p99
        %p618 = pneg %p96
        %p619 = pneg %p120
        %p620 = pneg %p117
        %p621 = pneg %p141
        %p622 = pneg %p138
        %p623 = pneg %p162
        %p624 = pneg %p159
        %p625 = pneg %p183
        %p626 = pneg %p180
        %p627 = pneg %p204
        %p628 = pneg %p201
        %p629 = pneg %p225
        %p630 = pneg %p222
        %p631 = pneg %p246
        %p632 = pneg %p243
        %p633 = pneg %p267
        %p634 = pneg %p264
        %p635 = pneg %p288
        %p636 = pneg %p285
        %p637 = pneg %p309
        %p638 = pneg %p306
        %p639 = pneg %p330
        %p640 = pneg %p327
        %p641 = pneg %p351
        %p642 = pneg %p348
        %p643 = pneg %p372
        %p644 = pneg %p369
        %p645 = pneg %p393
        %p646 = pneg %p390
        %p647 = pneg %p414
        %p648 = pneg %p411
        %p649 = pneg %p435
        %p650 = pneg %p432
        %p651 = pneg %p456
        %p652 = pneg %p453
        %p653 = pneg %p477
        %p654 = pneg %p474
        %p655 = pneg %p503
        %p656 = pneg %p500
        %s657 = sand.u32 %s490, 1
        %s658 = scalar_lea.sflag [#allocation4], %s657
        %s659 = sand.u32 %s490, 1
        %s660 = scalar_lea.vmem [#allocation6], %s659
        %p661 = scmp.lt.s32.totalorder %s36, 1
        %s662 = scalar_select %p661, %s36, 1
        %s663 = smul.addr %s662, 8
        %s664 = scalar_lea.vmem %s1, %s663
        %v665 = vld [vmem:[%s664] sm:$0xff]
        %v666 = vld [vmem:[%s2] sm:$0xff]
        %v667 = vld [vmem:[%s2 + $0x8] sm:$0xff]
        %v669 = vrot.slane %v665, 1
        %vm670 = vcmask 64512
        %v671 = vsel %vm670, %v669, 0
        %673 = vmatprep.subr.mxu0 0.0
        %674 = vmatpush1.msra.mxu0 %v667
        %675 = vmatprep.subr.mxu0 0.0
        %676 = vmatpush1.msra.mxu0 0.0
        %677 = vmatprep.subr.mxu0 0.0
        %678 = vmatpush1.msra.mxu0 0.0
        %679 = vmatprep.subr.mxu0 0.0
        %680 = vmatpush1.msra.mxu0 0.0
        %681 = vmatprep.subr.mxu0 0.0
        %682 = vmatpush1.msra.mxu0 0.0
        %683 = vmatprep.subr.mxu0 0.0
        %684 = vmatpush1.msra.mxu0 0.0
        %685 = vmatprep.subr.mxu0 0.0
        %686 = vmatpush1.msra.mxu0 0.0
        %687 = vmatprep.subr.mxu0 0.0
        %688 = vmatpush1.msra.mxu0 0.0
        %689 = vmatprep.subr.mxu0 0.0
        %690 = vmatpush1.msra.mxu0 0.0
        %691 = vmatprep.subr.mxu0 0.0
        %692 = vmatpush1.msra.mxu0 0.0
        %693 = vmatprep.subr.mxu0 0.0
        %694 = vmatpush1.msra.mxu0 0.0
        %695 = vmatprep.subr.mxu0 0.0
        %696 = vmatpush1.msra.mxu0 0.0
        %697 = vmatprep.subr.mxu0 0.0
        %698 = vmatpush1.msra.mxu0 0.0
        %699 = vmatprep.subr.mxu0 0.0
        %700 = vmatpush1.msra.mxu0 0.0
        %701 = vmatprep.subr.mxu0 0.0
        %702 = vmatpush1.msra.mxu0 0.0
        %703 = vmatprep.subr.mxu0 0.0
        %704 = vmatpush1.msra.mxu0 0.0
        %705 = vmatprep.subr.mxu0 0.0
        %706 = vmatpush1.msra.mxu0 0.0
        %707 = vmatprep.subr.mxu0 0.0
        %708 = vmatpush1.msra.mxu0 0.0
        %709 = vmatprep.subr.mxu0 0.0
        %710 = vmatpush1.msra.mxu0 0.0
        %711 = vmatprep.subr.mxu0 0.0
        %712 = vmatpush1.msra.mxu0 0.0
        %713 = vmatprep.subr.mxu0 0.0
        %714 = vmatpush1.msra.mxu0 0.0
        %715 = vmatprep.subr.mxu0 0.0
        %716 = vmatpush1.msra.mxu0 0.0
        %717 = vmatprep.subr.mxu0 0.0
        %718 = vmatpush1.msra.mxu0 0.0
        %719 = vmatprep.subr.mxu0 0.0
        %720 = vmatpush1.msra.mxu0 0.0
        %721 = vmatprep.subr.mxu0 0.0
        %722 = vmatpush1.msra.mxu0 0.0
        %723 = vmatprep.subr.mxu0 0.0
        %724 = vmatpush1.msra.mxu0 0.0
        %725 = vmatprep.subr.mxu0 0.0
        %726 = vmatpush1.msra.mxu0 0.0
        %727 = vmatprep.subr.mxu0 0.0
        %728 = vmatpush1.msra.mxu0 0.0
        %729 = vmatprep.subr.mxu0 0.0
        %730 = vmatpush1.msra.mxu0 0.0
        %731 = vmatprep.subr.mxu0 0.0
        %732 = vmatpush1.msra.mxu0 0.0
        %733 = vmatprep.subr.mxu0 0.0
        %734 = vmatpush1.msra.mxu0 0.0
        %735 = vmatprep.subr.mxu0 0.0
        %736 = vmatpush1.msra.mxu0 0.0
        %737 = vmatprep.mubr.f32.mxu0 0.0
        %738 = vmatmul.mubr.f32.gmra.mrb[0].mxu0 %v671
        %v739 = vpop.f32.mrb[0].mxu0
        %v740 = vadd.f32 0.0, %v739
        %v741 = vpop.f32.mrb[0].mxu0
        %742 = vdwg.mxu0
        %v743 = vsel %vm670, %v665, 0
        %745 = vmatprep.subr.mxu0 0.0
        %746 = vmatpush1.msra.mxu0 %v666
        %747 = vmatprep.subr.mxu0 0.0
        %748 = vmatpush1.msra.mxu0 0.0
        %749 = vmatprep.subr.mxu0 0.0
        %750 = vmatpush1.msra.mxu0 0.0
        %751 = vmatprep.subr.mxu0 0.0
        %752 = vmatpush1.msra.mxu0 0.0
        %753 = vmatprep.subr.mxu0 0.0
        %754 = vmatpush1.msra.mxu0 0.0
        %755 = vmatprep.subr.mxu0 0.0
        %756 = vmatpush1.msra.mxu0 0.0
        %757 = vmatprep.subr.mxu0 0.0
        %758 = vmatpush1.msra.mxu0 0.0
        %759 = vmatprep.subr.mxu0 0.0
        %760 = vmatpush1.msra.mxu0 0.0
        %761 = vmatprep.subr.mxu0 0.0
        %762 = vmatpush1.msra.mxu0 0.0
        %763 = vmatprep.subr.mxu0 0.0
        %764 = vmatpush1.msra.mxu0 0.0
        %765 = vmatprep.subr.mxu0 0.0
        %766 = vmatpush1.msra.mxu0 0.0
        %767 = vmatprep.subr.mxu0 0.0
        %768 = vmatpush1.msra.mxu0 0.0
        %769 = vmatprep.subr.mxu0 0.0
        %770 = vmatpush1.msra.mxu0 0.0
        %771 = vmatprep.subr.mxu0 0.0
        %772 = vmatpush1.msra.mxu0 0.0
        %773 = vmatprep.subr.mxu0 0.0
        %774 = vmatpush1.msra.mxu0 0.0
        %775 = vmatprep.subr.mxu0 0.0
        %776 = vmatpush1.msra.mxu0 0.0
        %777 = vmatprep.subr.mxu0 0.0
        %778 = vmatpush1.msra.mxu0 0.0
        %779 = vmatprep.subr.mxu0 0.0
        %780 = vmatpush1.msra.mxu0 0.0
        %781 = vmatprep.subr.mxu0 0.0
        %782 = vmatpush1.msra.mxu0 0.0
        %783 = vmatprep.subr.mxu0 0.0
        %784 = vmatpush1.msra.mxu0 0.0
        %785 = vmatprep.subr.mxu0 0.0
        %786 = vmatpush1.msra.mxu0 0.0
        %787 = vmatprep.subr.mxu0 0.0
        %788 = vmatpush1.msra.mxu0 0.0
        %789 = vmatprep.subr.mxu0 0.0
        %790 = vmatpush1.msra.mxu0 0.0
        %791 = vmatprep.subr.mxu0 0.0
        %792 = vmatpush1.msra.mxu0 0.0
        %793 = vmatprep.subr.mxu0 0.0
        %794 = vmatpush1.msra.mxu0 0.0
        %795 = vmatprep.subr.mxu0 0.0
        %796 = vmatpush1.msra.mxu0 0.0
        %797 = vmatprep.subr.mxu0 0.0
        %798 = vmatpush1.msra.mxu0 0.0
        %799 = vmatprep.subr.mxu0 0.0
        %800 = vmatpush1.msra.mxu0 0.0
        %801 = vmatprep.subr.mxu0 0.0
        %802 = vmatpush1.msra.mxu0 0.0
        %803 = vmatprep.subr.mxu0 0.0
        %804 = vmatpush1.msra.mxu0 0.0
        %805 = vmatprep.subr.mxu0 0.0
        %806 = vmatpush1.msra.mxu0 0.0
        %807 = vmatprep.subr.mxu0 0.0
        %808 = vmatpush1.msra.mxu0 0.0
        %809 = vmatprep.mubr.f32.mxu0 0.0
        %810 = vmatmul.mubr.f32.gmra.mrb[0].mxu0 %v743
        %v811 = vpop.f32.mrb[0].mxu0
        %v812 = vadd.f32 %v740, %v811
        %v813 = vpop.f32.mrb[0].mxu0
        %814 = vdwg.mxu0
        %v815 = vld [vmem:[%s3] sm:$0x1]
        %v817 = vlaneseq
        %v818 = vshrl.u32 %v817, 7
        %v819 = vsub.s32 0, %v818
        %v820 = vrot.slane %v815, %v819
        %v822 = vadd.f32 %v812, %v820
        %v823 = vmax.f32 %v822, 0.0
        %vm824 = vcmask 260096
        %v825 = vsel %vm824, %v823, 0.0
        %826 = vadd.xlane.f32.xlu0 %v825
        %v827 = vpop.xlane.xlu0 %826
        %v828 = vmul.f32 %v827, 0.03125
        %v829 = vmul.f32 %v823, %v823
        %v830 = vsel %vm824, %v829, 0.0
        %831 = vadd.xlane.f32.xlu0 %v830
        %v832 = vpop.xlane.xlu0 %831
        %v833 = vmul.f32 %v832, 0.03125
        %v834 = vmul.f32 %v828, %v828
        %v835 = vsub.f32 %v833, %v834
        %v836 = vmax.f32 %v835, 0.0
        %v837 = vld [vmem:[%s4] sm:$0x1]
        %v838 = vsub.f32 %v823, %v828
        %v840 = vlaneseq
        %v841 = vshrl.u32 %v840, 7
        %v842 = vsub.s32 0, %v841
        %v843 = vrot.slane %v837, %v842
        %v845 = vmul.f32 %v843, %v838
        %v846 = vadd.f32 %v836, 1e-08
        %v847 = vrsqrt.pop %v846
        %v848 = vmul.f32 %v845, %v847
        %v849 = vld [vmem:[%s5] sm:$0x1]
        %v851 = vlaneseq
        %v852 = vshrl.u32 %v851, 7
        %v853 = vsub.s32 0, %v852
        %v854 = vrot.slane %v849, %v853
        %v856 = vadd.f32 %v848, %v854
        %v857 = vld [vmem:[%s6] sm:$0xff]
        %v858 = vld [vmem:[%s6 + $0x8] sm:$0xff]
        %v859 = vld [vmem:[%s6 + $0x10] sm:$0xff]
        %v860 = vld [vmem:[%s6 + $0x18] sm:$0xff]
        %v861 = vld [vmem:[%s7] sm:$0x1]
        %v863 = vlaneseq
        %v864 = vshrl.u32 %v863, 7
        %v865 = vsub.s32 0, %v864
        %v866 = vrot.slane %v861, %v865
        %vm868 = vcmask 261120
        %v870 = vsel %vm868, %v856, 0
        %872 = vmatprep.subr.mxu0 0.0
        %873 = vmatpush1.msra.mxu0 %v857
        %874 = vmatprep.subr.mxu0 0.0
        %875 = vmatpush1.msra.mxu0 %v858
        %876 = vmatprep.subr.mxu0 0.0
        %877 = vmatpush1.msra.mxu0 %v859
        %878 = vmatprep.subr.mxu0 0.0
        %879 = vmatpush1.msra.mxu0 %v860
        %880 = vmatprep.subr.mxu0 0.0
        %881 = vmatpush1.msra.mxu0 0.0
        %882 = vmatprep.subr.mxu0 0.0
        %883 = vmatpush1.msra.mxu0 0.0
        %884 = vmatprep.subr.mxu0 0.0
        %885 = vmatpush1.msra.mxu0 0.0
        %886 = vmatprep.subr.mxu0 0.0
        %887 = vmatpush1.msra.mxu0 0.0
        %888 = vmatprep.subr.mxu0 0.0
        %889 = vmatpush1.msra.mxu0 0.0
        %890 = vmatprep.subr.mxu0 0.0
        %891 = vmatpush1.msra.mxu0 0.0
        %892 = vmatprep.subr.mxu0 0.0
        %893 = vmatpush1.msra.mxu0 0.0
        %894 = vmatprep.subr.mxu0 0.0
        %895 = vmatpush1.msra.mxu0 0.0
        %896 = vmatprep.subr.mxu0 0.0
        %897 = vmatpush1.msra.mxu0 0.0
        %898 = vmatprep.subr.mxu0 0.0
        %899 = vmatpush1.msra.mxu0 0.0
        %900 = vmatprep.subr.mxu0 0.0
        %901 = vmatpush1.msra.mxu0 0.0
        %902 = vmatprep.subr.mxu0 0.0
        %903 = vmatpush1.msra.mxu0 0.0
        %904 = vmatprep.subr.mxu0 0.0
        %905 = vmatpush1.msra.mxu0 0.0
        %906 = vmatprep.subr.mxu0 0.0
        %907 = vmatpush1.msra.mxu0 0.0
        %908 = vmatprep.subr.mxu0 0.0
        %909 = vmatpush1.msra.mxu0 0.0
        %910 = vmatprep.subr.mxu0 0.0
        %911 = vmatpush1.msra.mxu0 0.0
        %912 = vmatprep.subr.mxu0 0.0
        %913 = vmatpush1.msra.mxu0 0.0
        %914 = vmatprep.subr.mxu0 0.0
        %915 = vmatpush1.msra.mxu0 0.0
        %916 = vmatprep.subr.mxu0 0.0
        %917 = vmatpush1.msra.mxu0 0.0
        %918 = vmatprep.subr.mxu0 0.0
        %919 = vmatpush1.msra.mxu0 0.0
        %920 = vmatprep.subr.mxu0 0.0
        %921 = vmatpush1.msra.mxu0 0.0
        %922 = vmatprep.subr.mxu0 0.0
        %923 = vmatpush1.msra.mxu0 0.0
        %924 = vmatprep.subr.mxu0 0.0
        %925 = vmatpush1.msra.mxu0 0.0
        %926 = vmatprep.subr.mxu0 0.0
        %927 = vmatpush1.msra.mxu0 0.0
        %928 = vmatprep.subr.mxu0 0.0
        %929 = vmatpush1.msra.mxu0 0.0
        %930 = vmatprep.subr.mxu0 0.0
        %931 = vmatpush1.msra.mxu0 0.0
        %932 = vmatprep.subr.mxu0 0.0
        %933 = vmatpush1.msra.mxu0 0.0
        %934 = vmatprep.subr.mxu0 0.0
        %935 = vmatpush1.msra.mxu0 0.0
        %936 = vmatprep.mubr.f32.mxu0 0.0
        %937 = vmatmul.mubr.f32.gmra.mrb[0].mxu0 %v870
        %v938 = vpop.f32.mrb[0].mxu0
        %v939 = vadd.f32 %v866, %v938
        %v940 = vpop.f32.mrb[0].mxu0
        %941 = vdwg.mxu0
        %942 = vst.msk [vmem:[#allocation2] sm:$0xff] %vm868, 0.0
        %vm943 = vcmask 256000
        %944 = vst.msk [vmem:[#allocation2 + $0x8] sm:$0x7] %vm943, 0.0
        %s945 = sld [smem:[#allocation3]]
        %s946 = sld [smem:[#allocation3 + $0x1]]
        %v947 = vld [vmem:[%s8] sm:$0xff]
        %v948 = vld [vmem:[%s8 + $0x8] sm:$0xff]
        %v949 = vld [vmem:[%s9] sm:$0x1]
        %v951 = vlaneseq
        %v952 = vshrl.u32 %v951, 7
        %v953 = vsub.s32 0, %v952
        %v954 = vrot.slane %v949, %v953
        %vm956 = vcmask 130048
        %v958 = vsel %vm956, %v939, 0
        %960 = vmatprep.subr.mxu0 0.0
        %961 = vmatpush1.msra.mxu0 %v947
        %962 = vmatprep.subr.mxu0 0.0
        %963 = vmatpush1.msra.mxu0 %v948
        %964 = vmatprep.subr.mxu0 0.0
        %965 = vmatpush1.msra.mxu0 0.0
        %966 = vmatprep.subr.mxu0 0.0
        %967 = vmatpush1.msra.mxu0 0.0
        %968 = vmatprep.subr.mxu0 0.0
        %969 = vmatpush1.msra.mxu0 0.0
        %970 = vmatprep.subr.mxu0 0.0
        %971 = vmatpush1.msra.mxu0 0.0
        %972 = vmatprep.subr.mxu0 0.0
        %973 = vmatpush1.msra.mxu0 0.0
        %974 = vmatprep.subr.mxu0 0.0
        %975 = vmatpush1.msra.mxu0 0.0
        %976 = vmatprep.subr.mxu0 0.0
        %977 = vmatpush1.msra.mxu0 0.0
        %978 = vmatprep.subr.mxu0 0.0
        %979 = vmatpush1.msra.mxu0 0.0
        %980 = vmatprep.subr.mxu0 0.0
        %981 = vmatpush1.msra.mxu0 0.0
        %982 = vmatprep.subr.mxu0 0.0
        %983 = vmatpush1.msra.mxu0 0.0
        %984 = vmatprep.subr.mxu0 0.0
        %985 = vmatpush1.msra.mxu0 0.0
        %986 = vmatprep.subr.mxu0 0.0
        %987 = vmatpush1.msra.mxu0 0.0
        %988 = vmatprep.subr.mxu0 0.0
        %989 = vmatpush1.msra.mxu0 0.0
        %990 = vmatprep.subr.mxu0 0.0
        %991 = vmatpush1.msra.mxu0 0.0
        %992 = vmatprep.subr.mxu0 0.0
        %993 = vmatpush1.msra.mxu0 0.0
        %994 = vmatprep.subr.mxu0 0.0
        %995 = vmatpush1.msra.mxu0 0.0
        %996 = vmatprep.subr.mxu0 0.0
        %997 = vmatpush1.msra.mxu0 0.0
        %998 = vmatprep.subr.mxu0 0.0
        %999 = vmatpush1.msra.mxu0 0.0
        %1000 = vmatprep.subr.mxu0 0.0
        %1001 = vmatpush1.msra.mxu0 0.0
        %1002 = vmatprep.subr.mxu0 0.0
        %1003 = vmatpush1.msra.mxu0 0.0
        %1004 = vmatprep.subr.mxu0 0.0
        %1005 = vmatpush1.msra.mxu0 0.0
        %1006 = vmatprep.subr.mxu0 0.0
        %1007 = vmatpush1.msra.mxu0 0.0
        %1008 = vmatprep.subr.mxu0 0.0
        %1009 = vmatpush1.msra.mxu0 0.0
        %1010 = vmatprep.subr.mxu0 0.0
        %1011 = vmatpush1.msra.mxu0 0.0
        %1012 = vmatprep.subr.mxu0 0.0
        %1013 = vmatpush1.msra.mxu0 0.0
        %1014 = vmatprep.subr.mxu0 0.0
        %1015 = vmatpush1.msra.mxu0 0.0
        %1016 = vmatprep.subr.mxu0 0.0
        %1017 = vmatpush1.msra.mxu0 0.0
        %1018 = vmatprep.subr.mxu0 0.0
        %1019 = vmatpush1.msra.mxu0 0.0
        %1020 = vmatprep.subr.mxu0 0.0
        %1021 = vmatpush1.msra.mxu0 0.0
        %1022 = vmatprep.subr.mxu0 0.0
        %1023 = vmatpush1.msra.mxu0 0.0
        %1024 = vmatprep.mubr.f32.mxu0 0.0
        %1025 = vmatmul.mubr.f32.gmra.mrb[0].mxu0 %v958
        %v1026 = vpop.f32.mrb[0].mxu0
        %v1027 = vadd.f32 %v954, %v1026
        %v1028 = vpop.f32.mrb[0].mxu0
        %1029 = vdwg.mxu0
        %vm1030 = vcmp.ge.f32.partialorder %v1027, 0.0
        %v1031 = vstv %s945
        %v1032 = vmul.f32 %v1031, %v1027
        %v1033 = vsel %vm1030, %v1027, %v1032
        %v1034 = vld [vmem:[%s10] sm:$0x1]
        %v1035 = vld [vmem:[%s11] sm:$0x1]
        %v1036 = vsel %vm824, %v1033, 0.0
        %1037 = vadd.xlane.f32.xlu0 %v1036
        %v1038 = vpop.xlane.xlu0 %1037
        %vm1039 = vcmask 1046528
        %v1040 = vsel %vm1039, %v1038, 0.0
        %v1041 = vrot.slane %v1040, 4
        %v1042 = vadd.f32 %v1040, %v1041
        %v1043 = vrot.slane %v1042, 2
        %v1044 = vadd.f32 %v1042, %v1043
        %v1045 = vrot.slane %v1044, 1
        %v1046 = vadd.f32 %v1044, %v1045
        %v1047 = vmul.f32 %v1046, 0.004464286
        %v1048 = vmul.f32 %v1033, %v1033
        %v1049 = vsel %vm824, %v1048, 0.0
        %1050 = vadd.xlane.f32.xlu0 %v1049
        %v1051 = vpop.xlane.xlu0 %1050
        %v1052 = vsel %vm1039, %v1051, 0.0
        %v1053 = vrot.slane %v1052, 4
        %v1054 = vadd.f32 %v1052, %v1053
        %v1055 = vrot.slane %v1054, 2
        %v1056 = vadd.f32 %v1054, %v1055
        %v1057 = vrot.slane %v1056, 1
        %v1058 = vadd.f32 %v1056, %v1057
        %v1059 = vmul.f32 %v1058, 0.004464286
        %v1060 = vmul.f32 %v1047, %v1047
        %v1061 = vsub.f32 %v1059, %v1060
        %v1062 = vmax.f32 %v1061, 0.0
        %v1063 = vsub.f32 %v1033, %v1047
        %v1065 = vlaneseq
        %v1066 = vshrl.u32 %v1065, 7
        %v1067 = vsub.s32 0, %v1066
        %v1068 = vrot.slane %v1034, %v1067
        %v1070 = vmul.f32 %v1068, %v1063
        %v1071 = vadd.f32 %v1062, 1e-08
        %v1072 = vrsqrt.pop %v1071
        %v1073 = vmul.f32 %v1070, %v1072
        %v1075 = vlaneseq
        %v1076 = vshrl.u32 %v1075, 7
        %v1077 = vsub.s32 0, %v1076
        %v1078 = vrot.slane %v1035, %v1077
        %v1080 = vadd.f32 %v1073, %v1078
        %1081 = vst.msk [vmem:[#allocation2 + $0x2] sm:$0x7f] %vm824, %v1080
        %v1082 = vld [vmem:[%s12] sm:$0x7]
        %v1083 = vld [vmem:[%s13] sm:$0x1]
        %v1084 = vld [vmem:[#allocation2 + $0x1] sm:$0x7f]
        %v1085 = vlaneseq
        %v1086 = vshrl.u32 %v1085, 7
        %v1087 = vsub.s32 0, %v1086
        %v1088 = vrot.slane %v1082, %v1087
        %v1089 = vmul.f32 %v1084, %v1088
        %v1091 = vlaneseq
        %v1092 = vshrl.u32 %v1091, 7
        %v1093 = vsub.s32 0, %v1092
        %v1094 = vrot.slane %v1083, %v1093
        %v1096 = vadd.f32 %v1094, %v1089
        %v1097 = vld [vmem:[#allocation2 + $0x2] sm:$0x7f]
        %v1098 = vlaneseq
        %v1099 = vshrl.u32 %v1098, 7
        %v1100 = vsub.s32 1, %v1099
        %v1101 = vrot.slane %v1082, %v1100
        %v1102 = vmul.f32 %v1097, %v1101
        %v1103 = vadd.f32 %v1096, %v1102
        %v1104 = vld [vmem:[#allocation2 + $0x3] sm:$0x7f]
        %v1105 = vlaneseq
        %v1106 = vshrl.u32 %v1105, 7
        %v1107 = vsub.s32 2, %v1106
        %v1108 = vrot.slane %v1082, %v1107
        %v1109 = vmul.f32 %v1104, %v1108
        %v1110 = vadd.f32 %v1103, %v1109
        %vm1111 = vcmp.ge.f32.partialorder %v1110, 0.0
        %v1112 = vstv %s946
        %v1113 = vmul.f32 %v1112, %v1110
        %v1114 = vsel %vm1111, %v1110, %v1113
        %v1115 = vld [vmem:[%s14] sm:$0x1]
        %v1116 = vld [vmem:[%s15] sm:$0x1]
        %v1117 = vsel %vm824, %v1114, 0.0
        %1118 = vadd.xlane.f32.xlu0 %v1117
        %v1119 = vpop.xlane.xlu0 %1118
        %v1120 = vsel %vm1039, %v1119, 0.0
        %v1121 = vrot.slane %v1120, 4
        %v1122 = vadd.f32 %v1120, %v1121
        %v1123 = vrot.slane %v1122, 2
        %v1124 = vadd.f32 %v1122, %v1123
        %v1125 = vrot.slane %v1124, 1
        %v1126 = vadd.f32 %v1124, %v1125
        %v1127 = vmul.f32 %v1126, 0.004464286
        %v1128 = vmul.f32 %v1114, %v1114
        %v1129 = vsel %vm824, %v1128, 0.0
        %1130 = vadd.xlane.f32.xlu0 %v1129
        %v1131 = vpop.xlane.xlu0 %1130
        %v1132 = vsel %vm1039, %v1131, 0.0
        %v1133 = vrot.slane %v1132, 4
        %v1134 = vadd.f32 %v1132, %v1133
        %v1135 = vrot.slane %v1134, 2
        %v1136 = vadd.f32 %v1134, %v1135
        %v1137 = vrot.slane %v1136, 1
        %v1138 = vadd.f32 %v1136, %v1137
        %v1139 = vmul.f32 %v1138, 0.004464286
        %v1140 = vmul.f32 %v1127, %v1127
        %v1141 = vsub.f32 %v1139, %v1140
        %v1142 = vmax.f32 %v1141, 0.0
        %v1143 = vsub.f32 %v1114, %v1127
        %v1145 = vlaneseq
        %v1146 = vshrl.u32 %v1145, 7
        %v1147 = vsub.s32 0, %v1146
        %v1148 = vrot.slane %v1115, %v1147
        %v1150 = vmul.f32 %v1148, %v1143
        %v1151 = vadd.f32 %v1142, 1e-08
        %v1152 = vrsqrt.pop %v1151
        %v1153 = vmul.f32 %v1150, %v1152
        %v1155 = vlaneseq
        %v1156 = vshrl.u32 %v1155, 7
        %v1157 = vsub.s32 0, %v1156
        %v1158 = vrot.slane %v1116, %v1157
        %v1160 = vadd.f32 %v1153, %v1158
        %v1161 = vld [vmem:[%s16] sm:$0xff]
        %v1162 = vld [vmem:[%s16 + $0x8] sm:$0xff]
        %v1163 = vld [vmem:[%s16 + $0x10] sm:$0xff]
        %v1164 = vld [vmem:[%s16 + $0x18] sm:$0xff]
        %v1166 = vsel %vm868, %v1160, 0
        %1168 = vmatprep.subr.mxu0 0.0
        %1169 = vmatpush1.msra.mxu0 %v1161
        %1170 = vmatprep.subr.mxu0 0.0
        %1171 = vmatpush1.msra.mxu0 %v1162
        %1172 = vmatprep.subr.mxu0 0.0
        %1173 = vmatpush1.msra.mxu0 %v1163
        %1174 = vmatprep.subr.mxu0 0.0
        %1175 = vmatpush1.msra.mxu0 %v1164
        %1176 = vmatprep.subr.mxu0 0.0
        %1177 = vmatpush1.msra.mxu0 0.0
        %1178 = vmatprep.subr.mxu0 0.0
        %1179 = vmatpush1.msra.mxu0 0.0
        %1180 = vmatprep.subr.mxu0 0.0
        %1181 = vmatpush1.msra.mxu0 0.0
        %1182 = vmatprep.subr.mxu0 0.0
        %1183 = vmatpush1.msra.mxu0 0.0
        %1184 = vmatprep.subr.mxu0 0.0
        %1185 = vmatpush1.msra.mxu0 0.0
        %1186 = vmatprep.subr.mxu0 0.0
        %1187 = vmatpush1.msra.mxu0 0.0
        %1188 = vmatprep.subr.mxu0 0.0
        %1189 = vmatpush1.msra.mxu0 0.0
        %1190 = vmatprep.subr.mxu0 0.0
        %1191 = vmatpush1.msra.mxu0 0.0
        %1192 = vmatprep.subr.mxu0 0.0
        %1193 = vmatpush1.msra.mxu0 0.0
        %1194 = vmatprep.subr.mxu0 0.0
        %1195 = vmatpush1.msra.mxu0 0.0
        %1196 = vmatprep.subr.mxu0 0.0
        %1197 = vmatpush1.msra.mxu0 0.0
        %1198 = vmatprep.subr.mxu0 0.0
        %1199 = vmatpush1.msra.mxu0 0.0
        %1200 = vmatprep.subr.mxu0 0.0
        %1201 = vmatpush1.msra.mxu0 0.0
        %1202 = vmatprep.subr.mxu0 0.0
        %1203 = vmatpush1.msra.mxu0 0.0
        %1204 = vmatprep.subr.mxu0 0.0
        %1205 = vmatpush1.msra.mxu0 0.0
        %1206 = vmatprep.subr.mxu0 0.0
        %1207 = vmatpush1.msra.mxu0 0.0
        %1208 = vmatprep.subr.mxu0 0.0
        %1209 = vmatpush1.msra.mxu0 0.0
        %1210 = vmatprep.subr.mxu0 0.0
        %1211 = vmatpush1.msra.mxu0 0.0
        %1212 = vmatprep.subr.mxu0 0.0
        %1213 = vmatpush1.msra.mxu0 0.0
        %1214 = vmatprep.subr.mxu0 0.0
        %1215 = vmatpush1.msra.mxu0 0.0
        %1216 = vmatprep.subr.mxu0 0.0
        %1217 = vmatpush1.msra.mxu0 0.0
        %1218 = vmatprep.subr.mxu0 0.0
        %1219 = vmatpush1.msra.mxu0 0.0
        %1220 = vmatprep.subr.mxu0 0.0
        %1221 = vmatpush1.msra.mxu0 0.0
        %1222 = vmatprep.subr.mxu0 0.0
        %1223 = vmatpush1.msra.mxu0 0.0
        %1224 = vmatprep.subr.mxu0 0.0
        %1225 = vmatpush1.msra.mxu0 0.0
        %1226 = vmatprep.subr.mxu0 0.0
        %1227 = vmatpush1.msra.mxu0 0.0
        %1228 = vmatprep.subr.mxu0 0.0
        %1229 = vmatpush1.msra.mxu0 0.0
        %1230 = vmatprep.subr.mxu0 0.0
        %1231 = vmatpush1.msra.mxu0 0.0
        %1232 = vmatprep.mubr.f32.mxu0 0.0
        %1233 = vmatmul.mubr.f32.gmra.mrb[0].mxu0 %v1166
        %v1234 = vpop.f32.mrb[0].mxu0
        %v1235 = vadd.f32 0.0, %v1234
        %v1236 = vpop.f32.mrb[0].mxu0
        %1237 = vdwg.mxu0
        %v1238 = vadd.f32 %v939, %v1235
        %v1239 = vld [vmem:[%s17] sm:$0x1]
        %v1241 = vlaneseq
        %v1242 = vshrl.u32 %v1241, 7
        %v1243 = vsub.s32 0, %v1242
        %v1244 = vrot.slane %v1239, %v1243
        %v1246 = vadd.f32 %v1238, %v1244
        %s1247 = sld [smem:[#allocation3 + $0x2]]
        %s1248 = sld [smem:[#allocation3 + $0x3]]
        %s1249 = scalar_lea.vmem %s8, 16
        %v1250 = vld [vmem:[%s1249] sm:$0xff]
        %v1251 = vld [vmem:[%s1249 + $0x8] sm:$0xff]
        %s1252 = scalar_lea.vmem %s9, 1
        %v1253 = vld [vmem:[%s1252] sm:$0x1]
        %v1255 = vlaneseq
        %v1256 = vshrl.u32 %v1255, 7
        %v1257 = vsub.s32 0, %v1256
        %v1258 = vrot.slane %v1253, %v1257
        %v1261 = vsel %vm956, %v1246, 0
        %1263 = vmatprep.subr.mxu0 0.0
        %1264 = vmatpush1.msra.mxu0 %v1250
        %1265 = vmatprep.subr.mxu0 0.0
        %1266 = vmatpush1.msra.mxu0 %v1251
        %1267 = vmatprep.subr.mxu0 0.0
        %1268 = vmatpush1.msra.mxu0 0.0
        %1269 = vmatprep.subr.mxu0 0.0
        %1270 = vmatpush1.msra.mxu0 0.0
        %1271 = vmatprep.subr.mxu0 0.0
        %1272 = vmatpush1.msra.mxu0 0.0
        %1273 = vmatprep.subr.mxu0 0.0
        %1274 = vmatpush1.msra.mxu0 0.0
        %1275 = vmatprep.subr.mxu0 0.0
        %1276 = vmatpush1.msra.mxu0 0.0
        %1277 = vmatprep.subr.mxu0 0.0
        %1278 = vmatpush1.msra.mxu0 0.0
        %1279 = vmatprep.subr.mxu0 0.0
        %1280 = vmatpush1.msra.mxu0 0.0
        %1281 = vmatprep.subr.mxu0 0.0
        %1282 = vmatpush1.msra.mxu0 0.0
        %1283 = vmatprep.subr.mxu0 0.0
        %1284 = vmatpush1.msra.mxu0 0.0
        %1285 = vmatprep.subr.mxu0 0.0
        %1286 = vmatpush1.msra.mxu0 0.0
        %1287 = vmatprep.subr.mxu0 0.0
        %1288 = vmatpush1.msra.mxu0 0.0
        %1289 = vmatprep.subr.mxu0 0.0
        %1290 = vmatpush1.msra.mxu0 0.0
        %1291 = vmatprep.subr.mxu0 0.0
        %1292 = vmatpush1.msra.mxu0 0.0
        %1293 = vmatprep.subr.mxu0 0.0
        %1294 = vmatpush1.msra.mxu0 0.0
        %1295 = vmatprep.subr.mxu0 0.0
        %1296 = vmatpush1.msra.mxu0 0.0
        %1297 = vmatprep.subr.mxu0 0.0
        %1298 = vmatpush1.msra.mxu0 0.0
        %1299 = vmatprep.subr.mxu0 0.0
        %1300 = vmatpush1.msra.mxu0 0.0
        %1301 = vmatprep.subr.mxu0 0.0
        %1302 = vmatpush1.msra.mxu0 0.0
        %1303 = vmatprep.subr.mxu0 0.0
        %1304 = vmatpush1.msra.mxu0 0.0
        %1305 = vmatprep.subr.mxu0 0.0
        %1306 = vmatpush1.msra.mxu0 0.0
        %1307 = vmatprep.subr.mxu0 0.0
        %1308 = vmatpush1.msra.mxu0 0.0
        %1309 = vmatprep.subr.mxu0 0.0
        %1310 = vmatpush1.msra.mxu0 0.0
        %1311 = vmatprep.subr.mxu0 0.0
        %1312 = vmatpush1.msra.mxu0 0.0
        %1313 = vmatprep.subr.mxu0 0.0
        %1314 = vmatpush1.msra.mxu0 0.0
        %1315 = vmatprep.subr.mxu0 0.0
        %1316 = vmatpush1.msra.mxu0 0.0
        %1317 = vmatprep.subr.mxu0 0.0
        %1318 = vmatpush1.msra.mxu0 0.0
        %1319 = vmatprep.subr.mxu0 0.0
        %1320 = vmatpush1.msra.mxu0 0.0
        %1321 = vmatprep.subr.mxu0 0.0
        %1322 = vmatpush1.msra.mxu0 0.0
        %1323 = vmatprep.subr.mxu0 0.0
        %1324 = vmatpush1.msra.mxu0 0.0
        %1325 = vmatprep.subr.mxu0 0.0
        %1326 = vmatpush1.msra.mxu0 0.0
        %1327 = vmatprep.mubr.f32.mxu0 0.0
        %1328 = vmatmul.mubr.f32.gmra.mrb[0].mxu0 %v1261
        %v1329 = vpop.f32.mrb[0].mxu0
        %v1330 = vadd.f32 %v1258, %v1329
        %v1331 = vpop.f32.mrb[0].mxu0
        %1332 = vdwg.mxu0
        %vm1333 = vcmp.ge.f32.partialorder %v1330, 0.0
        %v1334 = vstv %s1247
        %v1335 = vmul.f32 %v1334, %v1330
        %v1336 = vsel %vm1333, %v1330, %v1335
        %s1337 = scalar_lea.vmem %s10, 1
        %v1338 = vld [vmem:[%s1337] sm:$0x1]
        %s1339 = scalar_lea.vmem %s11, 1
        %v1340 = vld [vmem:[%s1339] sm:$0x1]
        %v1341 = vsel %vm824, %v1336, 0.0
        %1342 = vadd.xlane.f32.xlu0 %v1341
        %v1343 = vpop.xlane.xlu0 %1342
        %v1344 = vsel %vm1039, %v1343, 0.0
        %v1345 = vrot.slane %v1344, 4
        %v1346 = vadd.f32 %v1344, %v1345
        %v1347 = vrot.slane %v1346, 2
        %v1348 = vadd.f32 %v1346, %v1347
        %v1349 = vrot.slane %v1348, 1
        %v1350 = vadd.f32 %v1348, %v1349
        %v1351 = vmul.f32 %v1350, 0.004464286
        %v1352 = vmul.f32 %v1336, %v1336
        %v1353 = vsel %vm824, %v1352, 0.0
        %1354 = vadd.xlane.f32.xlu0 %v1353
        %v1355 = vpop.xlane.xlu0 %1354
        %v1356 = vsel %vm1039, %v1355, 0.0
        %v1357 = vrot.slane %v1356, 4
        %v1358 = vadd.f32 %v1356, %v1357
        %v1359 = vrot.slane %v1358, 2
        %v1360 = vadd.f32 %v1358, %v1359
        %v1361 = vrot.slane %v1360, 1
        %v1362 = vadd.f32 %v1360, %v1361
        %v1363 = vmul.f32 %v1362, 0.004464286
        %v1364 = vmul.f32 %v1351, %v1351
        %v1365 = vsub.f32 %v1363, %v1364
        %v1366 = vmax.f32 %v1365, 0.0
        %v1367 = vsub.f32 %v1336, %v1351
        %v1369 = vlaneseq
        %v1370 = vshrl.u32 %v1369, 7
        %v1371 = vsub.s32 0, %v1370
        %v1372 = vrot.slane %v1338, %v1371
        %v1374 = vmul.f32 %v1372, %v1367
        %v1375 = vadd.f32 %v1366, 1e-08
        %v1376 = vrsqrt.pop %v1375
        %v1377 = vmul.f32 %v1374, %v1376
        %v1379 = vlaneseq
        %v1380 = vshrl.u32 %v1379, 7
        %v1381 = vsub.s32 0, %v1380
        %v1382 = vrot.slane %v1340, %v1381
        %v1384 = vadd.f32 %v1377, %v1382
        %1385 = vst.msk [vmem:[#allocation2 + $0x2] sm:$0x7f] %vm824, %v1384
        %s1386 = scalar_lea.vmem %s12, 4
        %v1387 = vld [vmem:[%s1386] sm:$0x7]
        %s1388 = scalar_lea.vmem %s13, 1
        %v1389 = vld [vmem:[%s1388] sm:$0x1]
        %v1390 = vld [vmem:[#allocation2] sm:$0x7f]
        %v1391 = vlaneseq
        %v1392 = vshrl.u32 %v1391, 7
        %v1393 = vsub.s32 0, %v1392
        %v1394 = vrot.slane %v1387, %v1393
        %v1395 = vmul.f32 %v1390, %v1394
        %v1397 = vlaneseq
        %v1398 = vshrl.u32 %v1397, 7
        %v1399 = vsub.s32 0, %v1398
        %v1400 = vrot.slane %v1389, %v1399
        %v1402 = vadd.f32 %v1400, %v1395
        %v1403 = vld [vmem:[#allocation2 + $0x2] sm:$0x7f]
        %v1404 = vlaneseq
        %v1405 = vshrl.u32 %v1404, 7
        %v1406 = vsub.s32 1, %v1405
        %v1407 = vrot.slane %v1387, %v1406
        %v1408 = vmul.f32 %v1403, %v1407
        %v1409 = vadd.f32 %v1402, %v1408
        %v1410 = vld [vmem:[#allocation2 + $0x4] sm:$0x7f]
        %v1411 = vlaneseq
        %v1412 = vshrl.u32 %v1411, 7
        %v1413 = vsub.s32 2, %v1412
        %v1414 = vrot.slane %v1387, %v1413
        %v1415 = vmul.f32 %v1410, %v1414
        %v1416 = vadd.f32 %v1409, %v1415
        %vm1417 = vcmp.ge.f32.partialorder %v1416, 0.0
        %v1418 = vstv %s1248
        %v1419 = vmul.f32 %v1418, %v1416
        %v1420 = vsel %vm1417, %v1416, %v1419
        %s1421 = scalar_lea.vmem %s14, 1
        %v1422 = vld [vmem:[%s1421] sm:$0x1]
        %s1423 = scalar_lea.vmem %s15, 1
        %v1424 = vld [vmem:[%s1423] sm:$0x1]
        %v1425 = vsel %vm824, %v1420, 0.0
        %1426 = vadd.xlane.f32.xlu0 %v1425
        %v1427 = vpop.xlane.xlu0 %1426
        %v1428 = vsel %vm1039, %v1427, 0.0
        %v1429 = vrot.slane %v1428, 4
        %v1430 = vadd.f32 %v1428, %v1429
        %v1431 = vrot.slane %v1430, 2
        %v1432 = vadd.f32 %v1430, %v1431
        %v1433 = vrot.slane %v1432, 1
        %v1434 = vadd.f32 %v1432, %v1433
        %v1435 = vmul.f32 %v1434, 0.004464286
        %v1436 = vmul.f32 %v1420, %v1420
        %v1437 = vsel %vm824, %v1436, 0.0
        %1438 = vadd.xlane.f32.xlu0 %v1437
        %v1439 = vpop.xlane.xlu0 %1438
        %v1440 = vsel %vm1039, %v1439, 0.0
        %v1441 = vrot.slane %v1440, 4
        %v1442 = vadd.f32 %v1440, %v1441
        %v1443 = vrot.slane %v1442, 2
        %v1444 = vadd.f32 %v1442, %v1443
        %v1445 = vrot.slane %v1444, 1
        %v1446 = vadd.f32 %v1444, %v1445
        %v1447 = vmul.f32 %v1446, 0.004464286
        %v1448 = vmul.f32 %v1435, %v1435
        %v1449 = vsub.f32 %v1447, %v1448
        %v1450 = vmax.f32 %v1449, 0.0
        %v1451 = vsub.f32 %v1420, %v1435
        %v1453 = vlaneseq
        %v1454 = vshrl.u32 %v1453, 7
        %v1455 = vsub.s32 0, %v1454
        %v1456 = vrot.slane %v1422, %v1455
        %v1458 = vmul.f32 %v1456, %v1451
        %v1459 = vadd.f32 %v1450, 1e-08
        %v1460 = vrsqrt.pop %v1459
        %v1461 = vmul.f32 %v1458, %v1460
        %v1463 = vlaneseq
        %v1464 = vshrl.u32 %v1463, 7
        %v1465 = vsub.s32 0, %v1464
        %v1466 = vrot.slane %v1424, %v1465
        %v1468 = vadd.f32 %v1461, %v1466
        %s1469 = scalar_lea.vmem %s16, 32
        %v1470 = vld [vmem:[%s1469] sm:$0xff]
        %v1471 = vld [vmem:[%s1469 + $0x8] sm:$0xff]
        %v1472 = vld [vmem:[%s1469 + $0x10] sm:$0xff]
        %v1473 = vld [vmem:[%s1469 + $0x18] sm:$0xff]
        %v1475 = vsel %vm868, %v1468, 0
        %1477 = vmatprep.subr.mxu0 0.0
        %1478 = vmatpush1.msra.mxu0 %v1470
        %1479 = vmatprep.subr.mxu0 0.0
        %1480 = vmatpush1.msra.mxu0 %v1471
        %1481 = vmatprep.subr.mxu0 0.0
        %1482 = vmatpush1.msra.mxu0 %v1472
        %1483 = vmatprep.subr.mxu0 0.0
        %1484 = vmatpush1.msra.mxu0 %v1473
        %1485 = vmatprep.subr.mxu0 0.0
        %1486 = vmatpush1.msra.mxu0 0.0
        %1487 = vmatprep.subr.mxu0 0.0
        %1488 = vmatpush1.msra.mxu0 0.0
        %1489 = vmatprep.subr.mxu0 0.0
        %1490 = vmatpush1.msra.mxu0 0.0
        %1491 = vmatprep.subr.mxu0 0.0
        %1492 = vmatpush1.msra.mxu0 0.0
        %1493 = vmatprep.subr.mxu0 0.0
        %1494 = vmatpush1.msra.mxu0 0.0
        %1495 = vmatprep.subr.mxu0 0.0
        %1496 = vmatpush1.msra.mxu0 0.0
        %1497 = vmatprep.subr.mxu0 0.0
        %1498 = vmatpush1.msra.mxu0 0.0
        %1499 = vmatprep.subr.mxu0 0.0
        %1500 = vmatpush1.msra.mxu0 0.0
        %1501 = vmatprep.subr.mxu0 0.0
        %1502 = vmatpush1.msra.mxu0 0.0
        %1503 = vmatprep.subr.mxu0 0.0
        %1504 = vmatpush1.msra.mxu0 0.0
        %1505 = vmatprep.subr.mxu0 0.0
        %1506 = vmatpush1.msra.mxu0 0.0
        %1507 = vmatprep.subr.mxu0 0.0
        %1508 = vmatpush1.msra.mxu0 0.0
        %1509 = vmatprep.subr.mxu0 0.0
        %1510 = vmatpush1.msra.mxu0 0.0
        %1511 = vmatprep.subr.mxu0 0.0
        %1512 = vmatpush1.msra.mxu0 0.0
        %1513 = vmatprep.subr.mxu0 0.0
        %1514 = vmatpush1.msra.mxu0 0.0
        %1515 = vmatprep.subr.mxu0 0.0
        %1516 = vmatpush1.msra.mxu0 0.0
        %1517 = vmatprep.subr.mxu0 0.0
        %1518 = vmatpush1.msra.mxu0 0.0
        %1519 = vmatprep.subr.mxu0 0.0
        %1520 = vmatpush1.msra.mxu0 0.0
        %1521 = vmatprep.subr.mxu0 0.0
        %1522 = vmatpush1.msra.mxu0 0.0
        %1523 = vmatprep.subr.mxu0 0.0
        %1524 = vmatpush1.msra.mxu0 0.0
        %1525 = vmatprep.subr.mxu0 0.0
        %1526 = vmatpush1.msra.mxu0 0.0
        %1527 = vmatprep.subr.mxu0 0.0
        %1528 = vmatpush1.msra.mxu0 0.0
        %1529 = vmatprep.subr.mxu0 0.0
        %1530 = vmatpush1.msra.mxu0 0.0
        %1531 = vmatprep.subr.mxu0 0.0
        %1532 = vmatpush1.msra.mxu0 0.0
        %1533 = vmatprep.subr.mxu0 0.0
        %1534 = vmatpush1.msra.mxu0 0.0
        %1535 = vmatprep.subr.mxu0 0.0
        %1536 = vmatpush1.msra.mxu0 0.0
        %1537 = vmatprep.subr.mxu0 0.0
        %1538 = vmatpush1.msra.mxu0 0.0
        %1539 = vmatprep.subr.mxu0 0.0
        %1540 = vmatpush1.msra.mxu0 0.0
        %1541 = vmatprep.mubr.f32.mxu0 0.0
        %1542 = vmatmul.mubr.f32.gmra.mrb[0].mxu0 %v1475
        %v1543 = vpop.f32.mrb[0].mxu0
        %v1544 = vadd.f32 0.0, %v1543
        %v1545 = vpop.f32.mrb[0].mxu0
        %1546 = vdwg.mxu0
        %v1547 = vadd.f32 %v1246, %v1544
        %s1548 = scalar_lea.vmem %s17, 1
        %v1549 = vld [vmem:[%s1548] sm:$0x1]
        %v1551 = vlaneseq
        %v1552 = vshrl.u32 %v1551, 7
        %v1553 = vsub.s32 0, %v1552
        %v1554 = vrot.slane %v1549, %v1553
        %v1556 = vadd.f32 %v1547, %v1554
        %s1557 = sld [smem:[#allocation3 + $0x4]]
        %s1558 = sld [smem:[#allocation3 + $0x5]]
        %s1559 = scalar_lea.vmem %s8, 32
        %v1560 = vld [vmem:[%s1559] sm:$0xff]
        %v1561 = vld [vmem:[%s1559 + $0x8] sm:$0xff]
        %s1562 = scalar_lea.vmem %s9, 2
        %v1563 = vld [vmem:[%s1562] sm:$0x1]
        %v1565 = vlaneseq
        %v1566 = vshrl.u32 %v1565, 7
        %v1567 = vsub.s32 0, %v1566
        %v1568 = vrot.slane %v1563, %v1567
        %v1571 = vsel %vm956, %v1556, 0
        %1573 = vmatprep.subr.mxu0 0.0
        %1574 = vmatpush1.msra.mxu0 %v1560
        %1575 = vmatprep.subr.mxu0 0.0
        %1576 = vmatpush1.msra.mxu0 %v1561
        %1577 = vmatprep.subr.mxu0 0.0
        %1578 = vmatpush1.msra.mxu0 0.0
        %1579 = vmatprep.subr.mxu0 0.0
        %1580 = vmatpush1.msra.mxu0 0.0
        %1581 = vmatprep.subr.mxu0 0.0
        %1582 = vmatpush1.msra.mxu0 0.0
        %1583 = vmatprep.subr.mxu0 0.0
        %1584 = vmatpush1.msra.mxu0 0.0
        %1585 = vmatprep.subr.mxu0 0.0
        %1586 = vmatpush1.msra.mxu0 0.0
        %1587 = vmatprep.subr.mxu0 0.0
        %1588 = vmatpush1.msra.mxu0 0.0
        %1589 = vmatprep.subr.mxu0 0.0
        %1590 = vmatpush1.msra.mxu0 0.0
        %1591 = vmatprep.subr.mxu0 0.0
        %1592 = vmatpush1.msra.mxu0 0.0
        %1593 = vmatprep.subr.mxu0 0.0
        %1594 = vmatpush1.msra.mxu0 0.0
        %1595 = vmatprep.subr.mxu0 0.0
        %1596 = vmatpush1.msra.mxu0 0.0
        %1597 = vmatprep.subr.mxu0 0.0
        %1598 = vmatpush1.msra.mxu0 0.0
        %1599 = vmatprep.subr.mxu0 0.0
        %1600 = vmatpush1.msra.mxu0 0.0
        %1601 = vmatprep.subr.mxu0 0.0
        %1602 = vmatpush1.msra.mxu0 0.0
        %1603 = vmatprep.subr.mxu0 0.0
        %1604 = vmatpush1.msra.mxu0 0.0
        %1605 = vmatprep.subr.mxu0 0.0
        %1606 = vmatpush1.msra.mxu0 0.0
        %1607 = vmatprep.subr.mxu0 0.0
        %1608 = vmatpush1.msra.mxu0 0.0
        %1609 = vmatprep.subr.mxu0 0.0
        %1610 = vmatpush1.msra.mxu0 0.0
        %1611 = vmatprep.subr.mxu0 0.0
        %1612 = vmatpush1.msra.mxu0 0.0
        %1613 = vmatprep.subr.mxu0 0.0
        %1614 = vmatpush1.msra.mxu0 0.0
        %1615 = vmatprep.subr.mxu0 0.0
        %1616 = vmatpush1.msra.mxu0 0.0
        %1617 = vmatprep.subr.mxu0 0.0
        %1618 = vmatpush1.msra.mxu0 0.0
        %1619 = vmatprep.subr.mxu0 0.0
        %1620 = vmatpush1.msra.mxu0 0.0
        %1621 = vmatprep.subr.mxu0 0.0
        %1622 = vmatpush1.msra.mxu0 0.0
        %1623 = vmatprep.subr.mxu0 0.0
        %1624 = vmatpush1.msra.mxu0 0.0
        %1625 = vmatprep.subr.mxu0 0.0
        %1626 = vmatpush1.msra.mxu0 0.0
        %1627 = vmatprep.subr.mxu0 0.0
        %1628 = vmatpush1.msra.mxu0 0.0
        %1629 = vmatprep.subr.mxu0 0.0
        %1630 = vmatpush1.msra.mxu0 0.0
        %1631 = vmatprep.subr.mxu0 0.0
        %1632 = vmatpush1.msra.mxu0 0.0
        %1633 = vmatprep.subr.mxu0 0.0
        %1634 = vmatpush1.msra.mxu0 0.0
        %1635 = vmatprep.subr.mxu0 0.0
        %1636 = vmatpush1.msra.mxu0 0.0
        %1637 = vmatprep.mubr.f32.mxu0 0.0
        %1638 = vmatmul.mubr.f32.gmra.mrb[0].mxu0 %v1571
        %v1639 = vpop.f32.mrb[0].mxu0
        %v1640 = vadd.f32 %v1568, %v1639
        %v1641 = vpop.f32.mrb[0].mxu0
        %1642 = vdwg.mxu0
        %vm1643 = vcmp.ge.f32.partialorder %v1640, 0.0
        %v1644 = vstv %s1557
        %v1645 = vmul.f32 %v1644, %v1640
        %v1646 = vsel %vm1643, %v1640, %v1645
        %s1647 = scalar_lea.vmem %s10, 2
        %v1648 = vld [vmem:[%s1647] sm:$0x1]
        %s1649 = scalar_lea.vmem %s11, 2
        %v1650 = vld [vmem:[%s1649] sm:$0x1]
        %v1651 = vsel %vm824, %v1646, 0.0
        %1652 = vadd.xlane.f32.xlu0 %v1651
        %v1653 = vpop.xlane.xlu0 %1652
        %v1654 = vsel %vm1039, %v1653, 0.0
        %v1655 = vrot.slane %v1654, 4
        %v1656 = vadd.f32 %v1654, %v1655
        %v1657 = vrot.slane %v1656, 2
        %v1658 = vadd.f32 %v1656, %v1657
        %v1659 = vrot.slane %v1658, 1
        %v1660 = vadd.f32 %v1658, %v1659
        %v1661 = vmul.f32 %v1660, 0.004464286
        %v1662 = vmul.f32 %v1646, %v1646
        %v1663 = vsel %vm824, %v1662, 0.0
        %1664 = vadd.xlane.f32.xlu0 %v1663
        %v1665 = vpop.xlane.xlu0 %1664
        %v1666 = vsel %vm1039, %v1665, 0.0
        %v1667 = vrot.slane %v1666, 4
        %v1668 = vadd.f32 %v1666, %v1667
        %v1669 = vrot.slane %v1668, 2
        %v1670 = vadd.f32 %v1668, %v1669
        %v1671 = vrot.slane %v1670, 1
        %v1672 = vadd.f32 %v1670, %v1671
        %v1673 = vmul.f32 %v1672, 0.004464286
        %v1674 = vmul.f32 %v1661, %v1661
        %v1675 = vsub.f32 %v1673, %v1674
        %v1676 = vmax.f32 %v1675, 0.0
        %v1677 = vsub.f32 %v1646, %v1661
        %v1679 = vlaneseq
        %v1680 = vshrl.u32 %v1679, 7
        %v1681 = vsub.s32 0, %v1680
        %v1682 = vrot.slane %v1648, %v1681
        %v1684 = vmul.f32 %v1682, %v1677
        %v1685 = vadd.f32 %v1676, 1e-08
        %v1686 = vrsqrt.pop %v1685
        %v1687 = vmul.f32 %v1684, %v1686
        %v1689 = vlaneseq
        %v1690 = vshrl.u32 %v1689, 7
        %v1691 = vsub.s32 0, %v1690
        %v1692 = vrot.slane %v1650, %v1691
        %v1694 = vadd.f32 %v1687, %v1692
        %1695 = vst.msk [vmem:[#allocation2 + $0x2] sm:$0x7f] %vm824, %v1694
        %s1696 = scalar_lea.vmem %s12, 8
        %v1697 = vld [vmem:[%s1696] sm:$0x7]
        %s1698 = scalar_lea.vmem %s13, 2
        %v1699 = vld [vmem:[%s1698] sm:$0x1]
        %v1700 = vld [vmem:[#allocation2 + $0x1] sm:$0x7f]
        %v1701 = vlaneseq
        %v1702 = vshrl.u32 %v1701, 7
        %v1703 = vsub.s32 0, %v1702
        %v1704 = vrot.slane %v1697, %v1703
        %v1705 = vmul.f32 %v1700, %v1704
        %v1707 = vlaneseq
        %v1708 = vshrl.u32 %v1707, 7
        %v1709 = vsub.s32 0, %v1708
        %v1710 = vrot.slane %v1699, %v1709
        %v1712 = vadd.f32 %v1710, %v1705
        %v1713 = vld [vmem:[#allocation2 + $0x2] sm:$0x7f]
        %v1714 = vlaneseq
        %v1715 = vshrl.u32 %v1714, 7
        %v1716 = vsub.s32 1, %v1715
        %v1717 = vrot.slane %v1697, %v1716
        %v1718 = vmul.f32 %v1713, %v1717
        %v1719 = vadd.f32 %v1712, %v1718
        %v1720 = vld [vmem:[#allocation2 + $0x3] sm:$0x7f]
        %v1721 = vlaneseq
        %v1722 = vshrl.u32 %v1721, 7
        %v1723 = vsub.s32 2, %v1722
        %v1724 = vrot.slane %v1697, %v1723
        %v1725 = vmul.f32 %v1720, %v1724
        %v1726 = vadd.f32 %v1719, %v1725
        %vm1727 = vcmp.ge.f32.partialorder %v1726, 0.0
        %v1728 = vstv %s1558
        %v1729 = vmul.f32 %v1728, %v1726
        %v1730 = vsel %vm1727, %v1726, %v1729
        %s1731 = scalar_lea.vmem %s14, 2
        %v1732 = vld [vmem:[%s1731] sm:$0x1]
        %s1733 = scalar_lea.vmem %s15, 2
        %v1734 = vld [vmem:[%s1733] sm:$0x1]
        %v1735 = vsel %vm824, %v1730, 0.0
        %1736 = vadd.xlane.f32.xlu0 %v1735
        %v1737 = vpop.xlane.xlu0 %1736
        %v1738 = vsel %vm1039, %v1737, 0.0
        %v1739 = vrot.slane %v1738, 4
        %v1740 = vadd.f32 %v1738, %v1739
        %v1741 = vrot.slane %v1740, 2
        %v1742 = vadd.f32 %v1740, %v1741
        %v1743 = vrot.slane %v1742, 1
        %v1744 = vadd.f32 %v1742, %v1743
        %v1745 = vmul.f32 %v1744, 0.004464286
        %v1746 = vmul.f32 %v1730, %v1730
        %v1747 = vsel %vm824, %v1746, 0.0
        %1748 = vadd.xlane.f32.xlu0 %v1747
        %v1749 = vpop.xlane.xlu0 %1748
        %v1750 = vsel %vm1039, %v1749, 0.0
        %v1751 = vrot.slane %v1750, 4
        %v1752 = vadd.f32 %v1750, %v1751
        %v1753 = vrot.slane %v1752, 2
        %v1754 = vadd.f32 %v1752, %v1753
        %v1755 = vrot.slane %v1754, 1
        %v1756 = vadd.f32 %v1754, %v1755
        %v1757 = vmul.f32 %v1756, 0.004464286
        %v1758 = vmul.f32 %v1745, %v1745
        %v1759 = vsub.f32 %v1757, %v1758
        %v1760 = vmax.f32 %v1759, 0.0
        %v1761 = vsub.f32 %v1730, %v1745
        %v1763 = vlaneseq
        %v1764 = vshrl.u32 %v1763, 7
        %v1765 = vsub.s32 0, %v1764
        %v1766 = vrot.slane %v1732, %v1765
        %v1768 = vmul.f32 %v1766, %v1761
        %v1769 = vadd.f32 %v1760, 1e-08
        %v1770 = vrsqrt.pop %v1769
        %v1771 = vmul.f32 %v1768, %v1770
        %v1773 = vlaneseq
        %v1774 = vshrl.u32 %v1773, 7
        %v1775 = vsub.s32 0, %v1774
        %v1776 = vrot.slane %v1734, %v1775
        %v1778 = vadd.f32 %v1771, %v1776
        %s1779 = scalar_lea.vmem %s16, 64
        %v1780 = vld [vmem:[%s1779] sm:$0xff]
        %v1781 = vld [vmem:[%s1779 + $0x8] sm:$0xff]
        %v1782 = vld [vmem:[%s1779 + $0x10] sm:$0xff]
        %v1783 = vld [vmem:[%s1779 + $0x18] sm:$0xff]
        %v1785 = vsel %vm868, %v1778, 0
        %1787 = vmatprep.subr.mxu0 0.0
        %1788 = vmatpush1.msra.mxu0 %v1780
        %1789 = vmatprep.subr.mxu0 0.0
        %1790 = vmatpush1.msra.mxu0 %v1781
        %1791 = vmatprep.subr.mxu0 0.0
        %1792 = vmatpush1.msra.mxu0 %v1782
        %1793 = vmatprep.subr.mxu0 0.0
        %1794 = vmatpush1.msra.mxu0 %v1783
        %1795 = vmatprep.subr.mxu0 0.0
        %1796 = vmatpush1.msra.mxu0 0.0
        %1797 = vmatprep.subr.mxu0 0.0
        %1798 = vmatpush1.msra.mxu0 0.0
        %1799 = vmatprep.subr.mxu0 0.0
        %1800 = vmatpush1.msra.mxu0 0.0
        %1801 = vmatprep.subr.mxu0 0.0
        %1802 = vmatpush1.msra.mxu0 0.0
        %1803 = vmatprep.subr.mxu0 0.0
        %1804 = vmatpush1.msra.mxu0 0.0
        %1805 = vmatprep.subr.mxu0 0.0
        %1806 = vmatpush1.msra.mxu0 0.0
        %1807 = vmatprep.subr.mxu0 0.0
        %1808 = vmatpush1.msra.mxu0 0.0
        %1809 = vmatprep.subr.mxu0 0.0
        %1810 = vmatpush1.msra.mxu0 0.0
        %1811 = vmatprep.subr.mxu0 0.0
        %1812 = vmatpush1.msra.mxu0 0.0
        %1813 = vmatprep.subr.mxu0 0.0
        %1814 = vmatpush1.msra.mxu0 0.0
        %1815 = vmatprep.subr.mxu0 0.0
        %1816 = vmatpush1.msra.mxu0 0.0
        %1817 = vmatprep.subr.mxu0 0.0
        %1818 = vmatpush1.msra.mxu0 0.0
        %1819 = vmatprep.subr.mxu0 0.0
        %1820 = vmatpush1.msra.mxu0 0.0
        %1821 = vmatprep.subr.mxu0 0.0
        %1822 = vmatpush1.msra.mxu0 0.0
        %1823 = vmatprep.subr.mxu0 0.0
        %1824 = vmatpush1.msra.mxu0 0.0
        %1825 = vmatprep.subr.mxu0 0.0
        %1826 = vmatpush1.msra.mxu0 0.0
        %1827 = vmatprep.subr.mxu0 0.0
        %1828 = vmatpush1.msra.mxu0 0.0
        %1829 = vmatprep.subr.mxu0 0.0
        %1830 = vmatpush1.msra.mxu0 0.0
        %1831 = vmatprep.subr.mxu0 0.0
        %1832 = vmatpush1.msra.mxu0 0.0
        %1833 = vmatprep.subr.mxu0 0.0
        %1834 = vmatpush1.msra.mxu0 0.0
        %1835 = vmatprep.subr.mxu0 0.0
        %1836 = vmatpush1.msra.mxu0 0.0
        %1837 = vmatprep.subr.mxu0 0.0
        %1838 = vmatpush1.msra.mxu0 0.0
        %1839 = vmatprep.subr.mxu0 0.0
        %1840 = vmatpush1.msra.mxu0 0.0
        %1841 = vmatprep.subr.mxu0 0.0
        %1842 = vmatpush1.msra.mxu0 0.0
        %1843 = vmatprep.subr.mxu0 0.0
        %1844 = vmatpush1.msra.mxu0 0.0
        %1845 = vmatprep.subr.mxu0 0.0
        %1846 = vmatpush1.msra.mxu0 0.0
        %1847 = vmatprep.subr.mxu0 0.0
        %1848 = vmatpush1.msra.mxu0 0.0
        %1849 = vmatprep.subr.mxu0 0.0
        %1850 = vmatpush1.msra.mxu0 0.0
        %1851 = vmatprep.mubr.f32.mxu0 0.0
        %1852 = vmatmul.mubr.f32.gmra.mrb[0].mxu0 %v1785
        %v1853 = vpop.f32.mrb[0].mxu0
        %v1854 = vadd.f32 0.0, %v1853
        %v1855 = vpop.f32.mrb[0].mxu0
        %1856 = vdwg.mxu0
        %v1857 = vadd.f32 %v1556, %v1854
        %s1858 = scalar_lea.vmem %s17, 2
        %v1859 = vld [vmem:[%s1858] sm:$0x1]
        %v1861 = vlaneseq
        %v1862 = vshrl.u32 %v1861, 7
        %v1863 = vsub.s32 0, %v1862
        %v1864 = vrot.slane %v1859, %v1863
        %v1866 = vadd.f32 %v1857, %v1864
        %s1867 = sld [smem:[#allocation3 + $0x6]]
        %s1868 = sld [smem:[#allocation3 + $0x7]]
        %s1869 = scalar_lea.vmem %s8, 48
        %v1870 = vld [vmem:[%s1869] sm:$0xff]
        %v1871 = vld [vmem:[%s1869 + $0x8] sm:$0xff]
        %s1872 = scalar_lea.vmem %s9, 3
        %v1873 = vld [vmem:[%s1872] sm:$0x1]
        %v1875 = vlaneseq
        %v1876 = vshrl.u32 %v1875, 7
        %v1877 = vsub.s32 0, %v1876
        %v1878 = vrot.slane %v1873, %v1877
        %v1881 = vsel %vm956, %v1866, 0
        %1883 = vmatprep.subr.mxu0 0.0
        %1884 = vmatpush1.msra.mxu0 %v1870
        %1885 = vmatprep.subr.mxu0 0.0
        %1886 = vmatpush1.msra.mxu0 %v1871
        %1887 = vmatprep.subr.mxu0 0.0
        %1888 = vmatpush1.msra.mxu0 0.0
        %1889 = vmatprep.subr.mxu0 0.0
        %1890 = vmatpush1.msra.mxu0 0.0
        %1891 = vmatprep.subr.mxu0 0.0
        %1892 = vmatpush1.msra.mxu0 0.0
        %1893 = vmatprep.subr.mxu0 0.0
        %1894 = vmatpush1.msra.mxu0 0.0
        %1895 = vmatprep.subr.mxu0 0.0
        %1896 = vmatpush1.msra.mxu0 0.0
        %1897 = vmatprep.subr.mxu0 0.0
        %1898 = vmatpush1.msra.mxu0 0.0
        %1899 = vmatprep.subr.mxu0 0.0
        %1900 = vmatpush1.msra.mxu0 0.0
        %1901 = vmatprep.subr.mxu0 0.0
        %1902 = vmatpush1.msra.mxu0 0.0
        %1903 = vmatprep.subr.mxu0 0.0
        %1904 = vmatpush1.msra.mxu0 0.0
        %1905 = vmatprep.subr.mxu0 0.0
        %1906 = vmatpush1.msra.mxu0 0.0
        %1907 = vmatprep.subr.mxu0 0.0
        %1908 = vmatpush1.msra.mxu0 0.0
        %1909 = vmatprep.subr.mxu0 0.0
        %1910 = vmatpush1.msra.mxu0 0.0
        %1911 = vmatprep.subr.mxu0 0.0
        %1912 = vmatpush1.msra.mxu0 0.0
        %1913 = vmatprep.subr.mxu0 0.0
        %1914 = vmatpush1.msra.mxu0 0.0
        %1915 = vmatprep.subr.mxu0 0.0
        %1916 = vmatpush1.msra.mxu0 0.0
        %1917 = vmatprep.subr.mxu0 0.0
        %1918 = vmatpush1.msra.mxu0 0.0
        %1919 = vmatprep.subr.mxu0 0.0
        %1920 = vmatpush1.msra.mxu0 0.0
        %1921 = vmatprep.subr.mxu0 0.0
        %1922 = vmatpush1.msra.mxu0 0.0
        %1923 = vmatprep.subr.mxu0 0.0
        %1924 = vmatpush1.msra.mxu0 0.0
        %1925 = vmatprep.subr.mxu0 0.0
        %1926 = vmatpush1.msra.mxu0 0.0
        %1927 = vmatprep.subr.mxu0 0.0
        %1928 = vmatpush1.msra.mxu0 0.0
        %1929 = vmatprep.subr.mxu0 0.0
        %1930 = vmatpush1.msra.mxu0 0.0
        %1931 = vmatprep.subr.mxu0 0.0
        %1932 = vmatpush1.msra.mxu0 0.0
        %1933 = vmatprep.subr.mxu0 0.0
        %1934 = vmatpush1.msra.mxu0 0.0
        %1935 = vmatprep.subr.mxu0 0.0
        %1936 = vmatpush1.msra.mxu0 0.0
        %1937 = vmatprep.subr.mxu0 0.0
        %1938 = vmatpush1.msra.mxu0 0.0
        %1939 = vmatprep.subr.mxu0 0.0
        %1940 = vmatpush1.msra.mxu0 0.0
        %1941 = vmatprep.subr.mxu0 0.0
        %1942 = vmatpush1.msra.mxu0 0.0
        %1943 = vmatprep.subr.mxu0 0.0
        %1944 = vmatpush1.msra.mxu0 0.0
        %1945 = vmatprep.subr.mxu0 0.0
        %1946 = vmatpush1.msra.mxu0 0.0
        %1947 = vmatprep.mubr.f32.mxu0 0.0
        %1948 = vmatmul.mubr.f32.gmra.mrb[0].mxu0 %v1881
        %v1949 = vpop.f32.mrb[0].mxu0
        %v1950 = vadd.f32 %v1878, %v1949
        %v1951 = vpop.f32.mrb[0].mxu0
        %1952 = vdwg.mxu0
        %vm1953 = vcmp.ge.f32.partialorder %v1950, 0.0
        %v1954 = vstv %s1867
        %v1955 = vmul.f32 %v1954, %v1950
        %v1956 = vsel %vm1953, %v1950, %v1955
        %s1957 = scalar_lea.vmem %s10, 3
        %v1958 = vld [vmem:[%s1957] sm:$0x1]
        %s1959 = scalar_lea.vmem %s11, 3
        %v1960 = vld [vmem:[%s1959] sm:$0x1]
        %v1961 = vsel %vm824, %v1956, 0.0
        %1962 = vadd.xlane.f32.xlu0 %v1961
        %v1963 = vpop.xlane.xlu0 %1962
        %v1964 = vsel %vm1039, %v1963, 0.0
        %v1965 = vrot.slane %v1964, 4
        %v1966 = vadd.f32 %v1964, %v1965
        %v1967 = vrot.slane %v1966, 2
        %v1968 = vadd.f32 %v1966, %v1967
        %v1969 = vrot.slane %v1968, 1
        %v1970 = vadd.f32 %v1968, %v1969
        %v1971 = vmul.f32 %v1970, 0.004464286
        %v1972 = vmul.f32 %v1956, %v1956
        %v1973 = vsel %vm824, %v1972, 0.0
        %1974 = vadd.xlane.f32.xlu0 %v1973
        %v1975 = vpop.xlane.xlu0 %1974
        %v1976 = vsel %vm1039, %v1975, 0.0
        %v1977 = vrot.slane %v1976, 4
        %v1978 = vadd.f32 %v1976, %v1977
        %v1979 = vrot.slane %v1978, 2
        %v1980 = vadd.f32 %v1978, %v1979
        %v1981 = vrot.slane %v1980, 1
        %v1982 = vadd.f32 %v1980, %v1981
        %v1983 = vmul.f32 %v1982, 0.004464286
        %v1984 = vmul.f32 %v1971, %v1971
        %v1985 = vsub.f32 %v1983, %v1984
        %v1986 = vmax.f32 %v1985, 0.0
        %v1987 = vsub.f32 %v1956, %v1971
        %v1989 = vlaneseq
        %v1990 = vshrl.u32 %v1989, 7
        %v1991 = vsub.s32 0, %v1990
        %v1992 = vrot.slane %v1958, %v1991
        %v1994 = vmul.f32 %v1992, %v1987
        %v1995 = vadd.f32 %v1986, 1e-08
        %v1996 = vrsqrt.pop %v1995
        %v1997 = vmul.f32 %v1994, %v1996
        %v1999 = vlaneseq
        %v2000 = vshrl.u32 %v1999, 7
        %v2001 = vsub.s32 0, %v2000
        %v2002 = vrot.slane %v1960, %v2001
        %v2004 = vadd.f32 %v1997, %v2002
        %2005 = vst.msk [vmem:[#allocation2 + $0x2] sm:$0x7f] %vm824, %v2004
        %s2006 = scalar_lea.vmem %s12, 12
        %v2007 = vld [vmem:[%s2006] sm:$0x7]
        %s2008 = scalar_lea.vmem %s13, 3
        %v2009 = vld [vmem:[%s2008] sm:$0x1]
        %v2010 = vld [vmem:[#allocation2] sm:$0x7f]
        %v2011 = vlaneseq
        %v2012 = vshrl.u32 %v2011, 7
        %v2013 = vsub.s32 0, %v2012
        %v2014 = vrot.slane %v2007, %v2013
        %v2015 = vmul.f32 %v2010, %v2014
        %v2017 = vlaneseq
        %v2018 = vshrl.u32 %v2017, 7
        %v2019 = vsub.s32 0, %v2018
        %v2020 = vrot.slane %v2009, %v2019
        %v2022 = vadd.f32 %v2020, %v2015
        %v2023 = vld [vmem:[#allocation2 + $0x2] sm:$0x7f]
        %v2024 = vlaneseq
        %v2025 = vshrl.u32 %v2024, 7
        %v2026 = vsub.s32 1, %v2025
        %v2027 = vrot.slane %v2007, %v2026
        %v2028 = vmul.f32 %v2023, %v2027
        %v2029 = vadd.f32 %v2022, %v2028
        %v2030 = vld [vmem:[#allocation2 + $0x4] sm:$0x7f]
        %v2031 = vlaneseq
        %v2032 = vshrl.u32 %v2031, 7
        %v2033 = vsub.s32 2, %v2032
        %v2034 = vrot.slane %v2007, %v2033
        %v2035 = vmul.f32 %v2030, %v2034
        %v2036 = vadd.f32 %v2029, %v2035
        %vm2037 = vcmp.ge.f32.partialorder %v2036, 0.0
        %v2038 = vstv %s1868
        %v2039 = vmul.f32 %v2038, %v2036
        %v2040 = vsel %vm2037, %v2036, %v2039
        %s2041 = scalar_lea.vmem %s14, 3
        %v2042 = vld [vmem:[%s2041] sm:$0x1]
        %s2043 = scalar_lea.vmem %s15, 3
        %v2044 = vld [vmem:[%s2043] sm:$0x1]
        %v2045 = vsel %vm824, %v2040, 0.0
        %2046 = vadd.xlane.f32.xlu0 %v2045
        %v2047 = vpop.xlane.xlu0 %2046
        %v2048 = vsel %vm1039, %v2047, 0.0
        %v2049 = vrot.slane %v2048, 4
        %v2050 = vadd.f32 %v2048, %v2049
        %v2051 = vrot.slane %v2050, 2
        %v2052 = vadd.f32 %v2050, %v2051
        %v2053 = vrot.slane %v2052, 1
        %v2054 = vadd.f32 %v2052, %v2053
        %v2055 = vmul.f32 %v2054, 0.004464286
        %v2056 = vmul.f32 %v2040, %v2040
        %v2057 = vsel %vm824, %v2056, 0.0
        %2058 = vadd.xlane.f32.xlu0 %v2057
        %v2059 = vpop.xlane.xlu0 %2058
        %v2060 = vsel %vm1039, %v2059, 0.0
        %v2061 = vrot.slane %v2060, 4
        %v2062 = vadd.f32 %v2060, %v2061
        %v2063 = vrot.slane %v2062, 2
        %v2064 = vadd.f32 %v2062, %v2063
        %v2065 = vrot.slane %v2064, 1
        %v2066 = vadd.f32 %v2064, %v2065
        %v2067 = vmul.f32 %v2066, 0.004464286
        %v2068 = vmul.f32 %v2055, %v2055
        %v2069 = vsub.f32 %v2067, %v2068
        %v2070 = vmax.f32 %v2069, 0.0
        %v2071 = vsub.f32 %v2040, %v2055
        %v2073 = vlaneseq
        %v2074 = vshrl.u32 %v2073, 7
        %v2075 = vsub.s32 0, %v2074
        %v2076 = vrot.slane %v2042, %v2075
        %v2078 = vmul.f32 %v2076, %v2071
        %v2079 = vadd.f32 %v2070, 1e-08
        %v2080 = vrsqrt.pop %v2079
        %v2081 = vmul.f32 %v2078, %v2080
        %v2083 = vlaneseq
        %v2084 = vshrl.u32 %v2083, 7
        %v2085 = vsub.s32 0, %v2084
        %v2086 = vrot.slane %v2044, %v2085
        %v2088 = vadd.f32 %v2081, %v2086
        %s2089 = scalar_lea.vmem %s16, 96
        %v2090 = vld [vmem:[%s2089] sm:$0xff]
        %v2091 = vld [vmem:[%s2089 + $0x8] sm:$0xff]
        %v2092 = vld [vmem:[%s2089 + $0x10] sm:$0xff]
        %v2093 = vld [vmem:[%s2089 + $0x18] sm:$0xff]
        %v2095 = vsel %vm868, %v2088, 0
        %2097 = vmatprep.subr.mxu0 0.0
        %2098 = vmatpush1.msra.mxu0 %v2090
        %2099 = vmatprep.subr.mxu0 0.0
        %2100 = vmatpush1.msra.mxu0 %v2091
        %2101 = vmatprep.subr.mxu0 0.0
        %2102 = vmatpush1.msra.mxu0 %v2092
        %2103 = vmatprep.subr.mxu0 0.0
        %2104 = vmatpush1.msra.mxu0 %v2093
        %2105 = vmatprep.subr.mxu0 0.0
        %2106 = vmatpush1.msra.mxu0 0.0
        %2107 = vmatprep.subr.mxu0 0.0
        %2108 = vmatpush1.msra.mxu0 0.0
        %2109 = vmatprep.subr.mxu0 0.0
        %2110 = vmatpush1.msra.mxu0 0.0
        %2111 = vmatprep.subr.mxu0 0.0
        %2112 = vmatpush1.msra.mxu0 0.0
        %2113 = vmatprep.subr.mxu0 0.0
        %2114 = vmatpush1.msra.mxu0 0.0
        %2115 = vmatprep.subr.mxu0 0.0
        %2116 = vmatpush1.msra.mxu0 0.0
        %2117 = vmatprep.subr.mxu0 0.0
        %2118 = vmatpush1.msra.mxu0 0.0
        %2119 = vmatprep.subr.mxu0 0.0
        %2120 = vmatpush1.msra.mxu0 0.0
        %2121 = vmatprep.subr.mxu0 0.0
        %2122 = vmatpush1.msra.mxu0 0.0
        %2123 = vmatprep.subr.mxu0 0.0
        %2124 = vmatpush1.msra.mxu0 0.0
        %2125 = vmatprep.subr.mxu0 0.0
        %2126 = vmatpush1.msra.mxu0 0.0
        %2127 = vmatprep.subr.mxu0 0.0
        %2128 = vmatpush1.msra.mxu0 0.0
        %2129 = vmatprep.subr.mxu0 0.0
        %2130 = vmatpush1.msra.mxu0 0.0
        %2131 = vmatprep.subr.mxu0 0.0
        %2132 = vmatpush1.msra.mxu0 0.0
        %2133 = vmatprep.subr.mxu0 0.0
        %2134 = vmatpush1.msra.mxu0 0.0
        %2135 = vmatprep.subr.mxu0 0.0
        %2136 = vmatpush1.msra.mxu0 0.0
        %2137 = vmatprep.subr.mxu0 0.0
        %2138 = vmatpush1.msra.mxu0 0.0
        %2139 = vmatprep.subr.mxu0 0.0
        %2140 = vmatpush1.msra.mxu0 0.0
        %2141 = vmatprep.subr.mxu0 0.0
        %2142 = vmatpush1.msra.mxu0 0.0
        %2143 = vmatprep.subr.mxu0 0.0
        %2144 = vmatpush1.msra.mxu0 0.0
        %2145 = vmatprep.subr.mxu0 0.0
        %2146 = vmatpush1.msra.mxu0 0.0
        %2147 = vmatprep.subr.mxu0 0.0
        %2148 = vmatpush1.msra.mxu0 0.0
        %2149 = vmatprep.subr.mxu0 0.0
        %2150 = vmatpush1.msra.mxu0 0.0
        %2151 = vmatprep.subr.mxu0 0.0
        %2152 = vmatpush1.msra.mxu0 0.0
        %2153 = vmatprep.subr.mxu0 0.0
        %2154 = vmatpush1.msra.mxu0 0.0
        %2155 = vmatprep.subr.mxu0 0.0
        %2156 = vmatpush1.msra.mxu0 0.0
        %2157 = vmatprep.subr.mxu0 0.0
        %2158 = vmatpush1.msra.mxu0 0.0
        %2159 = vmatprep.subr.mxu0 0.0
        %2160 = vmatpush1.msra.mxu0 0.0
        %2161 = vmatprep.mubr.f32.mxu0 0.0
        %2162 = vmatmul.mubr.f32.gmra.mrb[0].mxu0 %v2095
        %v2163 = vpop.f32.mrb[0].mxu0
        %v2164 = vadd.f32 0.0, %v2163
        %v2165 = vpop.f32.mrb[0].mxu0
        %2166 = vdwg.mxu0
        %v2167 = vadd.f32 %v1866, %v2164
        %s2168 = scalar_lea.vmem %s17, 3
        %v2169 = vld [vmem:[%s2168] sm:$0x1]
        %v2171 = vlaneseq
        %v2172 = vshrl.u32 %v2171, 7
        %v2173 = vsub.s32 0, %v2172
        %v2174 = vrot.slane %v2169, %v2173
        %v2176 = vadd.f32 %v2167, %v2174
        %v2177 = vld [vmem:[%s18] sm:$0xff]
        %v2178 = vld [vmem:[%s18 + $0x8] sm:$0xff]
        %v2179 = vld [vmem:[%s19] sm:$0x1]
        %v2181 = vlaneseq
        %v2182 = vshrl.u32 %v2181, 7
        %v2183 = vsub.s32 0, %v2182
        %v2184 = vrot.slane %v2179, %v2183
        %v2187 = vsel %vm956, %v2176, 0
        %2189 = vmatprep.subr.mxu0 0.0
        %2190 = vmatpush1.msra.mxu0 %v2177
        %2191 = vmatprep.subr.mxu0 0.0
        %2192 = vmatpush1.msra.mxu0 %v2178
        %2193 = vmatprep.subr.mxu0 0.0
        %2194 = vmatpush1.msra.mxu0 0.0
        %2195 = vmatprep.subr.mxu0 0.0
        %2196 = vmatpush1.msra.mxu0 0.0
        %2197 = vmatprep.subr.mxu0 0.0
        %2198 = vmatpush1.msra.mxu0 0.0
        %2199 = vmatprep.subr.mxu0 0.0
        %2200 = vmatpush1.msra.mxu0 0.0
        %2201 = vmatprep.subr.mxu0 0.0
        %2202 = vmatpush1.msra.mxu0 0.0
        %2203 = vmatprep.subr.mxu0 0.0
        %2204 = vmatpush1.msra.mxu0 0.0
        %2205 = vmatprep.subr.mxu0 0.0
        %2206 = vmatpush1.msra.mxu0 0.0
        %2207 = vmatprep.subr.mxu0 0.0
        %2208 = vmatpush1.msra.mxu0 0.0
        %2209 = vmatprep.subr.mxu0 0.0
        %2210 = vmatpush1.msra.mxu0 0.0
        %2211 = vmatprep.subr.mxu0 0.0
        %2212 = vmatpush1.msra.mxu0 0.0
        %2213 = vmatprep.subr.mxu0 0.0
        %2214 = vmatpush1.msra.mxu0 0.0
        %2215 = vmatprep.subr.mxu0 0.0
        %2216 = vmatpush1.msra.mxu0 0.0
        %2217 = vmatprep.subr.mxu0 0.0
        %2218 = vmatpush1.msra.mxu0 0.0
        %2219 = vmatprep.subr.mxu0 0.0
        %2220 = vmatpush1.msra.mxu0 0.0
        %2221 = vmatprep.subr.mxu0 0.0
        %2222 = vmatpush1.msra.mxu0 0.0
        %2223 = vmatprep.subr.mxu0 0.0
        %2224 = vmatpush1.msra.mxu0 0.0
        %2225 = vmatprep.subr.mxu0 0.0
        %2226 = vmatpush1.msra.mxu0 0.0
        %2227 = vmatprep.subr.mxu0 0.0
        %2228 = vmatpush1.msra.mxu0 0.0
        %2229 = vmatprep.subr.mxu0 0.0
        %2230 = vmatpush1.msra.mxu0 0.0
        %2231 = vmatprep.subr.mxu0 0.0
        %2232 = vmatpush1.msra.mxu0 0.0
        %2233 = vmatprep.subr.mxu0 0.0
        %2234 = vmatpush1.msra.mxu0 0.0
        %2235 = vmatprep.subr.mxu0 0.0
        %2236 = vmatpush1.msra.mxu0 0.0
        %2237 = vmatprep.subr.mxu0 0.0
        %2238 = vmatpush1.msra.mxu0 0.0
        %2239 = vmatprep.subr.mxu0 0.0
        %2240 = vmatpush1.msra.mxu0 0.0
        %2241 = vmatprep.subr.mxu0 0.0
        %2242 = vmatpush1.msra.mxu0 0.0
        %2243 = vmatprep.subr.mxu0 0.0
        %2244 = vmatpush1.msra.mxu0 0.0
        %2245 = vmatprep.subr.mxu0 0.0
        %2246 = vmatpush1.msra.mxu0 0.0
        %2247 = vmatprep.subr.mxu0 0.0
        %2248 = vmatpush1.msra.mxu0 0.0
        %2249 = vmatprep.subr.mxu0 0.0
        %2250 = vmatpush1.msra.mxu0 0.0
        %2251 = vmatprep.subr.mxu0 0.0
        %2252 = vmatpush1.msra.mxu0 0.0
        %2253 = vmatprep.mubr.f32.mxu0 0.0
        %2254 = vmatmul.mubr.f32.gmra.mrb[0].mxu0 %v2187
        %v2255 = vpop.f32.mrb[0].mxu0
        %v2256 = vadd.f32 %v2184, %v2255
        %v2257 = vpop.f32.mrb[0].mxu0
        %2258 = vdwg.mxu0
        %v2259 = vmax.f32 %v2256, 0.0
        %s2260 = sld [smem:[#allocation3 + $0x8]]
        %v2261 = vmul.f32 %v823, %v2259
        %2263 = vrot.lane.b32.xlu0 %v2259, 96
        %v2264 = vpop.permute.xlu0 %2263
        %v2266 = vmul.f32 %v823, %v2264
        %v2268 = vrot.slane %v2266, 1
        %v2270 = vsel %vm1039, %v2261, %v2268
        %v2271 = vld [vmem:[%s20] sm:$0xff]
        %v2272 = vld [vmem:[%s20 + $0x8] sm:$0xff]
        %v2273 = vld [vmem:[%s20 + $0x10] sm:$0xff]
        %v2274 = vld [vmem:[%s20 + $0x18] sm:$0xff]
        %v2276 = vsel %vm868, %v2270, 0
        %v2278 = vsel %vm868, %v2268, 0
        %2280 = vmatprep.subr.mxu0 0.0
        %2281 = vmatpush1.msra.mxu0 %v2271
        %2282 = vmatprep.subr.mxu0 0.0
        %2283 = vmatpush1.msra.mxu0 %v2272
        %2284 = vmatprep.subr.mxu0 0.0
        %2285 = vmatpush1.msra.mxu0 %v2273
        %2286 = vmatprep.subr.mxu0 0.0
        %2287 = vmatpush1.msra.mxu0 %v2274
        %2288 = vmatprep.subr.mxu0 0.0
        %2289 = vmatpush1.msra.mxu0 0.0
        %2290 = vmatprep.subr.mxu0 0.0
        %2291 = vmatpush1.msra.mxu0 0.0
        %2292 = vmatprep.subr.mxu0 0.0
        %2293 = vmatpush1.msra.mxu0 0.0
        %2294 = vmatprep.subr.mxu0 0.0
        %2295 = vmatpush1.msra.mxu0 0.0
        %2296 = vmatprep.subr.mxu0 0.0
        %2297 = vmatpush1.msra.mxu0 0.0
        %2298 = vmatprep.subr.mxu0 0.0
        %2299 = vmatpush1.msra.mxu0 0.0
        %2300 = vmatprep.subr.mxu0 0.0
        %2301 = vmatpush1.msra.mxu0 0.0
        %2302 = vmatprep.subr.mxu0 0.0
        %2303 = vmatpush1.msra.mxu0 0.0
        %2304 = vmatprep.subr.mxu0 0.0
        %2305 = vmatpush1.msra.mxu0 0.0
        %2306 = vmatprep.subr.mxu0 0.0
        %2307 = vmatpush1.msra.mxu0 0.0
        %2308 = vmatprep.subr.mxu0 0.0
        %2309 = vmatpush1.msra.mxu0 0.0
        %2310 = vmatprep.subr.mxu0 0.0
        %2311 = vmatpush1.msra.mxu0 0.0
        %2312 = vmatprep.subr.mxu0 0.0
        %2313 = vmatpush1.msra.mxu0 0.0
        %2314 = vmatprep.subr.mxu0 0.0
        %2315 = vmatpush1.msra.mxu0 0.0
        %2316 = vmatprep.subr.mxu0 0.0
        %2317 = vmatpush1.msra.mxu0 0.0
        %2318 = vmatprep.subr.mxu0 0.0
        %2319 = vmatpush1.msra.mxu0 0.0
        %2320 = vmatprep.subr.mxu0 0.0
        %2321 = vmatpush1.msra.mxu0 0.0
        %2322 = vmatprep.subr.mxu0 0.0
        %2323 = vmatpush1.msra.mxu0 0.0
        %2324 = vmatprep.subr.mxu0 0.0
        %2325 = vmatpush1.msra.mxu0 0.0
        %2326 = vmatprep.subr.mxu0 0.0
        %2327 = vmatpush1.msra.mxu0 0.0
        %2328 = vmatprep.subr.mxu0 0.0
        %2329 = vmatpush1.msra.mxu0 0.0
        %2330 = vmatprep.subr.mxu0 0.0
        %2331 = vmatpush1.msra.mxu0 0.0
        %2332 = vmatprep.subr.mxu0 0.0
        %2333 = vmatpush1.msra.mxu0 0.0
        %2334 = vmatprep.subr.mxu0 0.0
        %2335 = vmatpush1.msra.mxu0 0.0
        %2336 = vmatprep.subr.mxu0 0.0
        %2337 = vmatpush1.msra.mxu0 0.0
        %2338 = vmatprep.subr.mxu0 0.0
        %2339 = vmatpush1.msra.mxu0 0.0
        %2340 = vmatprep.subr.mxu0 0.0
        %2341 = vmatpush1.msra.mxu0 0.0
        %2342 = vmatprep.subr.mxu0 0.0
        %2343 = vmatpush1.msra.mxu0 0.0
        %2344 = vmatprep.mubr.f32.mxu0 0.0
        %2345 = vmatmul.mubr.f32.gmra.mrb[0].mxu0 %v2276
        %v2346 = vpop.f32.mrb[0].mxu0
        %v2347 = vadd.f32 0.0, %v2346
        %v2348 = vpop.f32.mrb[0].mxu0
        %2349 = vmatprep.mubr.f32.mxu0 0.0
        %2350 = vmatmul.mubr.f32.gmra.mrb[0].mxu0 %v2278
        %v2351 = vpop.f32.mrb[0].mxu0
        %v2352 = vadd.f32 0.0, %v2351
        %v2353 = vpop.f32.mrb[0].mxu0
        %2354 = vdwg.mxu0
        %v2355 = vsel %vm1039, %v2347, 0.0
        %v2357 = vrot.slane %v2347, 7
        %2358 = vrot.lane.b32.xlu0 %v2357, 120
        %v2359 = vpop.permute.xlu0 %2358
        %vm2361 = vcmask 1040384
        %v2362 = vsel %vm2361, 0.0, %v2359
        %v2363 = vadd.f32 %v2355, %v2362
        %v2365 = vrot.slane %v2352, 7
        %v2366 = vsel %vm2361, %v2357, %v2365
        %v2368 = vsel %vm1039, %v2366, 0.0
        %vm2369 = vcmask 1041408
        %v2370 = vrot.slane %v2347, 6
        %v2371 = vrot.slane %v2352, 6
        %v2372 = vsel %vm2369, %v2370, %v2371
        %2373 = vrot.lane.b32.xlu0 %v2372, 120
        %v2374 = vpop.permute.xlu0 %2373
        %v2376 = vsel %vm2361, 0.0, %v2374
        %v2377 = vadd.f32 %v2368, %v2376
        %v2378 = vlaneseq
        %v2379 = vshrl.u32 %v2378, 7
        %v2380 = vadd.s32 %v2379, 8
        %v2381 = vlaneseq
        %v2382 = vand.u32 %v2381, 127
        %v2383 = vmul.u32 %v2379, 8
        %v2384 = vmul.u32 %v2380, 8
        %v2385 = vsub.s32 %v2382, %v2383
        %v2386 = vsub.s32 %v2382, %v2384
        %vm2387 = vcmp.eq.s32.totalorder %v2385, 0
        %vm2388 = vcmp.eq.s32.totalorder %v2386, 0
        %2390 = vset.pattern.permute.xlu0 0
        %2391 = vperm.xlu0 %2390, %v2363
        %v2392 = vpop.permute.xlu0 %2391
        %2395 = vset.pattern.permute.xlu0 0
        %2396 = vperm.xlu0 %2395, %v2377
        %v2397 = vpop.permute.xlu0 %2396
        %v2399 = vsel %vm2387, %v2392, 0.0
        %v2400 = vsel %vm2388, %v2397, 0.0
        %v2401 = vadd.f32 %v2399, 0.0
        %v2402 = vadd.f32 %v2400, 0.0
        %vm2403 = vcmp.eq.s32.totalorder %v2385, 1
        %vm2404 = vcmp.eq.s32.totalorder %v2386, 1
        %2405 = vset.pattern.permute.xlu0 1
        %2406 = vperm.xlu0 %2405, %v2363
        %v2407 = vpop.permute.xlu0 %2406
        %2409 = vset.pattern.permute.xlu0 1
        %2410 = vperm.xlu0 %2409, %v2377
        %v2411 = vpop.permute.xlu0 %2410
        %v2413 = vsel %vm2403, %v2407, 0.0
        %v2414 = vsel %vm2404, %v2411, 0.0
        %v2415 = vadd.f32 %v2401, %v2413
        %v2416 = vadd.f32 %v2402, %v2414
        %vm2417 = vcmp.eq.s32.totalorder %v2385, 2
        %vm2418 = vcmp.eq.s32.totalorder %v2386, 2
        %2419 = vset.pattern.permute.xlu0 2
        %2420 = vperm.xlu0 %2419, %v2363
        %v2421 = vpop.permute.xlu0 %2420
        %2423 = vset.pattern.permute.xlu0 2
        %2424 = vperm.xlu0 %2423, %v2377
        %v2425 = vpop.permute.xlu0 %2424
        %v2427 = vsel %vm2417, %v2421, 0.0
        %v2428 = vsel %vm2418, %v2425, 0.0
        %v2429 = vadd.f32 %v2415, %v2427
        %v2430 = vadd.f32 %v2416, %v2428
        %vm2431 = vcmp.eq.s32.totalorder %v2385, 3
        %vm2432 = vcmp.eq.s32.totalorder %v2386, 3
        %2433 = vset.pattern.permute.xlu0 3
        %2434 = vperm.xlu0 %2433, %v2363
        %v2435 = vpop.permute.xlu0 %2434
        %2437 = vset.pattern.permute.xlu0 3
        %2438 = vperm.xlu0 %2437, %v2377
        %v2439 = vpop.permute.xlu0 %2438
        %v2441 = vsel %vm2431, %v2435, 0.0
        %v2442 = vsel %vm2432, %v2439, 0.0
        %v2443 = vadd.f32 %v2429, %v2441
        %v2444 = vadd.f32 %v2430, %v2442
        %vm2445 = vcmp.eq.s32.totalorder %v2385, 4
        %vm2446 = vcmp.eq.s32.totalorder %v2386, 4
        %2447 = vset.pattern.permute.xlu0 4
        %2448 = vperm.xlu0 %2447, %v2363
        %v2449 = vpop.permute.xlu0 %2448
        %2451 = vset.pattern.permute.xlu0 4
        %2452 = vperm.xlu0 %2451, %v2377
        %v2453 = vpop.permute.xlu0 %2452
        %v2455 = vsel %vm2445, %v2449, 0.0
        %v2456 = vsel %vm2446, %v2453, 0.0
        %v2457 = vadd.f32 %v2443, %v2455
        %v2458 = vadd.f32 %v2444, %v2456
        %vm2459 = vcmp.eq.s32.totalorder %v2385, 5
        %vm2460 = vcmp.eq.s32.totalorder %v2386, 5
        %2461 = vset.pattern.permute.xlu0 5
        %2462 = vperm.xlu0 %2461, %v2363
        %v2463 = vpop.permute.xlu0 %2462
        %2465 = vset.pattern.permute.xlu0 5
        %2466 = vperm.xlu0 %2465, %v2377
        %v2467 = vpop.permute.xlu0 %2466
        %v2469 = vsel %vm2459, %v2463, 0.0
        %v2470 = vsel %vm2460, %v2467, 0.0
        %v2471 = vadd.f32 %v2457, %v2469
        %v2472 = vadd.f32 %v2458, %v2470
        %vm2473 = vcmp.eq.s32.totalorder %v2385, 6
        %vm2474 = vcmp.eq.s32.totalorder %v2386, 6
        %2475 = vset.pattern.permute.xlu0 6
        %2476 = vperm.xlu0 %2475, %v2363
        %v2477 = vpop.permute.xlu0 %2476
        %2479 = vset.pattern.permute.xlu0 6
        %2480 = vperm.xlu0 %2479, %v2377
        %v2481 = vpop.permute.xlu0 %2480
        %v2483 = vsel %vm2473, %v2477, 0.0
        %v2484 = vsel %vm2474, %v2481, 0.0
        %v2485 = vadd.f32 %v2471, %v2483
        %v2486 = vadd.f32 %v2472, %v2484
        %vm2487 = vcmp.eq.s32.totalorder %v2385, 7
        %vm2488 = vcmp.eq.s32.totalorder %v2386, 7
        %2489 = vset.pattern.permute.xlu0 7
        %2490 = vperm.xlu0 %2489, %v2363
        %v2491 = vpop.permute.xlu0 %2490
        %2493 = vset.pattern.permute.xlu0 7
        %2494 = vperm.xlu0 %2493, %v2377
        %v2495 = vpop.permute.xlu0 %2494
        %v2497 = vsel %vm2487, %v2491, 0.0
        %v2498 = vsel %vm2488, %v2495, 0.0
        %v2499 = vadd.f32 %v2485, %v2497
        %v2500 = vadd.f32 %v2486, %v2498
        %v2501 = vadd.f32 %v2499, %v2500
        %v2502 = vrot.slane %v2501, 4
        %v2503 = vadd.f32 %v2501, %v2502
        %v2504 = vrot.slane %v2503, 2
        %v2505 = vadd.f32 %v2503, %v2504
        %v2506 = vrot.slane %v2505, 1
        %v2507 = vadd.f32 %v2505, %v2506
        %v2508 = vstv %s2260
        %v2509 = vadd.f32 %v2507, %v2508
        %2510 = vst [vmem:[%s660] sm:$0x1] %v2509
        %s2511 = sand.u32 %s490, 1
        %s2512 = scalar_lea.sflag [#allocation4], %s2511
        %s2513 = sand.u32 %s490, 1
        %s2514 = scalar_lea.vmem [#allocation6], %s2513
        // Predicated region
        $region109: #{tpu_custom_call.1} parent=103 // pred_check
          %p2515 = pneg %p500
        $region110: #{tpu_custom_call.1} parent=103 // pred_check_branch
          %2517 = sbr.rel (%p2515) target = $region112
        $region111: #{tpu_custom_call.1} parent=103 // pred_region
          %s2519 = ssub.s32 16, 16
          %2520 = vsyncadd %s2512, %s2519
          %s2521 = smul.addr %s36, 16
          %s2522 = scalar_lea.hbm %s21, %s2521
          %s2524 = sshll.u32 %s2514, 4
          %s2525 = int_to_ptr.vmem [resolvable:$true] %s2524
          %2527 = dma.vmem_to_hbm [thread:$0]  %s2525, 16, %s2522, %s2512
        $region112: #{tpu_custom_call.1} parent=103 // pred_fallthru
          _
      $region104: #{tpu_custom_call.1} parent=5 // pred_fallthru
        _
      %p2528 = scmp.le.s32.totalorder 2, %s31
      // Predicated region
      $region113: #{tpu_custom_call.1} parent=5 // pred_check
        %p2529 = pneg %p2528
      $region114: #{tpu_custom_call.1} parent=5 // pred_check_branch
        %2531 = sbr.rel (%p2529) target = $region116
      $region115: #{tpu_custom_call.1} parent=5 // pred_region
        %s2532 = ssub.s32 %s31, 2
        // Predicated region
        $region117: #{tpu_custom_call.1} parent=115 // pred_check
          %p2533 = pneg %p506
        $region118: #{tpu_custom_call.1} parent=115 // pred_check_branch
          %2535 = sbr.rel (%p2533) target = $region120
        $region119: #{tpu_custom_call.1} parent=115 // pred_region
          %s2536 = sand.u32 %s491, 1
          %s2537 = scalar_lea.sflag [#allocation4], %s2536
          %s2538 = sand.u32 %s491, 1
          %s2539 = scalar_lea.vmem [#allocation6], %s2538
          %2540 = dma.done %s2537, 16
        $region120: #{tpu_custom_call.1} parent=115 // pred_fallthru
          _
      $region116: #{tpu_custom_call.1} parent=5 // pred_fallthru
        _
    $region6: #{tpu_custom_call.1} parent=1 // loop_footer
      %s35 = sadd.s32 1, %s31
    $region7: #{tpu_custom_call.1} parent=1 // loop_footer_branch
      %30 = sbr.rel target = $region3
    $region8: #{tpu_custom_call.1} parent=1 // loop_exit
      _
    %2541 = vsyncpa [#allocation4], 1
    %s2542 = scalar_lea.sflag [#allocation4], 1
    %2543 = vsyncpa %s2542, 1
    %2544 = vsyncpa [#allocation5], 1
    %s2545 = scalar_lea.sflag [#allocation5], 1
    %2546 = vsyncpa %s2545, 1

</llo_original>
